<compile_context>
chip_gen: v6e
topology: v6e:2x2x1
jax: 0.10.0
libtpu: 0.0.40
codegen_flags: <defaults>
</compile_context>

<pallas_src>
import functools
import math

import jax
import jax.numpy as jnp
from jax.experimental import pallas as pl
from jax.experimental.pallas import tpu as pltpu


def _layer_norm(x, gamma, beta, eps=1e-5):
    mu = jnp.mean(x, axis=-1, keepdims=True)
    xc = x - mu
    var = jnp.mean(xc * xc, axis=-1, keepdims=True)
    return xc * jax.lax.rsqrt(var + eps) * gamma + beta


def _gelu_exact(x):
    # PyTorch nn.GELU() default: exact erf formulation.
    return 0.5 * x * (1.0 + jax.lax.erf(x / jnp.sqrt(2.0).astype(x.dtype)))


def _encoder_layer_kernel(
    xq_ref,          # (1, TS, E) f32   query rows (also the residual rows)
    xkv_ref,         # (1, S,  E) f32   full sequence for K / V
    wq_ref,          # (E, E)     cdt   W_q^T   (scale folded in)
    bq_ref,          # (1, E)     f32   b_q     (scale folded in)
    wkv_ref,         # (E, 2E)    cdt   W_kv^T
    bkv_ref,         # (1, 2E)    f32
    wo_ref,          # (E, E)     cdt   out_proj.weight^T
    bo_ref,          # (1, E)     f32
    g1_ref, be1_ref,  # (1, E)    f32   norm1
    w1_ref,          # (E, Hm)    cdt   mlp lin1 weight^T
    b1_ref,          # (1, Hm)    f32
    w2_ref,          # (Hm, E)    cdt   mlp lin2 weight^T
    b2_ref,          # (1, E)     f32
    g2_ref, be2_ref,  # (1, E)    f32   norm2
    o_ref,           # (1, TS, E)
    *,
    num_heads,
):
    cdt = wq_ref.dtype
    xq = xq_ref[0]                                   # (TS, E) f32
    xkv = xkv_ref[0]                                 # (S, E)  f32
    TS, E = xq.shape
    S = xkv.shape[0]
    H = num_heads
    Dh = E // H

    xq_c = xq.astype(cdt)
    xkv_c = xkv.astype(cdt)

    # ---- projections (x @ W, weights pre-transposed on the host) -----------
    q = jnp.dot(xq_c, wq_ref[...],
                preferred_element_type=jnp.float32) + bq_ref[0]      # (TS, E)
    kv = jnp.dot(xkv_c, wkv_ref[...],
                 preferred_element_type=jnp.float32) + bkv_ref[0]    # (S, 2E)
    k = kv[:, :E]
    v = kv[:, E:]

    # ---- batched multi-head attention (no per-head loop / concat) ----------
    qh = jnp.transpose(q.reshape(TS, H, Dh), (1, 0, 2)).astype(cdt)  # (H,TS,Dh)
    kh = jnp.transpose(k.reshape(S, H, Dh), (1, 0, 2)).astype(cdt)   # (H,S,Dh)
    vh = jnp.transpose(v.reshape(S, H, Dh), (1, 0, 2)).astype(cdt)   # (H,S,Dh)

    s = jnp.einsum("hqd,hkd->hqk", qh, kh,
                   preferred_element_type=jnp.float32)               # (H,TS,S)
    s = s - jnp.max(s, axis=-1, keepdims=True)
    p = jnp.exp(s)
    p = p * pl.reciprocal(jnp.sum(p, axis=-1, keepdims=True), approx=True)
    ctx = jnp.einsum("hqk,hkd->hqd", p.astype(cdt), vh,
                     preferred_element_type=jnp.float32)             # (H,TS,Dh)
    ctx = jnp.transpose(ctx, (1, 0, 2)).reshape(TS, E)               # (TS, E)

    attn = jnp.dot(ctx.astype(cdt), wo_ref[...],
                   preferred_element_type=jnp.float32) + bo_ref[0]

    # ---- residual + LayerNorm 1 (f32) ---------------------------------------
    y = _layer_norm(xq + attn, g1_ref[0], be1_ref[0])

    # ---- MLP: Linear -> GELU -> Linear (dropouts are identity) --------------
    h1 = jnp.dot(y.astype(cdt), w1_ref[...],
                 preferred_element_type=jnp.float32) + b1_ref[0]     # (TS, Hm)
    h1 = _gelu_exact(h1)
    h2 = jnp.dot(h1.astype(cdt), w2_ref[...],
                 preferred_element_type=jnp.float32) + b2_ref[0]     # (TS, E)

    # ---- residual + LayerNorm 2 (f32) ---------------------------------------
    o_ref[0] = _layer_norm(y + h2, g2_ref[0], be2_ref[0]).astype(o_ref.dtype)


def transformer_encoder_layer(x, params, *, num_heads, seq_tile=256,
                              compute_dtype=jnp.bfloat16):
    """x: (B, S, E) float32 -> (B, S, E) float32.

    params follow PyTorch conventions:
      w_qkv (3E,E), b_qkv (1,3E), w_o (E,E), b_o (1,E),
      g1/be1 (1,E), w1 (Hm,E), b1 (1,Hm), w2 (E,Hm), b2 (1,E), g2/be2 (1,E).
    All transposition / dtype casting is done once on the host here.
    """
    B, S, E = x.shape
    Hm = params["w1"].shape[0]
    Dh = E // num_heads
    scale = 1.0 / math.sqrt(Dh)

    # Sequence tile (second-to-last block dim must be a multiple of 8 or full).
    if seq_tile and (S % seq_tile == 0) and (seq_tile % 8 == 0):
        ts = min(seq_tile, S)
    else:
        ts = S

    f32 = jnp.float32
    cdt = compute_dtype

    w_qkv = params["w_qkv"].astype(f32)
    b_qkv = params["b_qkv"].astype(f32)

    # Pre-transposed (in, out) weight layouts; q-scale folded on the host.
    w_q = (w_qkv[:E] * scale).T.astype(cdt)          # (E, E)
    b_q = b_qkv[:, :E] * scale                       # (1, E)  f32
    w_kv = w_qkv[E:].T.astype(cdt)                   # (E, 2E)
    b_kv = b_qkv[:, E:]                              # (1, 2E) f32
    w_o = params["w_o"].T.astype(cdt)                # (E, E)
    w_1 = params["w1"].T.astype(cdt)                 # (E, Hm)
    w_2 = params["w2"].T.astype(cdt)                 # (Hm, E)

    kernel = functools.partial(_encoder_layer_kernel, num_heads=num_heads)

    const = lambda shp: pl.BlockSpec(shp, lambda b, qi: (0, 0))

    return pl.pallas_call(
        kernel,
        out_shape=jax.ShapeDtypeStruct((B, S, E), jnp.float32),
        grid_spec=pltpu.PrefetchScalarGridSpec(
            num_scalar_prefetch=0,
            grid=(B, S // ts),
            in_specs=[
                pl.BlockSpec((1, ts, E), lambda b, qi: (b, qi, 0)),  # x (queries)
                pl.BlockSpec((1, S, E), lambda b, qi: (b, 0, 0)),    # x (K/V)
                const((E, E)),       # W_q^T
                const((1, E)),       # b_q
                const((E, 2 * E)),   # W_kv^T
                const((1, 2 * E)),   # b_kv
                const((E, E)),       # W_o^T
                const((1, E)),       # b_o
                const((1, E)),       # norm1.weight
                const((1, E)),       # norm1.bias
                const((E, Hm)),      # mlp lin1 W^T
                const((1, Hm)),      # mlp lin1 b
                const((Hm, E)),      # mlp lin2 W^T
                const((1, E)),       # mlp lin2 b
                const((1, E)),       # norm2.weight
                const((1, E)),       # norm2.bias
            ],
            out_specs=pl.BlockSpec((1, ts, E), lambda b, qi: (b, qi, 0)),
        ),
        compiler_params=pltpu.CompilerParams(
            dimension_semantics=("parallel", "parallel"),
            vmem_limit_bytes=48 * 1024 * 1024),
    )(
        x.astype(f32), x.astype(f32),
        w_q, b_q, w_kv, b_kv,
        w_o, params["b_o"].astype(f32),
        params["g1"].astype(f32), params["be1"].astype(f32),
        w_1, params["b1"].astype(f32),
        w_2, params["b2"].astype(f32),
        params["g2"].astype(f32), params["be2"].astype(f32),
    )


# ----------------------------- pure-JAX reference ---------------------------
def reference_forward(x, params, *, num_heads):
    B, S, E = x.shape
    Dh = E // num_heads
    scale = 1.0 / math.sqrt(Dh)

    qkv = x @ params["w_qkv"].T + params["b_qkv"][0]                 # (B,S,3E)
    q, k, v = qkv[..., :E], qkv[..., E:2 * E], qkv[..., 2 * E:]

    def split_heads(t):
        return t.reshape(B, S, num_heads, Dh).transpose(0, 2, 1, 3)

    qh, kh, vh = split_heads(q) * scale, split_heads(k), split_heads(v)
    s = jnp.einsum("bhqd,bhkd->bhqk", qh, kh)
    p = jax.nn.softmax(s, axis=-1)
    o = jnp.einsum("bhqk,bhkd->bhqd", p, vh)
    o = o.transpose(0, 2, 1, 3).reshape(B, S, E)
    attn = o @ params["w_o"].T + params["b_o"][0]

    def ln(t, g, b):
        mu = t.mean(-1, keepdims=True)
        var = ((t - mu) ** 2).mean(-1, keepdims=True)
        return (t - mu) / jnp.sqrt(var + 1e-5) * g[0] + b[0]

    x = ln(x + attn, params["g1"], params["be1"])
    h1 = jax.nn.gelu(x @ params["w1"].T + params["b1"][0], approximate=False)
    h2 = h1 @ params["w2"].T + params["b2"][0]
    x = ln(x + h2, params["g2"], params["be2"])
    return x


if __name__ == "__main__":
    # Module defaults: embed_dim=256, num_heads=8, mlp_ratio=4.0 (lane-aligned).
    B, S, E, H = 2, 16, 256, 8
    Hm = int(E * 4.0)

    key = jax.random.PRNGKey(0)
    ks = jax.random.split(key, 13)

    params = {
        "w_qkv": 0.05 * jax.random.normal(ks[0], (3 * E, E), jnp.float32),
        "b_qkv": 0.05 * jax.random.normal(ks[1], (1, 3 * E), jnp.float32),
        "w_o":   0.05 * jax.random.normal(ks[2], (E, E), jnp.float32),
        "b_o":   0.05 * jax.random.normal(ks[3], (1, E), jnp.float32),
        "g1":    1.0 + 0.1 * jax.random.normal(ks[4], (1, E), jnp.float32),
        "be1":   0.1 * jax.random.normal(ks[5], (1, E), jnp.float32),
        "w1":    0.05 * jax.random.normal(ks[6], (Hm, E), jnp.float32),
        "b1":    0.05 * jax.random.normal(ks[7], (1, Hm), jnp.float32),
        "w2":    0.05 * jax.random.normal(ks[8], (E, Hm), jnp.float32),
        "b2":    0.05 * jax.random.normal(ks[9], (1, E), jnp.float32),
        "g2":    1.0 + 0.1 * jax.random.normal(ks[10], (1, E), jnp.float32),
        "be2":   0.1 * jax.random.normal(ks[11], (1, E), jnp.float32),
    }

    x = jax.random.normal(ks[12], (B, S, E), jnp.float32)

    ref = reference_forward(x, params, num_heads=H)

    # Optimized default path: bf16 matmul operands, f32 accumulation, seq tiling.
    out = transformer_encoder_layer(x, params, num_heads=H, seq_tile=8)
    out = jax.block_until_ready(out)
    assert out.shape == (B, S, E)
    err_bf16 = float(jnp.max(jnp.abs(out.astype(jnp.float32) - ref)))
    assert err_bf16 < 1e-1, err_bf16

    # f32 path for tighter numerical validation of the same kernel structure.
    out32 = transformer_encoder_layer(x, params, num_heads=H, seq_tile=8,
                                      compute_dtype=jnp.float32)
    out32 = jax.block_until_ready(out32)
    err_f32 = float(jnp.max(jnp.abs(out32 - ref)))
    assert err_f32 < 2e-2, err_f32

    print("KERNEL_OK")
</pallas_src>

<mosaic_0001>
module attributes {stable_mosaic.version = 11 : i64} {
  func.func @_encoder_layer_kernel(%arg0: i32, %arg1: i32, %arg2: memref<1x8x256xf32, #tpu.memory_space<vmem>>, %arg3: memref<1x16x256xf32, #tpu.memory_space<vmem>>, %arg4: memref<256x256xbf16, #tpu.memory_space<vmem>>, %arg5: memref<1x256xf32, #tpu.memory_space<vmem>>, %arg6: memref<256x512xbf16, #tpu.memory_space<vmem>>, %arg7: memref<1x512xf32, #tpu.memory_space<vmem>>, %arg8: memref<256x256xbf16, #tpu.memory_space<vmem>>, %arg9: memref<1x256xf32, #tpu.memory_space<vmem>>, %arg10: memref<1x256xf32, #tpu.memory_space<vmem>>, %arg11: memref<1x256xf32, #tpu.memory_space<vmem>>, %arg12: memref<256x1024xbf16, #tpu.memory_space<vmem>>, %arg13: memref<1x1024xf32, #tpu.memory_space<vmem>>, %arg14: memref<1024x256xbf16, #tpu.memory_space<vmem>>, %arg15: memref<1x256xf32, #tpu.memory_space<vmem>>, %arg16: memref<1x256xf32, #tpu.memory_space<vmem>>, %arg17: memref<1x256xf32, #tpu.memory_space<vmem>>, %arg18: memref<1x8x256xf32, #tpu.memory_space<vmem>>) attributes {dimension_semantics = [#tpu.dimension_semantics<parallel>, #tpu.dimension_semantics<parallel>], iteration_bounds = array<i64: 2, 2>, scalar_prefetch = 0 : i64, scratch_operands = 0 : i64, tpu.core_type = #tpu.core_type<tc>, window_params = [{transform_indices = @transform_0, window_bounds = array<i64: 1, 8, 256>}, {transform_indices = @transform_1, window_bounds = array<i64: 1, 16, 256>}, {pipeline_mode = #tpu.pipeline_mode<synchronous>, transform_indices = @transform_2, window_bounds = array<i64: 256, 256>}, {pipeline_mode = #tpu.pipeline_mode<synchronous>, transform_indices = @transform_3, window_bounds = array<i64: 1, 256>}, {pipeline_mode = #tpu.pipeline_mode<synchronous>, transform_indices = @transform_4, window_bounds = array<i64: 256, 512>}, {pipeline_mode = #tpu.pipeline_mode<synchronous>, transform_indices = @transform_5, window_bounds = array<i64: 1, 512>}, {pipeline_mode = #tpu.pipeline_mode<synchronous>, transform_indices = @transform_6, window_bounds = array<i64: 256, 256>}, {pipeline_mode = #tpu.pipeline_mode<synchronous>, transform_indices = @transform_7, window_bounds = array<i64: 1, 256>}, {pipeline_mode = #tpu.pipeline_mode<synchronous>, transform_indices = @transform_8, window_bounds = array<i64: 1, 256>}, {pipeline_mode = #tpu.pipeline_mode<synchronous>, transform_indices = @transform_9, window_bounds = array<i64: 1, 256>}, {pipeline_mode = #tpu.pipeline_mode<synchronous>, transform_indices = @transform_10, window_bounds = array<i64: 256, 1024>}, {pipeline_mode = #tpu.pipeline_mode<synchronous>, transform_indices = @transform_11, window_bounds = array<i64: 1, 1024>}, {pipeline_mode = #tpu.pipeline_mode<synchronous>, transform_indices = @transform_12, window_bounds = array<i64: 1024, 256>}, {pipeline_mode = #tpu.pipeline_mode<synchronous>, transform_indices = @transform_13, window_bounds = array<i64: 1, 256>}, {pipeline_mode = #tpu.pipeline_mode<synchronous>, transform_indices = @transform_14, window_bounds = array<i64: 1, 256>}, {pipeline_mode = #tpu.pipeline_mode<synchronous>, transform_indices = @transform_15, window_bounds = array<i64: 1, 256>}, {transform_indices = @transform_16, window_bounds = array<i64: 1, 8, 256>}]} {
    %c0 = arith.constant 0 : index
    %c0_0 = arith.constant 0 : index
    %c0_1 = arith.constant 0 : index
    %0 = vector.load %arg2[%c0, %c0_0, %c0_1] : memref<1x8x256xf32, #tpu.memory_space<vmem>>, vector<1x8x256xf32>
    %1 = vector.shape_cast %0 : vector<1x8x256xf32> to vector<8x256xf32>
    %c0_2 = arith.constant 0 : index
    %c0_3 = arith.constant 0 : index
    %c0_4 = arith.constant 0 : index
    %2 = vector.load %arg3[%c0_2, %c0_3, %c0_4] : memref<1x16x256xf32, #tpu.memory_space<vmem>>, vector<1x16x256xf32>
    %3 = vector.shape_cast %2 : vector<1x16x256xf32> to vector<16x256xf32>
    %4 = arith.truncf %1 : vector<8x256xf32> to vector<8x256xbf16>
    %5 = arith.truncf %3 : vector<16x256xf32> to vector<16x256xbf16>
    %c0_5 = arith.constant 0 : index
    %c0_6 = arith.constant 0 : index
    %6 = vector.load %arg4[%c0_5, %c0_6] : memref<256x256xbf16, #tpu.memory_space<vmem>>, vector<256x256xbf16>
    %cst = arith.constant dense<0.000000e+00> : vector<8x256xf32>
    %7 = tpu.matmul %4, %6, %cst {dimension_numbers = #tpu.dot_dimension_numbers<[1], [0], [0], [1], [0, 0, 1, 1], [], []>} : vector<8x256xbf16>, vector<256x256xbf16>, vector<8x256xf32> -> vector<8x256xf32>
    %c0_7 = arith.constant 0 : index
    %c0_8 = arith.constant 0 : index
    %8 = vector.load %arg5[%c0_7, %c0_8] : memref<1x256xf32, #tpu.memory_space<vmem>>, vector<1x256xf32>
    %9 = vector.shape_cast %8 : vector<1x256xf32> to vector<256xf32>
    %10 = vector.shape_cast %9 : vector<256xf32> to vector<1x256xf32>
    %11 = vector.broadcast %10 : vector<1x256xf32> to vector<8x256xf32>
    %12 = arith.addf %7, %11 : vector<8x256xf32>
    %c0_9 = arith.constant 0 : index
    %c0_10 = arith.constant 0 : index
    %13 = vector.load %arg6[%c0_9, %c0_10] : memref<256x512xbf16, #tpu.memory_space<vmem>>, vector<256x512xbf16>
    %cst_11 = arith.constant dense<0.000000e+00> : vector<16x512xf32>
    %14 = tpu.matmul %5, %13, %cst_11 {dimension_numbers = #tpu.dot_dimension_numbers<[1], [0], [0], [1], [0, 0, 1, 1], [], []>} : vector<16x256xbf16>, vector<256x512xbf16>, vector<16x512xf32> -> vector<16x512xf32>
    %c0_12 = arith.constant 0 : index
    %c0_13 = arith.constant 0 : index
    %15 = vector.load %arg7[%c0_12, %c0_13] : memref<1x512xf32, #tpu.memory_space<vmem>>, vector<1x512xf32>
    %16 = vector.shape_cast %15 : vector<1x512xf32> to vector<512xf32>
    %17 = vector.shape_cast %16 : vector<512xf32> to vector<1x512xf32>
    %18 = vector.broadcast %17 : vector<1x512xf32> to vector<16x512xf32>
    %19 = arith.addf %14, %18 : vector<16x512xf32>
    %20 = vector.extract_strided_slice %19 {offsets = [0, 0], sizes = [16, 256], strides = [1, 1]} : vector<16x512xf32> to vector<16x256xf32>
    %21 = vector.extract_strided_slice %19 {offsets = [0, 256], sizes = [16, 256], strides = [1, 1]} : vector<16x512xf32> to vector<16x256xf32>
    %22 = vector.shape_cast %12 : vector<8x256xf32> to vector<8x8x32xf32>
    %23 = tpu.transpose %22, [1, 0, 2] : vector<8x8x32xf32> -> vector<8x8x32xf32>
    %24 = arith.truncf %23 : vector<8x8x32xf32> to vector<8x8x32xbf16>
    %25 = vector.shape_cast %20 : vector<16x256xf32> to vector<16x8x32xf32>
    %26 = tpu.transpose %25, [1, 0, 2] : vector<16x8x32xf32> -> vector<8x16x32xf32>
    %27 = arith.truncf %26 : vector<8x16x32xf32> to vector<8x16x32xbf16>
    %28 = vector.shape_cast %21 : vector<16x256xf32> to vector<16x8x32xf32>
    %29 = tpu.transpose %28, [1, 0, 2] : vector<16x8x32xf32> -> vector<8x16x32xf32>
    %30 = arith.truncf %29 : vector<8x16x32xf32> to vector<8x16x32xbf16>
    "tpu.trace_start"() <{level = 10 : i32, message = "hqd,hkd->hqk"}> : () -> ()
    %cst_14 = arith.constant dense<0.000000e+00> : vector<8x8x16xf32>
    %31 = tpu.matmul %24, %27, %cst_14 {dimension_numbers = #tpu.dot_dimension_numbers<[2], [2], [1], [1], [0, 0, 0, 1, 1, 1], [0], [0]>} : vector<8x8x32xbf16>, vector<8x16x32xbf16>, vector<8x8x16xf32> -> vector<8x8x16xf32>
    "tpu.trace_stop"() : () -> ()
    %cst_15 = arith.constant dense<0xFF800000> : vector<8x8xf32>
    %32 = vector.multi_reduction <maximumf>, %31, %cst_15 [2] : vector<8x8x16xf32> to vector<8x8xf32>
    %33 = vector.shape_cast %32 : vector<8x8xf32> to vector<8x8x1xf32>
    %34 = vector.broadcast %33 : vector<8x8x1xf32> to vector<8x8x16xf32>
    %35 = arith.subf %31, %34 : vector<8x8x16xf32>
    %36 = math.exp %35 : vector<8x8x16xf32>
    %cst_16 = arith.constant dense<0.000000e+00> : vector<8x8xf32>
    %37 = vector.multi_reduction <add>, %36, %cst_16 [2] : vector<8x8x16xf32> to vector<8x8xf32>
    %38 = vector.shape_cast %37 : vector<8x8xf32> to vector<8x8x1xf32>
    %39 = tpu.reciprocal %38 {approx = true} : vector<8x8x1xf32> -> vector<8x8x1xf32>
    %40 = vector.broadcast %39 : vector<8x8x1xf32> to vector<8x8x16xf32>
    %41 = arith.mulf %36, %40 : vector<8x8x16xf32>
    %42 = arith.truncf %41 : vector<8x8x16xf32> to vector<8x8x16xbf16>
    "tpu.trace_start"() <{level = 10 : i32, message = "hqk,hkd->hqd"}> : () -> ()
    %cst_17 = arith.constant dense<0.000000e+00> : vector<8x8x32xf32>
    %43 = tpu.matmul %42, %30, %cst_17 {dimension_numbers = #tpu.dot_dimension_numbers<[2], [1], [1], [2], [0, 0, 0, 1, 1, 2], [0], [0]>} : vector<8x8x16xbf16>, vector<8x16x32xbf16>, vector<8x8x32xf32> -> vector<8x8x32xf32>
    "tpu.trace_stop"() : () -> ()
    %44 = tpu.transpose %43, [1, 0, 2] : vector<8x8x32xf32> -> vector<8x8x32xf32>
    %45 = vector.shape_cast %44 : vector<8x8x32xf32> to vector<8x256xf32>
    %46 = arith.truncf %45 : vector<8x256xf32> to vector<8x256xbf16>
    %c0_18 = arith.constant 0 : index
    %c0_19 = arith.constant 0 : index
    %47 = vector.load %arg8[%c0_18, %c0_19] : memref<256x256xbf16, #tpu.memory_space<vmem>>, vector<256x256xbf16>
    %cst_20 = arith.constant dense<0.000000e+00> : vector<8x256xf32>
    %48 = tpu.matmul %46, %47, %cst_20 {dimension_numbers = #tpu.dot_dimension_numbers<[1], [0], [0], [1], [0, 0, 1, 1], [], []>} : vector<8x256xbf16>, vector<256x256xbf16>, vector<8x256xf32> -> vector<8x256xf32>
    %c0_21 = arith.constant 0 : index
    %c0_22 = arith.constant 0 : index
    %49 = vector.load %arg9[%c0_21, %c0_22] : memref<1x256xf32, #tpu.memory_space<vmem>>, vector<1x256xf32>
    %50 = vector.shape_cast %49 : vector<1x256xf32> to vector<256xf32>
    %51 = vector.shape_cast %50 : vector<256xf32> to vector<1x256xf32>
    %52 = vector.broadcast %51 : vector<1x256xf32> to vector<8x256xf32>
    %53 = arith.addf %48, %52 : vector<8x256xf32>
    %54 = arith.addf %1, %53 : vector<8x256xf32>
    %c0_23 = arith.constant 0 : index
    %c0_24 = arith.constant 0 : index
    %55 = vector.load %arg10[%c0_23, %c0_24] : memref<1x256xf32, #tpu.memory_space<vmem>>, vector<1x256xf32>
    %56 = vector.shape_cast %55 : vector<1x256xf32> to vector<256xf32>
    %c0_25 = arith.constant 0 : index
    %c0_26 = arith.constant 0 : index
    %57 = vector.load %arg11[%c0_25, %c0_26] : memref<1x256xf32, #tpu.memory_space<vmem>>, vector<1x256xf32>
    %58 = vector.shape_cast %57 : vector<1x256xf32> to vector<256xf32>
    %cst_27 = arith.constant dense<0.000000e+00> : vector<8xf32>
    %59 = vector.multi_reduction <add>, %54, %cst_27 [1] : vector<8x256xf32> to vector<8xf32>
    %60 = vector.shape_cast %59 : vector<8xf32> to vector<8x1xf32>
    %cst_28 = arith.constant 2.560000e+02 : f32
    %61 = vector.broadcast %cst_28 : f32 to vector<8x1xf32>
    %62 = arith.divf %60, %61 : vector<8x1xf32>
    %63 = vector.broadcast %62 : vector<8x1xf32> to vector<8x256xf32>
    %64 = arith.subf %54, %63 : vector<8x256xf32>
    %65 = arith.mulf %64, %64 : vector<8x256xf32>
    %cst_29 = arith.constant dense<0.000000e+00> : vector<8xf32>
    %66 = vector.multi_reduction <add>, %65, %cst_29 [1] : vector<8x256xf32> to vector<8xf32>
    %67 = vector.shape_cast %66 : vector<8xf32> to vector<8x1xf32>
    %cst_30 = arith.constant 2.560000e+02 : f32
    %68 = vector.broadcast %cst_30 : f32 to vector<8x1xf32>
    %69 = arith.divf %67, %68 : vector<8x1xf32>
    %cst_31 = arith.constant 9.99999974E-6 : f32
    %70 = vector.broadcast %cst_31 : f32 to vector<8x1xf32>
    %71 = arith.addf %69, %70 : vector<8x1xf32>
    %72 = math.rsqrt %71 : vector<8x1xf32>
    %73 = vector.broadcast %72 : vector<8x1xf32> to vector<8x256xf32>
    %74 = arith.mulf %64, %73 : vector<8x256xf32>
    %75 = vector.shape_cast %56 : vector<256xf32> to vector<1x256xf32>
    %76 = vector.broadcast %75 : vector<1x256xf32> to vector<8x256xf32>
    %77 = arith.mulf %74, %76 : vector<8x256xf32>
    %78 = vector.shape_cast %58 : vector<256xf32> to vector<1x256xf32>
    %79 = vector.broadcast %78 : vector<1x256xf32> to vector<8x256xf32>
    %80 = arith.addf %77, %79 : vector<8x256xf32>
    %81 = arith.truncf %80 : vector<8x256xf32> to vector<8x256xbf16>
    %c0_32 = arith.constant 0 : index
    %c0_33 = arith.constant 0 : index
    %82 = vector.load %arg12[%c0_32, %c0_33] : memref<256x1024xbf16, #tpu.memory_space<vmem>>, vector<256x1024xbf16>
    %cst_34 = arith.constant dense<0.000000e+00> : vector<8x1024xf32>
    %83 = tpu.matmul %81, %82, %cst_34 {dimension_numbers = #tpu.dot_dimension_numbers<[1], [0], [0], [1], [0, 0, 1, 1], [], []>} : vector<8x256xbf16>, vector<256x1024xbf16>, vector<8x1024xf32> -> vector<8x1024xf32>
    %c0_35 = arith.constant 0 : index
    %c0_36 = arith.constant 0 : index
    %84 = vector.load %arg13[%c0_35, %c0_36] : memref<1x1024xf32, #tpu.memory_space<vmem>>, vector<1x1024xf32>
    %85 = vector.shape_cast %84 : vector<1x1024xf32> to vector<1024xf32>
    %86 = vector.shape_cast %85 : vector<1024xf32> to vector<1x1024xf32>
    %87 = vector.broadcast %86 : vector<1x1024xf32> to vector<8x1024xf32>
    %88 = arith.addf %83, %87 : vector<8x1024xf32>
    %cst_37 = arith.constant 5.000000e-01 : f32
    %89 = vector.broadcast %cst_37 : f32 to vector<8x1024xf32>
    %90 = arith.mulf %89, %88 : vector<8x1024xf32>
    %cst_38 = arith.constant 2.000000e+00 : f32
    %91 = math.sqrt %cst_38 : f32
    %92 = vector.broadcast %91 : f32 to vector<8x1024xf32>
    %93 = arith.divf %88, %92 : vector<8x1024xf32>
    %94 = math.erf %93 : vector<8x1024xf32>
    %cst_39 = arith.constant 1.000000e+00 : f32
    %95 = vector.broadcast %cst_39 : f32 to vector<8x1024xf32>
    %96 = arith.addf %95, %94 : vector<8x1024xf32>
    %97 = arith.mulf %90, %96 : vector<8x1024xf32>
    %98 = arith.truncf %97 : vector<8x1024xf32> to vector<8x1024xbf16>
    %c0_40 = arith.constant 0 : index
    %c0_41 = arith.constant 0 : index
    %99 = vector.load %arg14[%c0_40, %c0_41] : memref<1024x256xbf16, #tpu.memory_space<vmem>>, vector<1024x256xbf16>
    %cst_42 = arith.constant dense<0.000000e+00> : vector<8x256xf32>
    %100 = tpu.matmul %98, %99, %cst_42 {dimension_numbers = #tpu.dot_dimension_numbers<[1], [0], [0], [1], [0, 0, 1, 1], [], []>} : vector<8x1024xbf16>, vector<1024x256xbf16>, vector<8x256xf32> -> vector<8x256xf32>
    %c0_43 = arith.constant 0 : index
    %c0_44 = arith.constant 0 : index
    %101 = vector.load %arg15[%c0_43, %c0_44] : memref<1x256xf32, #tpu.memory_space<vmem>>, vector<1x256xf32>
    %102 = vector.shape_cast %101 : vector<1x256xf32> to vector<256xf32>
    %103 = vector.shape_cast %102 : vector<256xf32> to vector<1x256xf32>
    %104 = vector.broadcast %103 : vector<1x256xf32> to vector<8x256xf32>
    %105 = arith.addf %100, %104 : vector<8x256xf32>
    %106 = arith.addf %80, %105 : vector<8x256xf32>
    %c0_45 = arith.constant 0 : index
    %c0_46 = arith.constant 0 : index
    %107 = vector.load %arg16[%c0_45, %c0_46] : memref<1x256xf32, #tpu.memory_space<vmem>>, vector<1x256xf32>
    %108 = vector.shape_cast %107 : vector<1x256xf32> to vector<256xf32>
    %c0_47 = arith.constant 0 : index
    %c0_48 = arith.constant 0 : index
    %109 = vector.load %arg17[%c0_47, %c0_48] : memref<1x256xf32, #tpu.memory_space<vmem>>, vector<1x256xf32>
    %110 = vector.shape_cast %109 : vector<1x256xf32> to vector<256xf32>
    %cst_49 = arith.constant dense<0.000000e+00> : vector<8xf32>
    %111 = vector.multi_reduction <add>, %106, %cst_49 [1] : vector<8x256xf32> to vector<8xf32>
    %112 = vector.shape_cast %111 : vector<8xf32> to vector<8x1xf32>
    %cst_50 = arith.constant 2.560000e+02 : f32
    %113 = vector.broadcast %cst_50 : f32 to vector<8x1xf32>
    %114 = arith.divf %112, %113 : vector<8x1xf32>
    %115 = vector.broadcast %114 : vector<8x1xf32> to vector<8x256xf32>
    %116 = arith.subf %106, %115 : vector<8x256xf32>
    %117 = arith.mulf %116, %116 : vector<8x256xf32>
    %cst_51 = arith.constant dense<0.000000e+00> : vector<8xf32>
    %118 = vector.multi_reduction <add>, %117, %cst_51 [1] : vector<8x256xf32> to vector<8xf32>
    %119 = vector.shape_cast %118 : vector<8xf32> to vector<8x1xf32>
    %cst_52 = arith.constant 2.560000e+02 : f32
    %120 = vector.broadcast %cst_52 : f32 to vector<8x1xf32>
    %121 = arith.divf %119, %120 : vector<8x1xf32>
    %cst_53 = arith.constant 9.99999974E-6 : f32
    %122 = vector.broadcast %cst_53 : f32 to vector<8x1xf32>
    %123 = arith.addf %121, %122 : vector<8x1xf32>
    %124 = math.rsqrt %123 : vector<8x1xf32>
    %125 = vector.broadcast %124 : vector<8x1xf32> to vector<8x256xf32>
    %126 = arith.mulf %116, %125 : vector<8x256xf32>
    %127 = vector.shape_cast %108 : vector<256xf32> to vector<1x256xf32>
    %128 = vector.broadcast %127 : vector<1x256xf32> to vector<8x256xf32>
    %129 = arith.mulf %126, %128 : vector<8x256xf32>
    %130 = vector.shape_cast %110 : vector<256xf32> to vector<1x256xf32>
    %131 = vector.broadcast %130 : vector<1x256xf32> to vector<8x256xf32>
    %132 = arith.addf %129, %131 : vector<8x256xf32>
    %c0_54 = arith.constant 0 : index
    %c0_55 = arith.constant 0 : index
    %c0_56 = arith.constant 0 : index
    %133 = vector.load %arg18[%c0_54, %c0_55, %c0_56] : memref<1x8x256xf32, #tpu.memory_space<vmem>>, vector<1x8x256xf32>
    %134 = vector.shape_cast %133 : vector<1x8x256xf32> to vector<8x256xf32>
    %135 = vector.shape_cast %132 : vector<8x256xf32> to vector<1x8x256xf32>
    tpu.vector_store %arg18[%c0_54, %c0_55, %c0_56], %135 {strides = array<i32>} : memref<1x8x256xf32, #tpu.memory_space<vmem>>, vector<1x8x256xf32>,
    return
  }
  func.func @transform_0(%arg0: i32, %arg1: i32) -> (i32, i32, i32) {
    %c0_i32 = arith.constant 0 : i32
    %c0_i32_0 = arith.constant 0 : i32
    return %arg0, %arg1, %c0_i32 : i32, i32, i32
  }
  func.func @transform_1(%arg0: i32, %arg1: i32) -> (i32, i32, i32) {
    %c0_i32 = arith.constant 0 : i32
    %c0_i32_0 = arith.constant 0 : i32
    %c0_i32_1 = arith.constant 0 : i32
    return %arg0, %c0_i32, %c0_i32_0 : i32, i32, i32
  }
  func.func @transform_2(%arg0: i32, %arg1: i32) -> (i32, i32) {
    %c0_i32 = arith.constant 0 : i32
    %c0_i32_0 = arith.constant 0 : i32
    %c0_i32_1 = arith.constant 0 : i32
    return %c0_i32, %c0_i32_0 : i32, i32
  }
  func.func @transform_3(%arg0: i32, %arg1: i32) -> (i32, i32) {
    %c0_i32 = arith.constant 0 : i32
    %c0_i32_0 = arith.constant 0 : i32
    %c0_i32_1 = arith.constant 0 : i32
    return %c0_i32, %c0_i32_0 : i32, i32
  }
  func.func @transform_4(%arg0: i32, %arg1: i32) -> (i32, i32) {
    %c0_i32 = arith.constant 0 : i32
    %c0_i32_0 = arith.constant 0 : i32
    %c0_i32_1 = arith.constant 0 : i32
    return %c0_i32, %c0_i32_0 : i32, i32
  }
  func.func @transform_5(%arg0: i32, %arg1: i32) -> (i32, i32) {
    %c0_i32 = arith.constant 0 : i32
    %c0_i32_0 = arith.constant 0 : i32
    %c0_i32_1 = arith.constant 0 : i32
    return %c0_i32, %c0_i32_0 : i32, i32
  }
  func.func @transform_6(%arg0: i32, %arg1: i32) -> (i32, i32) {
    %c0_i32 = arith.constant 0 : i32
    %c0_i32_0 = arith.constant 0 : i32
    %c0_i32_1 = arith.constant 0 : i32
    return %c0_i32, %c0_i32_0 : i32, i32
  }
  func.func @transform_7(%arg0: i32, %arg1: i32) -> (i32, i32) {
    %c0_i32 = arith.constant 0 : i32
    %c0_i32_0 = arith.constant 0 : i32
    %c0_i32_1 = arith.constant 0 : i32
    return %c0_i32, %c0_i32_0 : i32, i32
  }
  func.func @transform_8(%arg0: i32, %arg1: i32) -> (i32, i32) {
    %c0_i32 = arith.constant 0 : i32
    %c0_i32_0 = arith.constant 0 : i32
    %c0_i32_1 = arith.constant 0 : i32
    return %c0_i32, %c0_i32_0 : i32, i32
  }
  func.func @transform_9(%arg0: i32, %arg1: i32) -> (i32, i32) {
    %c0_i32 = arith.constant 0 : i32
    %c0_i32_0 = arith.constant 0 : i32
    %c0_i32_1 = arith.constant 0 : i32
    return %c0_i32, %c0_i32_0 : i32, i32
  }
  func.func @transform_10(%arg0: i32, %arg1: i32) -> (i32, i32) {
    %c0_i32 = arith.constant 0 : i32
    %c0_i32_0 = arith.constant 0 : i32
    %c0_i32_1 = arith.constant 0 : i32
    return %c0_i32, %c0_i32_0 : i32, i32
  }
  func.func @transform_11(%arg0: i32, %arg1: i32) -> (i32, i32) {
    %c0_i32 = arith.constant 0 : i32
    %c0_i32_0 = arith.constant 0 : i32
    %c0_i32_1 = arith.constant 0 : i32
    return %c0_i32, %c0_i32_0 : i32, i32
  }
  func.func @transform_12(%arg0: i32, %arg1: i32) -> (i32, i32) {
    %c0_i32 = arith.constant 0 : i32
    %c0_i32_0 = arith.constant 0 : i32
    %c0_i32_1 = arith.constant 0 : i32
    return %c0_i32, %c0_i32_0 : i32, i32
  }
  func.func @transform_13(%arg0: i32, %arg1: i32) -> (i32, i32) {
    %c0_i32 = arith.constant 0 : i32
    %c0_i32_0 = arith.constant 0 : i32
    %c0_i32_1 = arith.constant 0 : i32
    return %c0_i32, %c0_i32_0 : i32, i32
  }
  func.func @transform_14(%arg0: i32, %arg1: i32) -> (i32, i32) {
    %c0_i32 = arith.constant 0 : i32
    %c0_i32_0 = arith.constant 0 : i32
    %c0_i32_1 = arith.constant 0 : i32
    return %c0_i32, %c0_i32_0 : i32, i32
  }
  func.func @transform_15(%arg0: i32, %arg1: i32) -> (i32, i32) {
    %c0_i32 = arith.constant 0 : i32
    %c0_i32_0 = arith.constant 0 : i32
    %c0_i32_1 = arith.constant 0 : i32
    return %c0_i32, %c0_i32_0 : i32, i32
  }
  func.func @transform_16(%arg0: i32, %arg1: i32) -> (i32, i32, i32) {
    %c0_i32 = arith.constant 0 : i32
    %c0_i32_0 = arith.constant 0 : i32
    return %arg0, %arg1, %c0_i32 : i32, i32, i32
  }
}

</mosaic_0001>

<llo_original>
// kernel: tpu_custom_call.1
$region0: #{tpu_custom_call.1}
  #allocation0 [shape = 'u32[]', space=smem, size = 0x4, offset = 0x4, fixed_abs, tag = 'smem constant byte address 0x4 - core index']
  #allocation1 [shape = 'u32[144,128]{1,0:T(1,128)}', space=vmem, size = 0x12000, scoped, tag = 'internal scratch']
  %s0 = inlined_call_operand.hbm [shape: f32[2,16,256], index: 0, kind: input, shape index: {}]
  %s1 = inlined_call_operand.hbm [shape: f32[2,16,256], index: 1, kind: input, shape index: {}]
  %s2 = inlined_call_operand.hbm [shape: bf16[256,256], index: 2, kind: input, shape index: {}]
  %s3 = inlined_call_operand.vmem [shape: f32[1,256], index: 3, kind: input, shape index: {}]
  %s4 = inlined_call_operand.hbm [shape: bf16[256,512], index: 4, kind: input, shape index: {}]
  %s5 = inlined_call_operand.vmem [shape: f32[1,512], index: 5, kind: input, shape index: {}]
  %s6 = inlined_call_operand.hbm [shape: bf16[256,256], index: 6, kind: input, shape index: {}]
  %s7 = inlined_call_operand.vmem [shape: f32[1,256], index: 7, kind: input, shape index: {}]
  %s8 = inlined_call_operand.hbm [shape: f32[1,256], index: 8, kind: input, shape index: {}]
  %s9 = inlined_call_operand.hbm [shape: f32[1,256], index: 9, kind: input, shape index: {}]
  %s10 = inlined_call_operand.hbm [shape: bf16[256,1024], index: 10, kind: input, shape index: {}]
  %s11 = inlined_call_operand.vmem [shape: f32[1,1024], index: 11, kind: input, shape index: {}]
  %s12 = inlined_call_operand.hbm [shape: bf16[1024,256], index: 12, kind: input, shape index: {}]
  %s13 = inlined_call_operand.vmem [shape: f32[1,256], index: 13, kind: input, shape index: {}]
  %s14 = inlined_call_operand.vmem [shape: f32[1,256], index: 14, kind: input, shape index: {}]
  %s15 = inlined_call_operand.vmem [shape: f32[1,256], index: 15, kind: input, shape index: {}]
  %s16 = inlined_call_operand.hbm [shape: f32[2,16,256], index: 16, kind: output, shape index: {}]
  %s17 = sld [smem:[#allocation0]]
  $region133: #{tpu_custom_call.1} parent=0
    _
  %s19 = ssub.s32 1, %s17
  %s20 = scalar_select 0, %s19, %s17
  $region1: #{tpu_custom_call.1} parent=0
    #allocation2 [shape = 'u8[16384]{0}', space=vmem, size = 0x4000, scoped, tag = 'input window, operand 0']
    #allocation3 [shape = 's32[2]{0}', space=sflag, size = 0x8, scoped, tag = 'scoped memory for tpu_custom_call.1']
    #allocation4 [shape = 's32[2]{0}', space=sflag, size = 0x8, scoped, tag = 'scoped memory for tpu_custom_call.1']
    #allocation5 [shape = 'u8[32768]{0}', space=vmem, size = 0x8000, scoped, tag = 'input window, operand 1']
    #allocation6 [shape = 's32[2]{0}', space=sflag, size = 0x8, scoped, tag = 'scoped memory for tpu_custom_call.1']
    #allocation7 [shape = 'u8[131072]{0}', space=vmem, size = 0x20000, scoped, tag = 'input window, operand 2, single buffered']
    #allocation8 [shape = 'u8[262144]{0}', space=vmem, size = 0x40000, scoped, tag = 'input window, operand 4, single buffered']
    #allocation9 [shape = 's32[1]{0}', space=sflag, size = 0x4, scoped, tag = 'scoped memory for tpu_custom_call.1']
    #allocation10 [shape = 'u8[131072]{0}', space=vmem, size = 0x20000, scoped, tag = 'input window, operand 6, single buffered']
    #allocation11 [shape = 'u8[1024]{0}', space=vmem, size = 0x400, scoped, tag = 'input window, operand 8, single buffered']
    #allocation12 [shape = 's32[1]{0}', space=sflag, size = 0x4, scoped, tag = 'scoped memory for tpu_custom_call.1']
    #allocation13 [shape = 'u8[1024]{0}', space=vmem, size = 0x400, scoped, tag = 'input window, operand 9, single buffered']
    #allocation14 [shape = 'u8[524288]{0}', space=vmem, size = 0x80000, scoped, tag = 'input window, operand 10, single buffered']
    #allocation15 [shape = 's32[1]{0}', space=sflag, size = 0x4, scoped, tag = 'scoped memory for tpu_custom_call.1']
    #allocation16 [shape = 'u8[524288]{0}', space=vmem, size = 0x80000, scoped, tag = 'input window, operand 12, single buffered']
    #allocation17 [shape = 'u8[16384]{0}', space=vmem, size = 0x4000, scoped, tag = 'output window, operand 0']
    %21 = vsyncpa [#allocation3], 0
    %s22 = scalar_lea.sflag [#allocation3], 1
    %23 = vsyncpa %s22, 0
    %24 = vsyncpa [#allocation6], 0
    %s25 = scalar_lea.sflag [#allocation6], 1
    %26 = vsyncpa %s25, 0
    %27 = vsyncpa [#allocation9], 0
    %28 = vsyncpa [#allocation12], 0
    %29 = vsyncpa [#allocation15], 0
    %30 = vsyncpa [#allocation4], 0
    %s31 = scalar_lea.sflag [#allocation4], 1
    %32 = vsyncpa %s31, 0
    loop: start=0, step=1, limit=6
    $region2: #{tpu_custom_call.1} parent=1 // loop_pre_header
      _
    $region3: #{tpu_custom_call.1} parent=1 // loop_header
      %s34 = sphi 0, %s38
      %p35 = scmp.ge.s32.totalorder %s34, 6
      %s41 = sphi 0, %s53
      %s42 = sphi 0, %s49
      %s43 = sphi 0, %s41
      %s44 = sphi 0, %s42
      %s45 = sphi 0, %s43
      %s46 = sphi 0, %s44
      %s58 = sphi 0, %s60
      %s61 = sphi 0, %s58
      %s62 = sphi 0, %s61
      %s78 = sphi 0, %s62
      %s84 = sphi 0, %s86
      %s87 = sphi 0, %s84
      %s88 = sphi 0, %s87
      %s104 = sphi 0, %s88
      %s108 = sphi 0, %s108
      %s110 = sphi 0, %s108
      %s111 = sphi 0, %s110
      %s125 = sphi 0, %s111
      %s129 = sphi 0, %s129
      %s131 = sphi 0, %s129
      %s132 = sphi 0, %s131
      %s146 = sphi 0, %s132
      %s150 = sphi 0, %s150
      %s152 = sphi 0, %s150
      %s153 = sphi 0, %s152
      %s167 = sphi 0, %s153
      %s171 = sphi 0, %s171
      %s173 = sphi 0, %s171
      %s174 = sphi 0, %s173
      %s188 = sphi 0, %s174
      %s192 = sphi 0, %s192
      %s194 = sphi 0, %s192
      %s195 = sphi 0, %s194
      %s209 = sphi 0, %s195
      %s213 = sphi 0, %s213
      %s215 = sphi 0, %s213
      %s216 = sphi 0, %s215
      %s230 = sphi 0, %s216
      %s234 = sphi 0, %s234
      %s236 = sphi 0, %s234
      %s237 = sphi 0, %s236
      %s251 = sphi 0, %s237
      %s255 = sphi 0, %s255
      %s257 = sphi 0, %s255
      %s258 = sphi 0, %s257
      %s272 = sphi 0, %s258
      %s276 = sphi 0, %s276
      %s278 = sphi 0, %s276
      %s279 = sphi 0, %s278
      %s293 = sphi 0, %s279
      %s297 = sphi 0, %s297
      %s299 = sphi 0, %s297
      %s300 = sphi 0, %s299
      %s314 = sphi 0, %s300
      %s318 = sphi 0, %s318
      %s320 = sphi 0, %s318
      %s321 = sphi 0, %s320
      %s335 = sphi 0, %s321
      %s339 = sphi 0, %s339
      %s341 = sphi 0, %s339
      %s342 = sphi 0, %s341
      %s356 = sphi 0, %s342
      %s360 = sphi 0, %s360
      %s362 = sphi 0, %s360
      %s363 = sphi 0, %s362
      %s377 = sphi 0, %s363
      %s381 = sphi 0, %s381
      %s383 = sphi 0, %s381
      %s384 = sphi 0, %s383
      %s398 = sphi 0, %s384
      %s406 = sphi 0, %s408
      %s409 = sphi 0, %s406
      %s410 = sphi 0, %s409
      %s426 = sphi 0, %s410
    $region4: #{tpu_custom_call.1} parent=1 // loop_header_branch
      %37 = sbr.rel (%p35) target = $region8
    $region5: #{tpu_custom_call.1} parent=1 // loop_body
      %s39 = ssub.s32 %s34, 1
      %s40 = ssub.s32 %s34, 2
      %s47 = sadd.s32 1, %s42
      %p48 = scmp.ge.s32.totalorder %s47, 2
      %s49 = scalar_select %p48, 0, %s47
      %s50 = sadd.s32 1, %s41
      %s51 = scalar_select %p48, %s50, %s41
      %p52 = scmp.ge.s32.totalorder %s51, 2
      %s53 = scalar_select %p52, 0, %s51
      %s54 = ssub.s32 %s41, %s53
      %s55 = ssub.s32 %s42, %s49
      %s56 = sor.u32 %s54, %s55
      %p57 = scmp.eq.s32.totalorder %s56, 0
      %s59 = sadd.s32 %s58, 1
      %s60 = scalar_select %p57, %s58, %s59
      %p63 = pneg %p57
      %p64 = scmp.eq.s32.totalorder %s34, 3
      %p65 = por %p63, %p64
      %p66 = scmp.ne.s32.totalorder %s58, %s61
      %p67 = scmp.eq.s32.totalorder %s34, 0
      %p68 = por %p66, %p67
      %p69 = scmp.ne.s32.totalorder %s58, %s61
      %p70 = scmp.eq.s32.totalorder %s39, 3
      %p71 = por %p69, %p70
      %p72 = scmp.ne.s32.totalorder %s61, %s62
      %p73 = scmp.eq.s32.totalorder %s39, 0
      %p74 = por %p72, %p73
      %p75 = scmp.ne.s32.totalorder %s61, %s62
      %p76 = scmp.eq.s32.totalorder %s40, 3
      %p77 = por %p75, %p76
      %p79 = scmp.ne.s32.totalorder %s62, %s78
      %p80 = scmp.eq.s32.totalorder %s40, 0
      %p81 = por %p79, %p80
      %s82 = ssub.s32 %s41, %s53
      %p83 = scmp.eq.s32.totalorder %s82, 0
      %s85 = sadd.s32 %s84, 1
      %s86 = scalar_select %p83, %s84, %s85
      %p89 = pneg %p83
      %p90 = scmp.eq.s32.totalorder %s34, 3
      %p91 = por %p89, %p90
      %p92 = scmp.ne.s32.totalorder %s84, %s87
      %p93 = scmp.eq.s32.totalorder %s34, 0
      %p94 = por %p92, %p93
      %p95 = scmp.ne.s32.totalorder %s84, %s87
      %p96 = scmp.eq.s32.totalorder %s39, 3
      %p97 = por %p95, %p96
      %p98 = scmp.ne.s32.totalorder %s87, %s88
      %p99 = scmp.eq.s32.totalorder %s39, 0
      %p100 = por %p98, %p99
      %p101 = scmp.ne.s32.totalorder %s87, %s88
      %p102 = scmp.eq.s32.totalorder %s40, 3
      %p103 = por %p101, %p102
      %p105 = scmp.ne.s32.totalorder %s88, %s104
      %p106 = scmp.eq.s32.totalorder %s40, 0
      %p107 = por %p105, %p106
      %s109 = sadd.s32 %s108, 1
      %p112 = scmp.eq.s32.totalorder %s34, 3
      %p113 = scmp.ne.s32.totalorder %s108, %s110
      %p114 = scmp.eq.s32.totalorder %s34, 0
      %p115 = por %p113, %p114
      %p116 = scmp.ne.s32.totalorder %s108, %s110
      %p117 = scmp.eq.s32.totalorder %s39, 3
      %p118 = por %p116, %p117
      %p119 = scmp.ne.s32.totalorder %s110, %s111
      %p120 = scmp.eq.s32.totalorder %s39, 0
      %p121 = por %p119, %p120
      %p122 = scmp.ne.s32.totalorder %s110, %s111
      %p123 = scmp.eq.s32.totalorder %s40, 3
      %p124 = por %p122, %p123
      %p126 = scmp.ne.s32.totalorder %s111, %s125
      %p127 = scmp.eq.s32.totalorder %s40, 0
      %p128 = por %p126, %p127
      %s130 = sadd.s32 %s129, 1
      %p133 = scmp.eq.s32.totalorder %s34, 3
      %p134 = scmp.ne.s32.totalorder %s129, %s131
      %p135 = scmp.eq.s32.totalorder %s34, 0
      %p136 = por %p134, %p135
      %p137 = scmp.ne.s32.totalorder %s129, %s131
      %p138 = scmp.eq.s32.totalorder %s39, 3
      %p139 = por %p137, %p138
      %p140 = scmp.ne.s32.totalorder %s131, %s132
      %p141 = scmp.eq.s32.totalorder %s39, 0
      %p142 = por %p140, %p141
      %p143 = scmp.ne.s32.totalorder %s131, %s132
      %p144 = scmp.eq.s32.totalorder %s40, 3
      %p145 = por %p143, %p144
      %p147 = scmp.ne.s32.totalorder %s132, %s146
      %p148 = scmp.eq.s32.totalorder %s40, 0
      %p149 = por %p147, %p148
      %s151 = sadd.s32 %s150, 1
      %p154 = scmp.eq.s32.totalorder %s34, 3
      %p155 = scmp.ne.s32.totalorder %s150, %s152
      %p156 = scmp.eq.s32.totalorder %s34, 0
      %p157 = por %p155, %p156
      %p158 = scmp.ne.s32.totalorder %s150, %s152
      %p159 = scmp.eq.s32.totalorder %s39, 3
      %p160 = por %p158, %p159
      %p161 = scmp.ne.s32.totalorder %s152, %s153
      %p162 = scmp.eq.s32.totalorder %s39, 0
      %p163 = por %p161, %p162
      %p164 = scmp.ne.s32.totalorder %s152, %s153
      %p165 = scmp.eq.s32.totalorder %s40, 3
      %p166 = por %p164, %p165
      %p168 = scmp.ne.s32.totalorder %s153, %s167
      %p169 = scmp.eq.s32.totalorder %s40, 0
      %p170 = por %p168, %p169
      %s172 = sadd.s32 %s171, 1
      %p175 = scmp.eq.s32.totalorder %s34, 3
      %p176 = scmp.ne.s32.totalorder %s171, %s173
      %p177 = scmp.eq.s32.totalorder %s34, 0
      %p178 = por %p176, %p177
      %p179 = scmp.ne.s32.totalorder %s171, %s173
      %p180 = scmp.eq.s32.totalorder %s39, 3
      %p181 = por %p179, %p180
      %p182 = scmp.ne.s32.totalorder %s173, %s174
      %p183 = scmp.eq.s32.totalorder %s39, 0
      %p184 = por %p182, %p183
      %p185 = scmp.ne.s32.totalorder %s173, %s174
      %p186 = scmp.eq.s32.totalorder %s40, 3
      %p187 = por %p185, %p186
      %p189 = scmp.ne.s32.totalorder %s174, %s188
      %p190 = scmp.eq.s32.totalorder %s40, 0
      %p191 = por %p189, %p190
      %s193 = sadd.s32 %s192, 1
      %p196 = scmp.eq.s32.totalorder %s34, 3
      %p197 = scmp.ne.s32.totalorder %s192, %s194
      %p198 = scmp.eq.s32.totalorder %s34, 0
      %p199 = por %p197, %p198
      %p200 = scmp.ne.s32.totalorder %s192, %s194
      %p201 = scmp.eq.s32.totalorder %s39, 3
      %p202 = por %p200, %p201
      %p203 = scmp.ne.s32.totalorder %s194, %s195
      %p204 = scmp.eq.s32.totalorder %s39, 0
      %p205 = por %p203, %p204
      %p206 = scmp.ne.s32.totalorder %s194, %s195
      %p207 = scmp.eq.s32.totalorder %s40, 3
      %p208 = por %p206, %p207
      %p210 = scmp.ne.s32.totalorder %s195, %s209
      %p211 = scmp.eq.s32.totalorder %s40, 0
      %p212 = por %p210, %p211
      %s214 = sadd.s32 %s213, 1
      %p217 = scmp.eq.s32.totalorder %s34, 3
      %p218 = scmp.ne.s32.totalorder %s213, %s215
      %p219 = scmp.eq.s32.totalorder %s34, 0
      %p220 = por %p218, %p219
      %p221 = scmp.ne.s32.totalorder %s213, %s215
      %p222 = scmp.eq.s32.totalorder %s39, 3
      %p223 = por %p221, %p222
      %p224 = scmp.ne.s32.totalorder %s215, %s216
      %p225 = scmp.eq.s32.totalorder %s39, 0
      %p226 = por %p224, %p225
      %p227 = scmp.ne.s32.totalorder %s215, %s216
      %p228 = scmp.eq.s32.totalorder %s40, 3
      %p229 = por %p227, %p228
      %p231 = scmp.ne.s32.totalorder %s216, %s230
      %p232 = scmp.eq.s32.totalorder %s40, 0
      %p233 = por %p231, %p232
      %s235 = sadd.s32 %s234, 1
      %p238 = scmp.eq.s32.totalorder %s34, 3
      %p239 = scmp.ne.s32.totalorder %s234, %s236
      %p240 = scmp.eq.s32.totalorder %s34, 0
      %p241 = por %p239, %p240
      %p242 = scmp.ne.s32.totalorder %s234, %s236
      %p243 = scmp.eq.s32.totalorder %s39, 3
      %p244 = por %p242, %p243
      %p245 = scmp.ne.s32.totalorder %s236, %s237
      %p246 = scmp.eq.s32.totalorder %s39, 0
      %p247 = por %p245, %p246
      %p248 = scmp.ne.s32.totalorder %s236, %s237
      %p249 = scmp.eq.s32.totalorder %s40, 3
      %p250 = por %p248, %p249
      %p252 = scmp.ne.s32.totalorder %s237, %s251
      %p253 = scmp.eq.s32.totalorder %s40, 0
      %p254 = por %p252, %p253
      %s256 = sadd.s32 %s255, 1
      %p259 = scmp.eq.s32.totalorder %s34, 3
      %p260 = scmp.ne.s32.totalorder %s255, %s257
      %p261 = scmp.eq.s32.totalorder %s34, 0
      %p262 = por %p260, %p261
      %p263 = scmp.ne.s32.totalorder %s255, %s257
      %p264 = scmp.eq.s32.totalorder %s39, 3
      %p265 = por %p263, %p264
      %p266 = scmp.ne.s32.totalorder %s257, %s258
      %p267 = scmp.eq.s32.totalorder %s39, 0
      %p268 = por %p266, %p267
      %p269 = scmp.ne.s32.totalorder %s257, %s258
      %p270 = scmp.eq.s32.totalorder %s40, 3
      %p271 = por %p269, %p270
      %p273 = scmp.ne.s32.totalorder %s258, %s272
      %p274 = scmp.eq.s32.totalorder %s40, 0
      %p275 = por %p273, %p274
      %s277 = sadd.s32 %s276, 1
      %p280 = scmp.eq.s32.totalorder %s34, 3
      %p281 = scmp.ne.s32.totalorder %s276, %s278
      %p282 = scmp.eq.s32.totalorder %s34, 0
      %p283 = por %p281, %p282
      %p284 = scmp.ne.s32.totalorder %s276, %s278
      %p285 = scmp.eq.s32.totalorder %s39, 3
      %p286 = por %p284, %p285
      %p287 = scmp.ne.s32.totalorder %s278, %s279
      %p288 = scmp.eq.s32.totalorder %s39, 0
      %p289 = por %p287, %p288
      %p290 = scmp.ne.s32.totalorder %s278, %s279
      %p291 = scmp.eq.s32.totalorder %s40, 3
      %p292 = por %p290, %p291
      %p294 = scmp.ne.s32.totalorder %s279, %s293
      %p295 = scmp.eq.s32.totalorder %s40, 0
      %p296 = por %p294, %p295
      %s298 = sadd.s32 %s297, 1
      %p301 = scmp.eq.s32.totalorder %s34, 3
      %p302 = scmp.ne.s32.totalorder %s297, %s299
      %p303 = scmp.eq.s32.totalorder %s34, 0
      %p304 = por %p302, %p303
      %p305 = scmp.ne.s32.totalorder %s297, %s299
      %p306 = scmp.eq.s32.totalorder %s39, 3
      %p307 = por %p305, %p306
      %p308 = scmp.ne.s32.totalorder %s299, %s300
      %p309 = scmp.eq.s32.totalorder %s39, 0
      %p310 = por %p308, %p309
      %p311 = scmp.ne.s32.totalorder %s299, %s300
      %p312 = scmp.eq.s32.totalorder %s40, 3
      %p313 = por %p311, %p312
      %p315 = scmp.ne.s32.totalorder %s300, %s314
      %p316 = scmp.eq.s32.totalorder %s40, 0
      %p317 = por %p315, %p316
      %s319 = sadd.s32 %s318, 1
      %p322 = scmp.eq.s32.totalorder %s34, 3
      %p323 = scmp.ne.s32.totalorder %s318, %s320
      %p324 = scmp.eq.s32.totalorder %s34, 0
      %p325 = por %p323, %p324
      %p326 = scmp.ne.s32.totalorder %s318, %s320
      %p327 = scmp.eq.s32.totalorder %s39, 3
      %p328 = por %p326, %p327
      %p329 = scmp.ne.s32.totalorder %s320, %s321
      %p330 = scmp.eq.s32.totalorder %s39, 0
      %p331 = por %p329, %p330
      %p332 = scmp.ne.s32.totalorder %s320, %s321
      %p333 = scmp.eq.s32.totalorder %s40, 3
      %p334 = por %p332, %p333
      %p336 = scmp.ne.s32.totalorder %s321, %s335
      %p337 = scmp.eq.s32.totalorder %s40, 0
      %p338 = por %p336, %p337
      %s340 = sadd.s32 %s339, 1
      %p343 = scmp.eq.s32.totalorder %s34, 3
      %p344 = scmp.ne.s32.totalorder %s339, %s341
      %p345 = scmp.eq.s32.totalorder %s34, 0
      %p346 = por %p344, %p345
      %p347 = scmp.ne.s32.totalorder %s339, %s341
      %p348 = scmp.eq.s32.totalorder %s39, 3
      %p349 = por %p347, %p348
      %p350 = scmp.ne.s32.totalorder %s341, %s342
      %p351 = scmp.eq.s32.totalorder %s39, 0
      %p352 = por %p350, %p351
      %p353 = scmp.ne.s32.totalorder %s341, %s342
      %p354 = scmp.eq.s32.totalorder %s40, 3
      %p355 = por %p353, %p354
      %p357 = scmp.ne.s32.totalorder %s342, %s356
      %p358 = scmp.eq.s32.totalorder %s40, 0
      %p359 = por %p357, %p358
      %s361 = sadd.s32 %s360, 1
      %p364 = scmp.eq.s32.totalorder %s34, 3
      %p365 = scmp.ne.s32.totalorder %s360, %s362
      %p366 = scmp.eq.s32.totalorder %s34, 0
      %p367 = por %p365, %p366
      %p368 = scmp.ne.s32.totalorder %s360, %s362
      %p369 = scmp.eq.s32.totalorder %s39, 3
      %p370 = por %p368, %p369
      %p371 = scmp.ne.s32.totalorder %s362, %s363
      %p372 = scmp.eq.s32.totalorder %s39, 0
      %p373 = por %p371, %p372
      %p374 = scmp.ne.s32.totalorder %s362, %s363
      %p375 = scmp.eq.s32.totalorder %s40, 3
      %p376 = por %p374, %p375
      %p378 = scmp.ne.s32.totalorder %s363, %s377
      %p379 = scmp.eq.s32.totalorder %s40, 0
      %p380 = por %p378, %p379
      %s382 = sadd.s32 %s381, 1
      %p385 = scmp.eq.s32.totalorder %s34, 3
      %p386 = scmp.ne.s32.totalorder %s381, %s383
      %p387 = scmp.eq.s32.totalorder %s34, 0
      %p388 = por %p386, %p387
      %p389 = scmp.ne.s32.totalorder %s381, %s383
      %p390 = scmp.eq.s32.totalorder %s39, 3
      %p391 = por %p389, %p390
      %p392 = scmp.ne.s32.totalorder %s383, %s384
      %p393 = scmp.eq.s32.totalorder %s39, 0
      %p394 = por %p392, %p393
      %p395 = scmp.ne.s32.totalorder %s383, %s384
      %p396 = scmp.eq.s32.totalorder %s40, 3
      %p397 = por %p395, %p396
      %p399 = scmp.ne.s32.totalorder %s384, %s398
      %p400 = scmp.eq.s32.totalorder %s40, 0
      %p401 = por %p399, %p400
      %s402 = ssub.s32 %s41, %s53
      %s403 = ssub.s32 %s42, %s49
      %s404 = sor.u32 %s402, %s403
      %p405 = scmp.eq.s32.totalorder %s404, 0
      %s407 = sadd.s32 %s406, 1
      %s408 = scalar_select %p405, %s406, %s407
      %p411 = pneg %p405
      %p412 = scmp.eq.s32.totalorder %s34, 3
      %p413 = por %p411, %p412
      %p414 = scmp.ne.s32.totalorder %s406, %s409
      %p415 = scmp.eq.s32.totalorder %s34, 0
      %p416 = por %p414, %p415
      %p417 = scmp.ne.s32.totalorder %s406, %s409
      %p418 = scmp.eq.s32.totalorder %s39, 3
      %p419 = por %p417, %p418
      %p420 = scmp.ne.s32.totalorder %s409, %s410
      %p421 = scmp.eq.s32.totalorder %s39, 0
      %p422 = por %p420, %p421
      %p423 = scmp.ne.s32.totalorder %s409, %s410
      %p424 = scmp.eq.s32.totalorder %s40, 3
      %p425 = por %p423, %p424
      %p427 = scmp.ne.s32.totalorder %s410, %s426
      %p428 = scmp.eq.s32.totalorder %s40, 0
      %p429 = por %p427, %p428
      %p430 = scmp.le.s32.totalorder 1, %s34
      %p431 = scmp.lt.s32.totalorder %s34, 5
      %p432 = pnand %p430, %p431
      %p433 = pneg %p432
      // Predicated region
      $region9: #{tpu_custom_call.1} parent=5 // pred_check
        _
      $region10: #{tpu_custom_call.1} parent=5 // pred_check_branch
        %435 = sbr.rel (%p432) target = $region12
      $region11: #{tpu_custom_call.1} parent=5 // pred_region
        %s436 = ssub.s32 %s34, 1
        // Predicated region
        $region13: #{tpu_custom_call.1} parent=11 // pred_check
          %p437 = pneg %p121
        $region14: #{tpu_custom_call.1} parent=11 // pred_check_branch
          %439 = sbr.rel (%p437) target = $region16
        $region15: #{tpu_custom_call.1} parent=11 // pred_region
          %s441 = ssub.s32 4096, 4096
          %442 = vsyncadd [#allocation6], %s441
          %s443 = sshll.u32 [#allocation7], 4
          %s444 = int_to_ptr.vmem [resolvable:$true] %s443
          %449 = dma.hbm_to_vmem [thread:$0]  %s2, 4096, %s444, [#allocation6], 128, 128, 8
        $region16: #{tpu_custom_call.1} parent=11 // pred_fallthru
          _
        // Predicated region
        $region17: #{tpu_custom_call.1} parent=11 // pred_check
          %p450 = pneg %p142
        $region18: #{tpu_custom_call.1} parent=11 // pred_check_branch
          %452 = sbr.rel (%p450) target = $region20
        $region19: #{tpu_custom_call.1} parent=11 // pred_region
          _
        $region20: #{tpu_custom_call.1} parent=11 // pred_fallthru
          _
        // Predicated region
        $region21: #{tpu_custom_call.1} parent=11 // pred_check
          %p453 = pneg %p163
        $region22: #{tpu_custom_call.1} parent=11 // pred_check_branch
          %455 = sbr.rel (%p453) target = $region24
        $region23: #{tpu_custom_call.1} parent=11 // pred_region
          %s457 = ssub.s32 8192, 8192
          %458 = vsyncadd [#allocation9], %s457
          %s459 = sshll.u32 [#allocation8], 4
          %s460 = int_to_ptr.vmem [resolvable:$true] %s459
          %465 = dma.hbm_to_vmem [thread:$0]  %s4, 8192, %s460, [#allocation9], 256, 256, 16
        $region24: #{tpu_custom_call.1} parent=11 // pred_fallthru
          _
        // Predicated region
        $region25: #{tpu_custom_call.1} parent=11 // pred_check
          %p466 = pneg %p184
        $region26: #{tpu_custom_call.1} parent=11 // pred_check_branch
          %468 = sbr.rel (%p466) target = $region28
        $region27: #{tpu_custom_call.1} parent=11 // pred_region
          _
        $region28: #{tpu_custom_call.1} parent=11 // pred_fallthru
          _
        // Predicated region
        $region29: #{tpu_custom_call.1} parent=11 // pred_check
          %p469 = pneg %p205
        $region30: #{tpu_custom_call.1} parent=11 // pred_check_branch
          %471 = sbr.rel (%p469) target = $region32
        $region31: #{tpu_custom_call.1} parent=11 // pred_region
          %s473 = ssub.s32 4096, 4096
          %474 = vsyncadd [#allocation9], %s473
          %s475 = sshll.u32 [#allocation10], 4
          %s476 = int_to_ptr.vmem [resolvable:$true] %s475
          %481 = dma.hbm_to_vmem [thread:$0]  %s6, 4096, %s476, [#allocation9], 128, 128, 8
        $region32: #{tpu_custom_call.1} parent=11 // pred_fallthru
          _
        // Predicated region
        $region33: #{tpu_custom_call.1} parent=11 // pred_check
          %p482 = pneg %p226
        $region34: #{tpu_custom_call.1} parent=11 // pred_check_branch
          %484 = sbr.rel (%p482) target = $region36
        $region35: #{tpu_custom_call.1} parent=11 // pred_region
          _
        $region36: #{tpu_custom_call.1} parent=11 // pred_fallthru
          _
        // Predicated region
        $region37: #{tpu_custom_call.1} parent=11 // pred_check
          %p485 = pneg %p247
        $region38: #{tpu_custom_call.1} parent=11 // pred_check_branch
          %487 = sbr.rel (%p485) target = $region40
        $region39: #{tpu_custom_call.1} parent=11 // pred_region
          %s489 = ssub.s32 32, 32
          %490 = vsyncadd [#allocation12], %s489
          %s492 = sshll.u32 [#allocation11], 4
          %s493 = int_to_ptr.vmem [resolvable:$true] %s492
          %495 = dma.hbm_to_vmem [thread:$0]  %s8, 32, %s493, [#allocation12]
        $region40: #{tpu_custom_call.1} parent=11 // pred_fallthru
          _
        // Predicated region
        $region41: #{tpu_custom_call.1} parent=11 // pred_check
          %p496 = pneg %p268
        $region42: #{tpu_custom_call.1} parent=11 // pred_check_branch
          %498 = sbr.rel (%p496) target = $region44
        $region43: #{tpu_custom_call.1} parent=11 // pred_region
          %s500 = ssub.s32 32, 32
          %501 = vsyncadd [#allocation12], %s500
          %s503 = sshll.u32 [#allocation13], 4
          %s504 = int_to_ptr.vmem [resolvable:$true] %s503
          %506 = dma.hbm_to_vmem [thread:$0]  %s9, 32, %s504, [#allocation12]
        $region44: #{tpu_custom_call.1} parent=11 // pred_fallthru
          _
        // Predicated region
        $region45: #{tpu_custom_call.1} parent=11 // pred_check
          %p507 = pneg %p289
        $region46: #{tpu_custom_call.1} parent=11 // pred_check_branch
          %509 = sbr.rel (%p507) target = $region48
        $region47: #{tpu_custom_call.1} parent=11 // pred_region
          %s511 = ssub.s32 16384, 16384
          %512 = vsyncadd [#allocation15], %s511
          %s513 = sshll.u32 [#allocation14], 4
          %s514 = int_to_ptr.vmem [resolvable:$true] %s513
          %519 = dma.hbm_to_vmem [thread:$0]  %s10, 16384, %s514, [#allocation15], 512, 512, 32
        $region48: #{tpu_custom_call.1} parent=11 // pred_fallthru
          _
        // Predicated region
        $region49: #{tpu_custom_call.1} parent=11 // pred_check
          %p520 = pneg %p310
        $region50: #{tpu_custom_call.1} parent=11 // pred_check_branch
          %522 = sbr.rel (%p520) target = $region52
        $region51: #{tpu_custom_call.1} parent=11 // pred_region
          _
        $region52: #{tpu_custom_call.1} parent=11 // pred_fallthru
          _
        // Predicated region
        $region53: #{tpu_custom_call.1} parent=11 // pred_check
          %p523 = pneg %p331
        $region54: #{tpu_custom_call.1} parent=11 // pred_check_branch
          %525 = sbr.rel (%p523) target = $region56
        $region55: #{tpu_custom_call.1} parent=11 // pred_region
          %s527 = ssub.s32 16384, 16384
          %528 = vsyncadd [#allocation15], %s527
          %s529 = sshll.u32 [#allocation16], 4
          %s530 = int_to_ptr.vmem [resolvable:$true] %s529
          %535 = dma.hbm_to_vmem [thread:$0]  %s12, 16384, %s530, [#allocation15], 128, 128, 8
        $region56: #{tpu_custom_call.1} parent=11 // pred_fallthru
          _
        // Predicated region
        $region57: #{tpu_custom_call.1} parent=11 // pred_check
          %p536 = pneg %p352
        $region58: #{tpu_custom_call.1} parent=11 // pred_check_branch
          %538 = sbr.rel (%p536) target = $region60
        $region59: #{tpu_custom_call.1} parent=11 // pred_region
          _
        $region60: #{tpu_custom_call.1} parent=11 // pred_fallthru
          _
        // Predicated region
        $region61: #{tpu_custom_call.1} parent=11 // pred_check
          %p539 = pneg %p373
        $region62: #{tpu_custom_call.1} parent=11 // pred_check_branch
          %541 = sbr.rel (%p539) target = $region64
        $region63: #{tpu_custom_call.1} parent=11 // pred_region
          _
        $region64: #{tpu_custom_call.1} parent=11 // pred_fallthru
          _
        // Predicated region
        $region65: #{tpu_custom_call.1} parent=11 // pred_check
          %p542 = pneg %p394
        $region66: #{tpu_custom_call.1} parent=11 // pred_check_branch
          %544 = sbr.rel (%p542) target = $region68
        $region67: #{tpu_custom_call.1} parent=11 // pred_region
          _
        $region68: #{tpu_custom_call.1} parent=11 // pred_fallthru
          _
      $region12: #{tpu_custom_call.1} parent=5 // pred_fallthru
        _
      %p545 = scmp.lt.s32.totalorder %s34, 4
      // Predicated region
      $region69: #{tpu_custom_call.1} parent=5 // pred_check
        %p546 = pneg %p545
      $region70: #{tpu_custom_call.1} parent=5 // pred_check_branch
        %548 = sbr.rel (%p546) target = $region72
      $region71: #{tpu_custom_call.1} parent=5 // pred_region
        // Predicated region
        $region73: #{tpu_custom_call.1} parent=71 // pred_check
          %p549 = pneg %p68
        $region74: #{tpu_custom_call.1} parent=71 // pred_check_branch
          %551 = sbr.rel (%p549) target = $region76
        $region75: #{tpu_custom_call.1} parent=71 // pred_region
          %s552 = sand.u32 %s58, 1
          %s553 = scalar_lea.sflag [#allocation3], %s552
          %s554 = sand.u32 %s58, 1
          %s555 = smul.addr %s554, 16
          %s556 = scalar_lea.vmem [#allocation2], %s555
          %s558 = ssub.s32 256, 256
          %559 = vsyncadd %s553, %s558
          %s560 = smul.addr %s42, 2
          %s561 = smul.addr %s41, 4
          %s562 = sadd.s32 %s560, %s561
          %s563 = smul.addr %s562, 128
          %s564 = scalar_lea.hbm %s0, %s563
          %s566 = sshll.u32 %s556, 4
          %s567 = int_to_ptr.vmem [resolvable:$true] %s566
          %569 = dma.hbm_to_vmem [thread:$0]  %s564, 256, %s567, %s553
        $region76: #{tpu_custom_call.1} parent=71 // pred_fallthru
          _
        // Predicated region
        $region77: #{tpu_custom_call.1} parent=71 // pred_check
          %p570 = pneg %p94
        $region78: #{tpu_custom_call.1} parent=71 // pred_check_branch
          %572 = sbr.rel (%p570) target = $region80
        $region79: #{tpu_custom_call.1} parent=71 // pred_region
          %s573 = sand.u32 %s34, 1
          %s574 = scalar_lea.sflag [#allocation6], %s573
          %s575 = sand.u32 %s84, 1
          %s576 = smul.addr %s575, 32
          %s577 = scalar_lea.vmem [#allocation5], %s576
          %s579 = ssub.s32 512, 512
          %580 = vsyncadd %s574, %s579
          %s581 = smul.addr %s41, 4
          %s582 = smul.addr %s581, 128
          %s583 = scalar_lea.hbm %s1, %s582
          %s584 = sshll.u32 %s577, 4
          %s585 = int_to_ptr.vmem [resolvable:$true] %s584
          %590 = dma.hbm_to_vmem [thread:$0]  %s583, 512, %s585, %s574, 256, 256, 16
        $region80: #{tpu_custom_call.1} parent=71 // pred_fallthru
          _
      $region72: #{tpu_custom_call.1} parent=5 // pred_fallthru
        _
      %p591 = scmp.le.s32.totalorder 1, %s34
      %p592 = scmp.lt.s32.totalorder %s34, 5
      %p593 = pnand %p591, %p592
      %p594 = pneg %p593
      // Predicated region
      $region81: #{tpu_custom_call.1} parent=5 // pred_check
        _
      $region82: #{tpu_custom_call.1} parent=5 // pred_check_branch
        %596 = sbr.rel (%p593) target = $region84
      $region83: #{tpu_custom_call.1} parent=5 // pred_region
        %s597 = ssub.s32 %s34, 1
        %s598 = sand.u32 %s61, 1
        %s599 = scalar_lea.sflag [#allocation3], %s598
        %s600 = sand.u32 %s61, 1
        %s601 = smul.addr %s600, 16
        %s602 = scalar_lea.vmem [#allocation2], %s601
        // Predicated region
        $region85: #{tpu_custom_call.1} parent=83 // pred_check
          %p603 = pneg %p74
        $region86: #{tpu_custom_call.1} parent=83 // pred_check_branch
          %605 = sbr.rel (%p603) target = $region88
        $region87: #{tpu_custom_call.1} parent=83 // pred_region
          %606 = dma.done %s599, 256
        $region88: #{tpu_custom_call.1} parent=83 // pred_fallthru
          _
        %s607 = sand.u32 %s39, 1
        %s608 = scalar_lea.sflag [#allocation6], %s607
        %s609 = sand.u32 %s87, 1
        %s610 = smul.addr %s609, 32
        %s611 = scalar_lea.vmem [#allocation5], %s610
        // Predicated region
        $region89: #{tpu_custom_call.1} parent=83 // pred_check
          %p612 = pneg %p100
        $region90: #{tpu_custom_call.1} parent=83 // pred_check_branch
          %614 = sbr.rel (%p612) target = $region92
        $region91: #{tpu_custom_call.1} parent=83 // pred_region
          %615 = dma.done %s608, 512
        $region92: #{tpu_custom_call.1} parent=83 // pred_fallthru
          _
        // Predicated region
        $region93: #{tpu_custom_call.1} parent=83 // pred_check
          %p616 = pneg %p121
        $region94: #{tpu_custom_call.1} parent=83 // pred_check_branch
          %618 = sbr.rel (%p616) target = $region96
        $region95: #{tpu_custom_call.1} parent=83 // pred_region
          %619 = dma.done [#allocation6], 4096
        $region96: #{tpu_custom_call.1} parent=83 // pred_fallthru
          _
        // Predicated region
        $region97: #{tpu_custom_call.1} parent=83 // pred_check
          %p620 = pneg %p163
        $region98: #{tpu_custom_call.1} parent=83 // pred_check_branch
          %622 = sbr.rel (%p620) target = $region100
        $region99: #{tpu_custom_call.1} parent=83 // pred_region
          %623 = dma.done [#allocation9], 8192
        $region100: #{tpu_custom_call.1} parent=83 // pred_fallthru
          _
        // Predicated region
        $region101: #{tpu_custom_call.1} parent=83 // pred_check
          %p624 = pneg %p205
        $region102: #{tpu_custom_call.1} parent=83 // pred_check_branch
          %626 = sbr.rel (%p624) target = $region104
        $region103: #{tpu_custom_call.1} parent=83 // pred_region
          %627 = dma.done [#allocation9], 4096
        $region104: #{tpu_custom_call.1} parent=83 // pred_fallthru
          _
        // Predicated region
        $region105: #{tpu_custom_call.1} parent=83 // pred_check
          %p628 = pneg %p247
        $region106: #{tpu_custom_call.1} parent=83 // pred_check_branch
          %630 = sbr.rel (%p628) target = $region108
        $region107: #{tpu_custom_call.1} parent=83 // pred_region
          %631 = dma.done [#allocation12], 32
        $region108: #{tpu_custom_call.1} parent=83 // pred_fallthru
          _
        // Predicated region
        $region109: #{tpu_custom_call.1} parent=83 // pred_check
          %p632 = pneg %p268
        $region110: #{tpu_custom_call.1} parent=83 // pred_check_branch
          %634 = sbr.rel (%p632) target = $region112
        $region111: #{tpu_custom_call.1} parent=83 // pred_region
          %635 = dma.done [#allocation12], 32
        $region112: #{tpu_custom_call.1} parent=83 // pred_fallthru
          _
        // Predicated region
        $region113: #{tpu_custom_call.1} parent=83 // pred_check
          %p636 = pneg %p289
        $region114: #{tpu_custom_call.1} parent=83 // pred_check_branch
          %638 = sbr.rel (%p636) target = $region116
        $region115: #{tpu_custom_call.1} parent=83 // pred_region
          %639 = dma.done [#allocation15], 16384
        $region116: #{tpu_custom_call.1} parent=83 // pred_fallthru
          _
        // Predicated region
        $region117: #{tpu_custom_call.1} parent=83 // pred_check
          %p640 = pneg %p331
        $region118: #{tpu_custom_call.1} parent=83 // pred_check_branch
          %642 = sbr.rel (%p640) target = $region120
        $region119: #{tpu_custom_call.1} parent=83 // pred_region
          %643 = dma.done [#allocation15], 16384
        $region120: #{tpu_custom_call.1} parent=83 // pred_fallthru
          _
        %s644 = sand.u32 %s61, 1
        %s645 = scalar_lea.sflag [#allocation3], %s644
        %s646 = sand.u32 %s61, 1
        %s647 = smul.addr %s646, 16
        %s648 = scalar_lea.vmem [#allocation2], %s647
        %p649 = pneg %p74
        %p650 = pneg %p71
        %s651 = sand.u32 %s39, 1
        %s652 = scalar_lea.sflag [#allocation6], %s651
        %s653 = sand.u32 %s87, 1
        %s654 = smul.addr %s653, 32
        %s655 = scalar_lea.vmem [#allocation5], %s654
        %p656 = pneg %p100
        %p657 = pneg %p97
        %p658 = pneg %p121
        %p659 = pneg %p118
        %p660 = pneg %p142
        %p661 = pneg %p139
        %p662 = pneg %p163
        %p663 = pneg %p160
        %p664 = pneg %p184
        %p665 = pneg %p181
        %p666 = pneg %p205
        %p667 = pneg %p202
        %p668 = pneg %p226
        %p669 = pneg %p223
        %p670 = pneg %p247
        %p671 = pneg %p244
        %p672 = pneg %p268
        %p673 = pneg %p265
        %p674 = pneg %p289
        %p675 = pneg %p286
        %p676 = pneg %p310
        %p677 = pneg %p307
        %p678 = pneg %p331
        %p679 = pneg %p328
        %p680 = pneg %p352
        %p681 = pneg %p349
        %p682 = pneg %p373
        %p683 = pneg %p370
        %p684 = pneg %p394
        %p685 = pneg %p391
        %p686 = pneg %p422
        %p687 = pneg %p419
        %s688 = sand.u32 %s409, 1
        %s689 = scalar_lea.sflag [#allocation4], %s688
        %s690 = sand.u32 %s409, 1
        %s691 = smul.addr %s690, 16
        %s692 = scalar_lea.vmem [#allocation17], %s691
        %v694 = vld [vmem:[%s602] sm:$0xff]
        %v695 = vld [vmem:[%s602 + $0x8] sm:$0xff]
        %v696 = vld [vmem:[%s611] sm:$0xff]
        %v697 = vld [vmem:[%s611 + $0x8] sm:$0xff]
        %v698 = vld [vmem:[%s611 + $0x10] sm:$0xff]
        %v699 = vld [vmem:[%s611 + $0x18] sm:$0xff]
        %v700 = vpack.c.bf16 %v694, %v694
        %v701 = vpack.c.bf16 %v695, %v695
        %v702 = vpack.c.bf16 %v698, %v696
        %v703 = vpack.c.bf16 %v699, %v697
        %v704 = vld [vmem:[#allocation7] sm:$0xff]
        %v705 = vld [vmem:[#allocation7 + $0x8] sm:$0xff]
        %v706 = vld [vmem:[#allocation7 + $0x10] sm:$0xff]
        %v707 = vld [vmem:[#allocation7 + $0x18] sm:$0xff]
        %v708 = vld [vmem:[#allocation7 + $0x20] sm:$0xff]
        %v709 = vld [vmem:[#allocation7 + $0x28] sm:$0xff]
        %v710 = vld [vmem:[#allocation7 + $0x30] sm:$0xff]
        %v711 = vld [vmem:[#allocation7 + $0x38] sm:$0xff]
        %v712 = vld [vmem:[#allocation7 + $0x40] sm:$0xff]
        %v713 = vld [vmem:[#allocation7 + $0x48] sm:$0xff]
        %v714 = vld [vmem:[#allocation7 + $0x50] sm:$0xff]
        %v715 = vld [vmem:[#allocation7 + $0x58] sm:$0xff]
        %v716 = vld [vmem:[#allocation7 + $0x60] sm:$0xff]
        %v717 = vld [vmem:[#allocation7 + $0x68] sm:$0xff]
        %v718 = vld [vmem:[#allocation7 + $0x70] sm:$0xff]
        %v719 = vld [vmem:[#allocation7 + $0x78] sm:$0xff]
        %v720 = vld [vmem:[#allocation7 + $0x80] sm:$0xff]
        %v721 = vld [vmem:[#allocation7 + $0x88] sm:$0xff]
        %v722 = vld [vmem:[#allocation7 + $0x90] sm:$0xff]
        %v723 = vld [vmem:[#allocation7 + $0x98] sm:$0xff]
        %v724 = vld [vmem:[#allocation7 + $0xa0] sm:$0xff]
        %v725 = vld [vmem:[#allocation7 + $0xa8] sm:$0xff]
        %v726 = vld [vmem:[#allocation7 + $0xb0] sm:$0xff]
        %v727 = vld [vmem:[#allocation7 + $0xb8] sm:$0xff]
        %v728 = vld [vmem:[#allocation7 + $0xc0] sm:$0xff]
        %v729 = vld [vmem:[#allocation7 + $0xc8] sm:$0xff]
        %v730 = vld [vmem:[#allocation7 + $0xd0] sm:$0xff]
        %v731 = vld [vmem:[#allocation7 + $0xd8] sm:$0xff]
        %v732 = vld [vmem:[#allocation7 + $0xe0] sm:$0xff]
        %v733 = vld [vmem:[#allocation7 + $0xe8] sm:$0xff]
        %v734 = vld [vmem:[#allocation7 + $0xf0] sm:$0xff]
        %v735 = vld [vmem:[#allocation7 + $0xf8] sm:$0xff]
        %v736 = vld [vmem:[%s3] sm:$0x3]
        %v738 = vlaneseq
        %v739 = vshrl.u32 %v738, 7
        %v740 = vsub.s32 0, %v739
        %v741 = vrot.slane %v736, %v740
        %v742 = vlaneseq
        %v743 = vshrl.u32 %v742, 7
        %v744 = vsub.s32 1, %v743
        %v745 = vrot.slane %v736, %v744
        %v780 = vunpack.c.l.b16 %v704
        %v781 = vunpack.c.h.b16 %v704
        %v782 = vunpack.c.l.b16 %v705
        %v783 = vunpack.c.h.b16 %v705
        %v784 = vunpack.c.l.b16 %v706
        %v785 = vunpack.c.h.b16 %v706
        %v786 = vunpack.c.l.b16 %v707
        %v787 = vunpack.c.h.b16 %v707
        %v788 = vunpack.c.l.b16 %v708
        %v789 = vunpack.c.h.b16 %v708
        %v790 = vunpack.c.l.b16 %v709
        %v791 = vunpack.c.h.b16 %v709
        %v792 = vunpack.c.l.b16 %v710
        %v793 = vunpack.c.h.b16 %v710
        %v794 = vunpack.c.l.b16 %v711
        %v795 = vunpack.c.h.b16 %v711
        %v796 = vunpack.c.l.b16 %v712
        %v797 = vunpack.c.h.b16 %v712
        %v798 = vunpack.c.l.b16 %v713
        %v799 = vunpack.c.h.b16 %v713
        %v800 = vunpack.c.l.b16 %v714
        %v801 = vunpack.c.h.b16 %v714
        %v802 = vunpack.c.l.b16 %v715
        %v803 = vunpack.c.h.b16 %v715
        %v804 = vunpack.c.l.b16 %v716
        %v805 = vunpack.c.h.b16 %v716
        %v806 = vunpack.c.l.b16 %v717
        %v807 = vunpack.c.h.b16 %v717
        %v808 = vunpack.c.l.b16 %v718
        %v809 = vunpack.c.h.b16 %v718
        %v810 = vunpack.c.l.b16 %v719
        %v811 = vunpack.c.h.b16 %v719
        %v812 = vunpack.c.l.b16 %v720
        %v813 = vunpack.c.h.b16 %v720
        %v814 = vunpack.c.l.b16 %v721
        %v815 = vunpack.c.h.b16 %v721
        %v816 = vunpack.c.l.b16 %v722
        %v817 = vunpack.c.h.b16 %v722
        %v818 = vunpack.c.l.b16 %v723
        %v819 = vunpack.c.h.b16 %v723
        %v820 = vunpack.c.l.b16 %v724
        %v821 = vunpack.c.h.b16 %v724
        %v822 = vunpack.c.l.b16 %v725
        %v823 = vunpack.c.h.b16 %v725
        %v824 = vunpack.c.l.b16 %v726
        %v825 = vunpack.c.h.b16 %v726
        %v826 = vunpack.c.l.b16 %v727
        %v827 = vunpack.c.h.b16 %v727
        %v828 = vunpack.c.l.b16 %v728
        %v829 = vunpack.c.h.b16 %v728
        %v830 = vunpack.c.l.b16 %v729
        %v831 = vunpack.c.h.b16 %v729
        %v832 = vunpack.c.l.b16 %v730
        %v833 = vunpack.c.h.b16 %v730
        %v834 = vunpack.c.l.b16 %v731
        %v835 = vunpack.c.h.b16 %v731
        %v836 = vunpack.c.l.b16 %v732
        %v837 = vunpack.c.h.b16 %v732
        %v838 = vunpack.c.l.b16 %v733
        %v839 = vunpack.c.h.b16 %v733
        %v840 = vunpack.c.l.b16 %v734
        %v841 = vunpack.c.h.b16 %v734
        %v842 = vunpack.c.l.b16 %v735
        %v843 = vunpack.c.h.b16 %v735
        %v844 = vpack.c.b16 %v782, %v780
        %v845 = vpack.c.b16 %v783, %v781
        %v846 = vpack.c.b16 %v786, %v784
        %v847 = vpack.c.b16 %v787, %v785
        %v848 = vpack.c.b16 %v790, %v788
        %v849 = vpack.c.b16 %v791, %v789
        %v850 = vpack.c.b16 %v794, %v792
        %v851 = vpack.c.b16 %v795, %v793
        %v852 = vpack.c.b16 %v798, %v796
        %v853 = vpack.c.b16 %v799, %v797
        %v854 = vpack.c.b16 %v802, %v800
        %v855 = vpack.c.b16 %v803, %v801
        %v856 = vpack.c.b16 %v806, %v804
        %v857 = vpack.c.b16 %v807, %v805
        %v858 = vpack.c.b16 %v810, %v808
        %v859 = vpack.c.b16 %v811, %v809
        %v860 = vpack.c.b16 %v814, %v812
        %v861 = vpack.c.b16 %v815, %v813
        %v862 = vpack.c.b16 %v818, %v816
        %v863 = vpack.c.b16 %v819, %v817
        %v864 = vpack.c.b16 %v822, %v820
        %v865 = vpack.c.b16 %v823, %v821
        %v866 = vpack.c.b16 %v826, %v824
        %v867 = vpack.c.b16 %v827, %v825
        %v868 = vpack.c.b16 %v830, %v828
        %v869 = vpack.c.b16 %v831, %v829
        %v870 = vpack.c.b16 %v834, %v832
        %v871 = vpack.c.b16 %v835, %v833
        %v872 = vpack.c.b16 %v838, %v836
        %v873 = vpack.c.b16 %v839, %v837
        %v874 = vpack.c.b16 %v842, %v840
        %v875 = vpack.c.b16 %v843, %v841
        %908 = vmatprep.subr.bf16.mxu0 %v859
        %909 = vmatpush1.bf16.msra.mxu0 %v858
        %910 = vmatprep.subr.bf16.mxu0 %v857
        %911 = vmatpush1.bf16.msra.mxu0 %v856
        %912 = vmatprep.subr.bf16.mxu0 %v855
        %913 = vmatpush1.bf16.msra.mxu0 %v854
        %914 = vmatprep.subr.bf16.mxu0 %v853
        %915 = vmatpush1.bf16.msra.mxu0 %v852
        %916 = vmatprep.subr.bf16.mxu0 %v851
        %917 = vmatpush1.bf16.msra.mxu0 %v850
        %918 = vmatprep.subr.bf16.mxu0 %v849
        %919 = vmatpush1.bf16.msra.mxu0 %v848
        %920 = vmatprep.subr.bf16.mxu0 %v847
        %921 = vmatpush1.bf16.msra.mxu0 %v846
        %922 = vmatprep.subr.bf16.mxu0 %v845
        %923 = vmatpush1.bf16.msra.mxu0 %v844
        %924 = vmatprep.subr.bf16.mxu0 %v875
        %925 = vmatpush2.bf16.msra.mxu0 %v874
        %926 = vmatprep.subr.bf16.mxu0 %v873
        %927 = vmatpush2.bf16.msra.mxu0 %v872
        %928 = vmatprep.subr.bf16.mxu0 %v871
        %929 = vmatpush2.bf16.msra.mxu0 %v870
        %930 = vmatprep.subr.bf16.mxu0 %v869
        %931 = vmatpush2.bf16.msra.mxu0 %v868
        %932 = vmatprep.subr.bf16.mxu0 %v867
        %933 = vmatpush2.bf16.msra.mxu0 %v866
        %934 = vmatprep.subr.bf16.mxu0 %v865
        %935 = vmatpush2.bf16.msra.mxu0 %v864
        %936 = vmatprep.subr.bf16.mxu0 %v863
        %937 = vmatpush2.bf16.msra.mxu0 %v862
        %938 = vmatprep.subr.bf16.mxu0 %v861
        %939 = vmatpush2.bf16.msra.mxu0 %v860
        %940 = vmatprep.mubr.bf16.mxu0 %v701
        %941 = vmatmul.mubr.bf16.gmra.mxu0 %v700
        %v942 = vpop.f32.mrf.mxu0
        %v943 = vadd.f32 %v741, %v942
        %v944 = vpop.f32.mrf.mxu0
        %v945 = vadd.f32 %v745, %v944
        %v946 = vpop.f32.mrf.mxu0
        %v947 = vpop.f32.mrf.mxu0
        %948 = vdwg.mxu0
        %v949 = vld [vmem:[#allocation8] sm:$0xff]
        %v950 = vld [vmem:[#allocation8 + $0x8] sm:$0xff]
        %v951 = vld [vmem:[#allocation8 + $0x10] sm:$0xff]
        %v952 = vld [vmem:[#allocation8 + $0x18] sm:$0xff]
        %v953 = vld [vmem:[#allocation8 + $0x20] sm:$0xff]
        %v954 = vld [vmem:[#allocation8 + $0x28] sm:$0xff]
        %v955 = vld [vmem:[#allocation8 + $0x30] sm:$0xff]
        %v956 = vld [vmem:[#allocation8 + $0x38] sm:$0xff]
        %v957 = vld [vmem:[#allocation8 + $0x40] sm:$0xff]
        %v958 = vld [vmem:[#allocation8 + $0x48] sm:$0xff]
        %v959 = vld [vmem:[#allocation8 + $0x50] sm:$0xff]
        %v960 = vld [vmem:[#allocation8 + $0x58] sm:$0xff]
        %v961 = vld [vmem:[#allocation8 + $0x60] sm:$0xff]
        %v962 = vld [vmem:[#allocation8 + $0x68] sm:$0xff]
        %v963 = vld [vmem:[#allocation8 + $0x70] sm:$0xff]
        %v964 = vld [vmem:[#allocation8 + $0x78] sm:$0xff]
        %v965 = vld [vmem:[#allocation8 + $0x80] sm:$0xff]
        %v966 = vld [vmem:[#allocation8 + $0x88] sm:$0xff]
        %v967 = vld [vmem:[#allocation8 + $0x90] sm:$0xff]
        %v968 = vld [vmem:[#allocation8 + $0x98] sm:$0xff]
        %v969 = vld [vmem:[#allocation8 + $0xa0] sm:$0xff]
        %v970 = vld [vmem:[#allocation8 + $0xa8] sm:$0xff]
        %v971 = vld [vmem:[#allocation8 + $0xb0] sm:$0xff]
        %v972 = vld [vmem:[#allocation8 + $0xb8] sm:$0xff]
        %v973 = vld [vmem:[#allocation8 + $0xc0] sm:$0xff]
        %v974 = vld [vmem:[#allocation8 + $0xc8] sm:$0xff]
        %v975 = vld [vmem:[#allocation8 + $0xd0] sm:$0xff]
        %v976 = vld [vmem:[#allocation8 + $0xd8] sm:$0xff]
        %v977 = vld [vmem:[#allocation8 + $0xe0] sm:$0xff]
        %v978 = vld [vmem:[#allocation8 + $0xe8] sm:$0xff]
        %v979 = vld [vmem:[#allocation8 + $0xf0] sm:$0xff]
        %v980 = vld [vmem:[#allocation8 + $0xf8] sm:$0xff]
        %v981 = vld [vmem:[#allocation8 + $0x100] sm:$0xff]
        %v982 = vld [vmem:[#allocation8 + $0x108] sm:$0xff]
        %v983 = vld [vmem:[#allocation8 + $0x110] sm:$0xff]
        %v984 = vld [vmem:[#allocation8 + $0x118] sm:$0xff]
        %v985 = vld [vmem:[#allocation8 + $0x120] sm:$0xff]
        %v986 = vld [vmem:[#allocation8 + $0x128] sm:$0xff]
        %v987 = vld [vmem:[#allocation8 + $0x130] sm:$0xff]
        %v988 = vld [vmem:[#allocation8 + $0x138] sm:$0xff]
        %v989 = vld [vmem:[#allocation8 + $0x140] sm:$0xff]
        %v990 = vld [vmem:[#allocation8 + $0x148] sm:$0xff]
        %v991 = vld [vmem:[#allocation8 + $0x150] sm:$0xff]
        %v992 = vld [vmem:[#allocation8 + $0x158] sm:$0xff]
        %v993 = vld [vmem:[#allocation8 + $0x160] sm:$0xff]
        %v994 = vld [vmem:[#allocation8 + $0x168] sm:$0xff]
        %v995 = vld [vmem:[#allocation8 + $0x170] sm:$0xff]
        %v996 = vld [vmem:[#allocation8 + $0x178] sm:$0xff]
        %v997 = vld [vmem:[#allocation8 + $0x180] sm:$0xff]
        %v998 = vld [vmem:[#allocation8 + $0x188] sm:$0xff]
        %v999 = vld [vmem:[#allocation8 + $0x190] sm:$0xff]
        %v1000 = vld [vmem:[#allocation8 + $0x198] sm:$0xff]
        %v1001 = vld [vmem:[#allocation8 + $0x1a0] sm:$0xff]
        %v1002 = vld [vmem:[#allocation8 + $0x1a8] sm:$0xff]
        %v1003 = vld [vmem:[#allocation8 + $0x1b0] sm:$0xff]
        %v1004 = vld [vmem:[#allocation8 + $0x1b8] sm:$0xff]
        %v1005 = vld [vmem:[#allocation8 + $0x1c0] sm:$0xff]
        %v1006 = vld [vmem:[#allocation8 + $0x1c8] sm:$0xff]
        %v1007 = vld [vmem:[#allocation8 + $0x1d0] sm:$0xff]
        %v1008 = vld [vmem:[#allocation8 + $0x1d8] sm:$0xff]
        %v1009 = vld [vmem:[#allocation8 + $0x1e0] sm:$0xff]
        %v1010 = vld [vmem:[#allocation8 + $0x1e8] sm:$0xff]
        %v1011 = vld [vmem:[#allocation8 + $0x1f0] sm:$0xff]
        %v1012 = vld [vmem:[#allocation8 + $0x1f8] sm:$0xff]
        %v1013 = vld [vmem:[%s5] sm:$0xf]
        %v1015 = vlaneseq
        %v1016 = vshrl.u32 %v1015, 7
        %v1017 = vsub.s32 0, %v1016
        %v1018 = vrot.slane %v1013, %v1017
        %v1019 = vlaneseq
        %v1020 = vshrl.u32 %v1019, 7
        %v1021 = vsub.s32 1, %v1020
        %v1022 = vrot.slane %v1013, %v1021
        %v1023 = vlaneseq
        %v1024 = vshrl.u32 %v1023, 7
        %v1025 = vsub.s32 2, %v1024
        %v1026 = vrot.slane %v1013, %v1025
        %v1027 = vlaneseq
        %v1028 = vshrl.u32 %v1027, 7
        %v1029 = vsub.s32 3, %v1028
        %v1030 = vrot.slane %v1013, %v1029
        %v1099 = vunpack.c.l.b16 %v949
        %v1100 = vunpack.c.h.b16 %v949
        %v1101 = vunpack.c.l.b16 %v950
        %v1102 = vunpack.c.h.b16 %v950
        %v1103 = vunpack.c.l.b16 %v951
        %v1104 = vunpack.c.h.b16 %v951
        %v1105 = vunpack.c.l.b16 %v952
        %v1106 = vunpack.c.h.b16 %v952
        %v1107 = vunpack.c.l.b16 %v953
        %v1108 = vunpack.c.h.b16 %v953
        %v1109 = vunpack.c.l.b16 %v954
        %v1110 = vunpack.c.h.b16 %v954
        %v1111 = vunpack.c.l.b16 %v955
        %v1112 = vunpack.c.h.b16 %v955
        %v1113 = vunpack.c.l.b16 %v956
        %v1114 = vunpack.c.h.b16 %v956
        %v1115 = vunpack.c.l.b16 %v957
        %v1116 = vunpack.c.h.b16 %v957
        %v1117 = vunpack.c.l.b16 %v958
        %v1118 = vunpack.c.h.b16 %v958
        %v1119 = vunpack.c.l.b16 %v959
        %v1120 = vunpack.c.h.b16 %v959
        %v1121 = vunpack.c.l.b16 %v960
        %v1122 = vunpack.c.h.b16 %v960
        %v1123 = vunpack.c.l.b16 %v961
        %v1124 = vunpack.c.h.b16 %v961
        %v1125 = vunpack.c.l.b16 %v962
        %v1126 = vunpack.c.h.b16 %v962
        %v1127 = vunpack.c.l.b16 %v963
        %v1128 = vunpack.c.h.b16 %v963
        %v1129 = vunpack.c.l.b16 %v964
        %v1130 = vunpack.c.h.b16 %v964
        %v1131 = vunpack.c.l.b16 %v965
        %v1132 = vunpack.c.h.b16 %v965
        %v1133 = vunpack.c.l.b16 %v966
        %v1134 = vunpack.c.h.b16 %v966
        %v1135 = vunpack.c.l.b16 %v967
        %v1136 = vunpack.c.h.b16 %v967
        %v1137 = vunpack.c.l.b16 %v968
        %v1138 = vunpack.c.h.b16 %v968
        %v1139 = vunpack.c.l.b16 %v969
        %v1140 = vunpack.c.h.b16 %v969
        %v1141 = vunpack.c.l.b16 %v970
        %v1142 = vunpack.c.h.b16 %v970
        %v1143 = vunpack.c.l.b16 %v971
        %v1144 = vunpack.c.h.b16 %v971
        %v1145 = vunpack.c.l.b16 %v972
        %v1146 = vunpack.c.h.b16 %v972
        %v1147 = vunpack.c.l.b16 %v973
        %v1148 = vunpack.c.h.b16 %v973
        %v1149 = vunpack.c.l.b16 %v974
        %v1150 = vunpack.c.h.b16 %v974
        %v1151 = vunpack.c.l.b16 %v975
        %v1152 = vunpack.c.h.b16 %v975
        %v1153 = vunpack.c.l.b16 %v976
        %v1154 = vunpack.c.h.b16 %v976
        %v1155 = vunpack.c.l.b16 %v977
        %v1156 = vunpack.c.h.b16 %v977
        %v1157 = vunpack.c.l.b16 %v978
        %v1158 = vunpack.c.h.b16 %v978
        %v1159 = vunpack.c.l.b16 %v979
        %v1160 = vunpack.c.h.b16 %v979
        %v1161 = vunpack.c.l.b16 %v980
        %v1162 = vunpack.c.h.b16 %v980
        %v1163 = vunpack.c.l.b16 %v981
        %v1164 = vunpack.c.h.b16 %v981
        %v1165 = vunpack.c.l.b16 %v982
        %v1166 = vunpack.c.h.b16 %v982
        %v1167 = vunpack.c.l.b16 %v983
        %v1168 = vunpack.c.h.b16 %v983
        %v1169 = vunpack.c.l.b16 %v984
        %v1170 = vunpack.c.h.b16 %v984
        %v1171 = vunpack.c.l.b16 %v985
        %v1172 = vunpack.c.h.b16 %v985
        %v1173 = vunpack.c.l.b16 %v986
        %v1174 = vunpack.c.h.b16 %v986
        %v1175 = vunpack.c.l.b16 %v987
        %v1176 = vunpack.c.h.b16 %v987
        %v1177 = vunpack.c.l.b16 %v988
        %v1178 = vunpack.c.h.b16 %v988
        %v1179 = vunpack.c.l.b16 %v989
        %v1180 = vunpack.c.h.b16 %v989
        %v1181 = vunpack.c.l.b16 %v990
        %v1182 = vunpack.c.h.b16 %v990
        %v1183 = vunpack.c.l.b16 %v991
        %v1184 = vunpack.c.h.b16 %v991
        %v1185 = vunpack.c.l.b16 %v992
        %v1186 = vunpack.c.h.b16 %v992
        %v1187 = vunpack.c.l.b16 %v993
        %v1188 = vunpack.c.h.b16 %v993
        %v1189 = vunpack.c.l.b16 %v994
        %v1190 = vunpack.c.h.b16 %v994
        %v1191 = vunpack.c.l.b16 %v995
        %v1192 = vunpack.c.h.b16 %v995
        %v1193 = vunpack.c.l.b16 %v996
        %v1194 = vunpack.c.h.b16 %v996
        %v1195 = vunpack.c.l.b16 %v997
        %v1196 = vunpack.c.h.b16 %v997
        %v1197 = vunpack.c.l.b16 %v998
        %v1198 = vunpack.c.h.b16 %v998
        %v1199 = vunpack.c.l.b16 %v999
        %v1200 = vunpack.c.h.b16 %v999
        %v1201 = vunpack.c.l.b16 %v1000
        %v1202 = vunpack.c.h.b16 %v1000
        %v1203 = vunpack.c.l.b16 %v1001
        %v1204 = vunpack.c.h.b16 %v1001
        %v1205 = vunpack.c.l.b16 %v1002
        %v1206 = vunpack.c.h.b16 %v1002
        %v1207 = vunpack.c.l.b16 %v1003
        %v1208 = vunpack.c.h.b16 %v1003
        %v1209 = vunpack.c.l.b16 %v1004
        %v1210 = vunpack.c.h.b16 %v1004
        %v1211 = vunpack.c.l.b16 %v1005
        %v1212 = vunpack.c.h.b16 %v1005
        %v1213 = vunpack.c.l.b16 %v1006
        %v1214 = vunpack.c.h.b16 %v1006
        %v1215 = vunpack.c.l.b16 %v1007
        %v1216 = vunpack.c.h.b16 %v1007
        %v1217 = vunpack.c.l.b16 %v1008
        %v1218 = vunpack.c.h.b16 %v1008
        %v1219 = vunpack.c.l.b16 %v1009
        %v1220 = vunpack.c.h.b16 %v1009
        %v1221 = vunpack.c.l.b16 %v1010
        %v1222 = vunpack.c.h.b16 %v1010
        %v1223 = vunpack.c.l.b16 %v1011
        %v1224 = vunpack.c.h.b16 %v1011
        %v1225 = vunpack.c.l.b16 %v1012
        %v1226 = vunpack.c.h.b16 %v1012
        %v1227 = vpack.c.b16 %v1103, %v1099
        %v1228 = vpack.c.b16 %v1104, %v1100
        %v1229 = vpack.c.b16 %v1105, %v1101
        %v1230 = vpack.c.b16 %v1106, %v1102
        %v1231 = vpack.c.b16 %v1111, %v1107
        %v1232 = vpack.c.b16 %v1112, %v1108
        %v1233 = vpack.c.b16 %v1113, %v1109
        %v1234 = vpack.c.b16 %v1114, %v1110
        %v1235 = vpack.c.b16 %v1119, %v1115
        %v1236 = vpack.c.b16 %v1120, %v1116
        %v1237 = vpack.c.b16 %v1121, %v1117
        %v1238 = vpack.c.b16 %v1122, %v1118
        %v1239 = vpack.c.b16 %v1127, %v1123
        %v1240 = vpack.c.b16 %v1128, %v1124
        %v1241 = vpack.c.b16 %v1129, %v1125
        %v1242 = vpack.c.b16 %v1130, %v1126
        %v1243 = vpack.c.b16 %v1135, %v1131
        %v1244 = vpack.c.b16 %v1136, %v1132
        %v1245 = vpack.c.b16 %v1137, %v1133
        %v1246 = vpack.c.b16 %v1138, %v1134
        %v1247 = vpack.c.b16 %v1143, %v1139
        %v1248 = vpack.c.b16 %v1144, %v1140
        %v1249 = vpack.c.b16 %v1145, %v1141
        %v1250 = vpack.c.b16 %v1146, %v1142
        %v1251 = vpack.c.b16 %v1151, %v1147
        %v1252 = vpack.c.b16 %v1152, %v1148
        %v1253 = vpack.c.b16 %v1153, %v1149
        %v1254 = vpack.c.b16 %v1154, %v1150
        %v1255 = vpack.c.b16 %v1159, %v1155
        %v1256 = vpack.c.b16 %v1160, %v1156
        %v1257 = vpack.c.b16 %v1161, %v1157
        %v1258 = vpack.c.b16 %v1162, %v1158
        %v1259 = vpack.c.b16 %v1167, %v1163
        %v1260 = vpack.c.b16 %v1168, %v1164
        %v1261 = vpack.c.b16 %v1169, %v1165
        %v1262 = vpack.c.b16 %v1170, %v1166
        %v1263 = vpack.c.b16 %v1175, %v1171
        %v1264 = vpack.c.b16 %v1176, %v1172
        %v1265 = vpack.c.b16 %v1177, %v1173
        %v1266 = vpack.c.b16 %v1178, %v1174
        %v1267 = vpack.c.b16 %v1183, %v1179
        %v1268 = vpack.c.b16 %v1184, %v1180
        %v1269 = vpack.c.b16 %v1185, %v1181
        %v1270 = vpack.c.b16 %v1186, %v1182
        %v1271 = vpack.c.b16 %v1191, %v1187
        %v1272 = vpack.c.b16 %v1192, %v1188
        %v1273 = vpack.c.b16 %v1193, %v1189
        %v1274 = vpack.c.b16 %v1194, %v1190
        %v1275 = vpack.c.b16 %v1199, %v1195
        %v1276 = vpack.c.b16 %v1200, %v1196
        %v1277 = vpack.c.b16 %v1201, %v1197
        %v1278 = vpack.c.b16 %v1202, %v1198
        %v1279 = vpack.c.b16 %v1207, %v1203
        %v1280 = vpack.c.b16 %v1208, %v1204
        %v1281 = vpack.c.b16 %v1209, %v1205
        %v1282 = vpack.c.b16 %v1210, %v1206
        %v1283 = vpack.c.b16 %v1215, %v1211
        %v1284 = vpack.c.b16 %v1216, %v1212
        %v1285 = vpack.c.b16 %v1217, %v1213
        %v1286 = vpack.c.b16 %v1218, %v1214
        %v1287 = vpack.c.b16 %v1223, %v1219
        %v1288 = vpack.c.b16 %v1224, %v1220
        %v1289 = vpack.c.b16 %v1225, %v1221
        %v1290 = vpack.c.b16 %v1226, %v1222
        %1355 = vmatprep.subr.bf16.mxu0 %v1256
        %1356 = vmatpush1.bf16.msra.mxu0 %v1255
        %1357 = vmatprep.subr.bf16.mxu0 %v1252
        %1358 = vmatpush1.bf16.msra.mxu0 %v1251
        %1359 = vmatprep.subr.bf16.mxu0 %v1248
        %1360 = vmatpush1.bf16.msra.mxu0 %v1247
        %1361 = vmatprep.subr.bf16.mxu0 %v1244
        %1362 = vmatpush1.bf16.msra.mxu0 %v1243
        %1363 = vmatprep.subr.bf16.mxu0 %v1240
        %1364 = vmatpush1.bf16.msra.mxu0 %v1239
        %1365 = vmatprep.subr.bf16.mxu0 %v1236
        %1366 = vmatpush1.bf16.msra.mxu0 %v1235
        %1367 = vmatprep.subr.bf16.mxu0 %v1232
        %1368 = vmatpush1.bf16.msra.mxu0 %v1231
        %1369 = vmatprep.subr.bf16.mxu0 %v1228
        %1370 = vmatpush1.bf16.msra.mxu0 %v1227
        %1371 = vmatprep.subr.bf16.mxu0 %v1288
        %1372 = vmatpush2.bf16.msra.mxu0 %v1287
        %1373 = vmatprep.subr.bf16.mxu0 %v1284
        %1374 = vmatpush2.bf16.msra.mxu0 %v1283
        %1375 = vmatprep.subr.bf16.mxu0 %v1280
        %1376 = vmatpush2.bf16.msra.mxu0 %v1279
        %1377 = vmatprep.subr.bf16.mxu0 %v1276
        %1378 = vmatpush2.bf16.msra.mxu0 %v1275
        %1379 = vmatprep.subr.bf16.mxu0 %v1272
        %1380 = vmatpush2.bf16.msra.mxu0 %v1271
        %1381 = vmatprep.subr.bf16.mxu0 %v1268
        %1382 = vmatpush2.bf16.msra.mxu0 %v1267
        %1383 = vmatprep.subr.bf16.mxu0 %v1264
        %1384 = vmatpush2.bf16.msra.mxu0 %v1263
        %1385 = vmatprep.subr.bf16.mxu0 %v1260
        %1386 = vmatpush2.bf16.msra.mxu0 %v1259
        %1387 = vmatprep.mubr.bf16.mxu0 %v703
        %1388 = vmatmul.mubr.bf16.gmra.mxu0 %v702
        %v1389 = vpop.f32.mrf.mxu0
        %v1390 = vadd.f32 %v1018, %v1389
        %v1391 = vpop.f32.mrf.mxu0
        %v1392 = vadd.f32 %v1022, %v1391
        %v1393 = vpop.f32.mrf.mxu0
        %v1394 = vadd.f32 %v1018, %v1393
        %v1395 = vpop.f32.mrf.mxu0
        %v1396 = vadd.f32 %v1022, %v1395
        %1397 = vdwg.mxu0
        %1398 = vmatprep.subr.bf16.mxu0 %v1258
        %1399 = vmatpush1.bf16.msra.mxu0 %v1257
        %1400 = vmatprep.subr.bf16.mxu0 %v1254
        %1401 = vmatpush1.bf16.msra.mxu0 %v1253
        %1402 = vmatprep.subr.bf16.mxu0 %v1250
        %1403 = vmatpush1.bf16.msra.mxu0 %v1249
        %1404 = vmatprep.subr.bf16.mxu0 %v1246
        %1405 = vmatpush1.bf16.msra.mxu0 %v1245
        %1406 = vmatprep.subr.bf16.mxu0 %v1242
        %1407 = vmatpush1.bf16.msra.mxu0 %v1241
        %1408 = vmatprep.subr.bf16.mxu0 %v1238
        %1409 = vmatpush1.bf16.msra.mxu0 %v1237
        %1410 = vmatprep.subr.bf16.mxu0 %v1234
        %1411 = vmatpush1.bf16.msra.mxu0 %v1233
        %1412 = vmatprep.subr.bf16.mxu0 %v1230
        %1413 = vmatpush1.bf16.msra.mxu0 %v1229
        %1414 = vmatprep.subr.bf16.mxu0 %v1290
        %1415 = vmatpush2.bf16.msra.mxu0 %v1289
        %1416 = vmatprep.subr.bf16.mxu0 %v1286
        %1417 = vmatpush2.bf16.msra.mxu0 %v1285
        %1418 = vmatprep.subr.bf16.mxu0 %v1282
        %1419 = vmatpush2.bf16.msra.mxu0 %v1281
        %1420 = vmatprep.subr.bf16.mxu0 %v1278
        %1421 = vmatpush2.bf16.msra.mxu0 %v1277
        %1422 = vmatprep.subr.bf16.mxu0 %v1274
        %1423 = vmatpush2.bf16.msra.mxu0 %v1273
        %1424 = vmatprep.subr.bf16.mxu0 %v1270
        %1425 = vmatpush2.bf16.msra.mxu0 %v1269
        %1426 = vmatprep.subr.bf16.mxu0 %v1266
        %1427 = vmatpush2.bf16.msra.mxu0 %v1265
        %1428 = vmatprep.subr.bf16.mxu0 %v1262
        %1429 = vmatpush2.bf16.msra.mxu0 %v1261
        %1430 = vmatprep.mubr.bf16.mxu0 %v703
        %1431 = vmatmul.mubr.bf16.gmra.mxu0 %v702
        %v1432 = vpop.f32.mrf.mxu0
        %v1433 = vadd.f32 %v1026, %v1432
        %v1434 = vpop.f32.mrf.mxu0
        %v1435 = vadd.f32 %v1030, %v1434
        %v1436 = vpop.f32.mrf.mxu0
        %v1437 = vadd.f32 %v1026, %v1436
        %v1438 = vpop.f32.mrf.mxu0
        %v1439 = vadd.f32 %v1030, %v1438
        %1440 = vdwg.mxu0
        %1442 = vrot.lane.b32.xlu0 %v943, 96
        %v1443 = vpop.permute.xlu0 %1442
        %1445 = vrot.lane.b32.xlu0 %v943, 64
        %v1446 = vpop.permute.xlu0 %1445
        %1448 = vrot.lane.b32.xlu0 %v943, 32
        %v1449 = vpop.permute.xlu0 %1448
        %1452 = vrot.lane.b32.xlu0 %v945, 96
        %v1453 = vpop.permute.xlu0 %1452
        %1455 = vrot.lane.b32.xlu0 %v945, 64
        %v1456 = vpop.permute.xlu0 %1455
        %1458 = vrot.lane.b32.xlu0 %v945, 32
        %v1459 = vpop.permute.xlu0 %1458
        %v1461 = vcombine.low %v943, %v1446
        %v1462 = vcombine.high %v943, %v1446
        %v1464 = vunpack.c.l.s4 1983009808
        %v1465 = vunpack.c.0.s8 %v1464
        %v1466 = vlaneseq
        %v1467 = vshrl.u32 %v1466, 7
        %v1468 = vsub.s32 %v1465, %v1467
        %v1469 = vrot.slane %v1461, %v1468
        %v1471 = vunpack.c.l.s4 1983009808
        %v1472 = vunpack.c.0.s8 %v1471
        %v1473 = vlaneseq
        %v1474 = vshrl.u32 %v1473, 7
        %v1475 = vsub.s32 %v1472, %v1474
        %v1476 = vrot.slane %v1462, %v1475
        %v1477 = vcombine.low %v1443, %v1449
        %v1478 = vcombine.high %v1443, %v1449
        %v1480 = vunpack.c.l.s4 1983009808
        %v1481 = vunpack.c.0.s8 %v1480
        %v1482 = vlaneseq
        %v1483 = vshrl.u32 %v1482, 7
        %v1484 = vsub.s32 %v1481, %v1483
        %v1485 = vrot.slane %v1477, %v1484
        %v1487 = vunpack.c.l.s4 1983009808
        %v1488 = vunpack.c.0.s8 %v1487
        %v1489 = vlaneseq
        %v1490 = vshrl.u32 %v1489, 7
        %v1491 = vsub.s32 %v1488, %v1490
        %v1492 = vrot.slane %v1478, %v1491
        %v1493 = vcombine.low %v945, %v1456
        %v1494 = vcombine.high %v945, %v1456
        %v1496 = vunpack.c.l.s4 1983009808
        %v1497 = vunpack.c.0.s8 %v1496
        %v1498 = vlaneseq
        %v1499 = vshrl.u32 %v1498, 7
        %v1500 = vsub.s32 %v1497, %v1499
        %v1501 = vrot.slane %v1493, %v1500
        %v1503 = vunpack.c.l.s4 1983009808
        %v1504 = vunpack.c.0.s8 %v1503
        %v1505 = vlaneseq
        %v1506 = vshrl.u32 %v1505, 7
        %v1507 = vsub.s32 %v1504, %v1506
        %v1508 = vrot.slane %v1494, %v1507
        %v1509 = vcombine.low %v1453, %v1459
        %v1510 = vcombine.high %v1453, %v1459
        %v1512 = vunpack.c.l.s4 1983009808
        %v1513 = vunpack.c.0.s8 %v1512
        %v1514 = vlaneseq
        %v1515 = vshrl.u32 %v1514, 7
        %v1516 = vsub.s32 %v1513, %v1515
        %v1517 = vrot.slane %v1509, %v1516
        %v1519 = vunpack.c.l.s4 1983009808
        %v1520 = vunpack.c.0.s8 %v1519
        %v1521 = vlaneseq
        %v1522 = vshrl.u32 %v1521, 7
        %v1523 = vsub.s32 %v1520, %v1522
        %v1524 = vrot.slane %v1510, %v1523
        %v1525 = vcombine.low %v1469, %v1485
        %v1526 = vcombine.high %v1469, %v1485
        %v1528 = vunpack.c.l.s4 1934713408
        %v1529 = vunpack.c.0.s8 %v1528
        %v1530 = vlaneseq
        %v1531 = vshrl.u32 %v1530, 7
        %v1532 = vsub.s32 %v1529, %v1531
        %v1533 = vrot.slane %v1525, %v1532
        %v1535 = vunpack.c.l.s4 1934713408
        %v1536 = vunpack.c.0.s8 %v1535
        %v1537 = vlaneseq
        %v1538 = vshrl.u32 %v1537, 7
        %v1539 = vsub.s32 %v1536, %v1538
        %v1540 = vrot.slane %v1526, %v1539
        %v1541 = vcombine.low %v1476, %v1492
        %v1542 = vcombine.high %v1476, %v1492
        %v1544 = vunpack.c.l.s4 1934713408
        %v1545 = vunpack.c.0.s8 %v1544
        %v1546 = vlaneseq
        %v1547 = vshrl.u32 %v1546, 7
        %v1548 = vsub.s32 %v1545, %v1547
        %v1549 = vrot.slane %v1541, %v1548
        %v1551 = vunpack.c.l.s4 1934713408
        %v1552 = vunpack.c.0.s8 %v1551
        %v1553 = vlaneseq
        %v1554 = vshrl.u32 %v1553, 7
        %v1555 = vsub.s32 %v1552, %v1554
        %v1556 = vrot.slane %v1542, %v1555
        %v1557 = vcombine.low %v1501, %v1517
        %v1558 = vcombine.high %v1501, %v1517
        %v1560 = vunpack.c.l.s4 1934713408
        %v1561 = vunpack.c.0.s8 %v1560
        %v1562 = vlaneseq
        %v1563 = vshrl.u32 %v1562, 7
        %v1564 = vsub.s32 %v1561, %v1563
        %v1565 = vrot.slane %v1557, %v1564
        %v1567 = vunpack.c.l.s4 1934713408
        %v1568 = vunpack.c.0.s8 %v1567
        %v1569 = vlaneseq
        %v1570 = vshrl.u32 %v1569, 7
        %v1571 = vsub.s32 %v1568, %v1570
        %v1572 = vrot.slane %v1558, %v1571
        %v1573 = vcombine.low %v1508, %v1524
        %v1574 = vcombine.high %v1508, %v1524
        %v1576 = vunpack.c.l.s4 1934713408
        %v1577 = vunpack.c.0.s8 %v1576
        %v1578 = vlaneseq
        %v1579 = vshrl.u32 %v1578, 7
        %v1580 = vsub.s32 %v1577, %v1579
        %v1581 = vrot.slane %v1573, %v1580
        %v1583 = vunpack.c.l.s4 1934713408
        %v1584 = vunpack.c.0.s8 %v1583
        %v1585 = vlaneseq
        %v1586 = vshrl.u32 %v1585, 7
        %v1587 = vsub.s32 %v1584, %v1586
        %v1588 = vrot.slane %v1574, %v1587
        %v1589 = vcombine.low %v1533, %v1565
        %v1590 = vcombine.high %v1533, %v1565
        %v1591 = vcombine.low %v1540, %v1572
        %v1592 = vcombine.high %v1540, %v1572
        %v1593 = vcombine.low %v1549, %v1581
        %v1594 = vcombine.high %v1549, %v1581
        %v1595 = vcombine.low %v1556, %v1588
        %v1596 = vcombine.high %v1556, %v1588
        %v1597 = vcombine.low %v1589, %v1591
        %v1598 = vcombine.high %v1589, %v1591
        %v1600 = vunpack.c.l.s4 1983009808
        %v1601 = vunpack.c.0.s8 %v1600
        %v1602 = vlaneseq
        %v1603 = vshrl.u32 %v1602, 7
        %v1604 = vsub.s32 %v1601, %v1603
        %v1605 = vrot.slane %v1597, %v1604
        %v1607 = vunpack.c.l.s4 1983009808
        %v1608 = vunpack.c.0.s8 %v1607
        %v1609 = vlaneseq
        %v1610 = vshrl.u32 %v1609, 7
        %v1611 = vsub.s32 %v1608, %v1610
        %v1612 = vrot.slane %v1598, %v1611
        %v1613 = vcombine.low %v1590, %v1592
        %v1614 = vcombine.high %v1590, %v1592
        %v1616 = vunpack.c.l.s4 1983009808
        %v1617 = vunpack.c.0.s8 %v1616
        %v1618 = vlaneseq
        %v1619 = vshrl.u32 %v1618, 7
        %v1620 = vsub.s32 %v1617, %v1619
        %v1621 = vrot.slane %v1613, %v1620
        %v1623 = vunpack.c.l.s4 1983009808
        %v1624 = vunpack.c.0.s8 %v1623
        %v1625 = vlaneseq
        %v1626 = vshrl.u32 %v1625, 7
        %v1627 = vsub.s32 %v1624, %v1626
        %v1628 = vrot.slane %v1614, %v1627
        %v1629 = vcombine.low %v1593, %v1595
        %v1630 = vcombine.high %v1593, %v1595
        %v1632 = vunpack.c.l.s4 1983009808
        %v1633 = vunpack.c.0.s8 %v1632
        %v1634 = vlaneseq
        %v1635 = vshrl.u32 %v1634, 7
        %v1636 = vsub.s32 %v1633, %v1635
        %v1637 = vrot.slane %v1629, %v1636
        %v1639 = vunpack.c.l.s4 1983009808
        %v1640 = vunpack.c.0.s8 %v1639
        %v1641 = vlaneseq
        %v1642 = vshrl.u32 %v1641, 7
        %v1643 = vsub.s32 %v1640, %v1642
        %v1644 = vrot.slane %v1630, %v1643
        %v1645 = vcombine.low %v1594, %v1596
        %v1646 = vcombine.high %v1594, %v1596
        %v1648 = vunpack.c.l.s4 1983009808
        %v1649 = vunpack.c.0.s8 %v1648
        %v1650 = vlaneseq
        %v1651 = vshrl.u32 %v1650, 7
        %v1652 = vsub.s32 %v1649, %v1651
        %v1653 = vrot.slane %v1645, %v1652
        %v1655 = vunpack.c.l.s4 1983009808
        %v1656 = vunpack.c.0.s8 %v1655
        %v1657 = vlaneseq
        %v1658 = vshrl.u32 %v1657, 7
        %v1659 = vsub.s32 %v1656, %v1658
        %v1660 = vrot.slane %v1646, %v1659
        %v1661 = vcombine.low %v1605, %v1621
        %v1662 = vcombine.high %v1605, %v1621
        %v1664 = vunpack.c.l.s4 1934713408
        %v1665 = vunpack.c.0.s8 %v1664
        %v1666 = vlaneseq
        %v1667 = vshrl.u32 %v1666, 7
        %v1668 = vsub.s32 %v1665, %v1667
        %v1669 = vrot.slane %v1661, %v1668
        %v1671 = vunpack.c.l.s4 1934713408
        %v1672 = vunpack.c.0.s8 %v1671
        %v1673 = vlaneseq
        %v1674 = vshrl.u32 %v1673, 7
        %v1675 = vsub.s32 %v1672, %v1674
        %v1676 = vrot.slane %v1662, %v1675
        %v1677 = vcombine.low %v1612, %v1628
        %v1678 = vcombine.high %v1612, %v1628
        %v1680 = vunpack.c.l.s4 1934713408
        %v1681 = vunpack.c.0.s8 %v1680
        %v1682 = vlaneseq
        %v1683 = vshrl.u32 %v1682, 7
        %v1684 = vsub.s32 %v1681, %v1683
        %v1685 = vrot.slane %v1677, %v1684
        %v1687 = vunpack.c.l.s4 1934713408
        %v1688 = vunpack.c.0.s8 %v1687
        %v1689 = vlaneseq
        %v1690 = vshrl.u32 %v1689, 7
        %v1691 = vsub.s32 %v1688, %v1690
        %v1692 = vrot.slane %v1678, %v1691
        %v1693 = vcombine.low %v1637, %v1653
        %v1694 = vcombine.high %v1637, %v1653
        %v1696 = vunpack.c.l.s4 1934713408
        %v1697 = vunpack.c.0.s8 %v1696
        %v1698 = vlaneseq
        %v1699 = vshrl.u32 %v1698, 7
        %v1700 = vsub.s32 %v1697, %v1699
        %v1701 = vrot.slane %v1693, %v1700
        %v1703 = vunpack.c.l.s4 1934713408
        %v1704 = vunpack.c.0.s8 %v1703
        %v1705 = vlaneseq
        %v1706 = vshrl.u32 %v1705, 7
        %v1707 = vsub.s32 %v1704, %v1706
        %v1708 = vrot.slane %v1694, %v1707
        %v1709 = vcombine.low %v1644, %v1660
        %v1710 = vcombine.high %v1644, %v1660
        %v1712 = vunpack.c.l.s4 1934713408
        %v1713 = vunpack.c.0.s8 %v1712
        %v1714 = vlaneseq
        %v1715 = vshrl.u32 %v1714, 7
        %v1716 = vsub.s32 %v1713, %v1715
        %v1717 = vrot.slane %v1709, %v1716
        %v1719 = vunpack.c.l.s4 1934713408
        %v1720 = vunpack.c.0.s8 %v1719
        %v1721 = vlaneseq
        %v1722 = vshrl.u32 %v1721, 7
        %v1723 = vsub.s32 %v1720, %v1722
        %v1724 = vrot.slane %v1710, %v1723
        %v1725 = vcombine.low %v1669, %v1701
        %v1726 = vcombine.high %v1669, %v1701
        %v1727 = vcombine.low %v1676, %v1708
        %v1728 = vcombine.high %v1676, %v1708
        %v1729 = vcombine.low %v1685, %v1717
        %v1730 = vcombine.high %v1685, %v1717
        %v1731 = vcombine.low %v1692, %v1724
        %v1732 = vcombine.high %v1692, %v1724
        %v1733 = vpack.c.bf16 %v1725, %v1725
        %v1734 = vpack.c.bf16 %v1726, %v1726
        %v1735 = vpack.c.bf16 %v1727, %v1727
        %v1736 = vpack.c.bf16 %v1728, %v1728
        %v1737 = vpack.c.bf16 %v1729, %v1729
        %v1738 = vpack.c.bf16 %v1730, %v1730
        %v1739 = vpack.c.bf16 %v1731, %v1731
        %v1740 = vpack.c.bf16 %v1732, %v1732
        %1743 = vrot.lane.b32.xlu0 %v1390, 96
        %v1744 = vpop.permute.xlu0 %1743
        %1745 = vrot.lane.b32.xlu0 %v1394, 96
        %v1746 = vpop.permute.xlu0 %1745
        %1749 = vrot.lane.b32.xlu0 %v1390, 64
        %v1750 = vpop.permute.xlu0 %1749
        %1751 = vrot.lane.b32.xlu0 %v1394, 64
        %v1752 = vpop.permute.xlu0 %1751
        %1755 = vrot.lane.b32.xlu0 %v1390, 32
        %v1756 = vpop.permute.xlu0 %1755
        %1757 = vrot.lane.b32.xlu0 %v1394, 32
        %v1758 = vpop.permute.xlu0 %1757
        %1763 = vrot.lane.b32.xlu0 %v1392, 96
        %v1764 = vpop.permute.xlu0 %1763
        %1765 = vrot.lane.b32.xlu0 %v1396, 96
        %v1766 = vpop.permute.xlu0 %1765
        %1769 = vrot.lane.b32.xlu0 %v1392, 64
        %v1770 = vpop.permute.xlu0 %1769
        %1771 = vrot.lane.b32.xlu0 %v1396, 64
        %v1772 = vpop.permute.xlu0 %1771
        %1775 = vrot.lane.b32.xlu0 %v1392, 32
        %v1776 = vpop.permute.xlu0 %1775
        %1777 = vrot.lane.b32.xlu0 %v1396, 32
        %v1778 = vpop.permute.xlu0 %1777
        %v1781 = vcombine.low %v1390, %v1750
        %v1782 = vcombine.high %v1390, %v1750
        %v1784 = vunpack.c.l.s4 1983009808
        %v1785 = vunpack.c.0.s8 %v1784
        %v1786 = vlaneseq
        %v1787 = vshrl.u32 %v1786, 7
        %v1788 = vsub.s32 %v1785, %v1787
        %v1789 = vrot.slane %v1781, %v1788
        %v1791 = vunpack.c.l.s4 1983009808
        %v1792 = vunpack.c.0.s8 %v1791
        %v1793 = vlaneseq
        %v1794 = vshrl.u32 %v1793, 7
        %v1795 = vsub.s32 %v1792, %v1794
        %v1796 = vrot.slane %v1782, %v1795
        %v1797 = vcombine.low %v1744, %v1756
        %v1798 = vcombine.high %v1744, %v1756
        %v1800 = vunpack.c.l.s4 1983009808
        %v1801 = vunpack.c.0.s8 %v1800
        %v1802 = vlaneseq
        %v1803 = vshrl.u32 %v1802, 7
        %v1804 = vsub.s32 %v1801, %v1803
        %v1805 = vrot.slane %v1797, %v1804
        %v1807 = vunpack.c.l.s4 1983009808
        %v1808 = vunpack.c.0.s8 %v1807
        %v1809 = vlaneseq
        %v1810 = vshrl.u32 %v1809, 7
        %v1811 = vsub.s32 %v1808, %v1810
        %v1812 = vrot.slane %v1798, %v1811
        %v1813 = vcombine.low %v1392, %v1770
        %v1814 = vcombine.high %v1392, %v1770
        %v1816 = vunpack.c.l.s4 1983009808
        %v1817 = vunpack.c.0.s8 %v1816
        %v1818 = vlaneseq
        %v1819 = vshrl.u32 %v1818, 7
        %v1820 = vsub.s32 %v1817, %v1819
        %v1821 = vrot.slane %v1813, %v1820
        %v1823 = vunpack.c.l.s4 1983009808
        %v1824 = vunpack.c.0.s8 %v1823
        %v1825 = vlaneseq
        %v1826 = vshrl.u32 %v1825, 7
        %v1827 = vsub.s32 %v1824, %v1826
        %v1828 = vrot.slane %v1814, %v1827
        %v1829 = vcombine.low %v1764, %v1776
        %v1830 = vcombine.high %v1764, %v1776
        %v1832 = vunpack.c.l.s4 1983009808
        %v1833 = vunpack.c.0.s8 %v1832
        %v1834 = vlaneseq
        %v1835 = vshrl.u32 %v1834, 7
        %v1836 = vsub.s32 %v1833, %v1835
        %v1837 = vrot.slane %v1829, %v1836
        %v1839 = vunpack.c.l.s4 1983009808
        %v1840 = vunpack.c.0.s8 %v1839
        %v1841 = vlaneseq
        %v1842 = vshrl.u32 %v1841, 7
        %v1843 = vsub.s32 %v1840, %v1842
        %v1844 = vrot.slane %v1830, %v1843
        %v1845 = vcombine.low %v1789, %v1805
        %v1846 = vcombine.high %v1789, %v1805
        %v1848 = vunpack.c.l.s4 1934713408
        %v1849 = vunpack.c.0.s8 %v1848
        %v1850 = vlaneseq
        %v1851 = vshrl.u32 %v1850, 7
        %v1852 = vsub.s32 %v1849, %v1851
        %v1853 = vrot.slane %v1845, %v1852
        %v1855 = vunpack.c.l.s4 1934713408
        %v1856 = vunpack.c.0.s8 %v1855
        %v1857 = vlaneseq
        %v1858 = vshrl.u32 %v1857, 7
        %v1859 = vsub.s32 %v1856, %v1858
        %v1860 = vrot.slane %v1846, %v1859
        %v1861 = vcombine.low %v1796, %v1812
        %v1862 = vcombine.high %v1796, %v1812
        %v1864 = vunpack.c.l.s4 1934713408
        %v1865 = vunpack.c.0.s8 %v1864
        %v1866 = vlaneseq
        %v1867 = vshrl.u32 %v1866, 7
        %v1868 = vsub.s32 %v1865, %v1867
        %v1869 = vrot.slane %v1861, %v1868
        %v1871 = vunpack.c.l.s4 1934713408
        %v1872 = vunpack.c.0.s8 %v1871
        %v1873 = vlaneseq
        %v1874 = vshrl.u32 %v1873, 7
        %v1875 = vsub.s32 %v1872, %v1874
        %v1876 = vrot.slane %v1862, %v1875
        %v1877 = vcombine.low %v1821, %v1837
        %v1878 = vcombine.high %v1821, %v1837
        %v1880 = vunpack.c.l.s4 1934713408
        %v1881 = vunpack.c.0.s8 %v1880
        %v1882 = vlaneseq
        %v1883 = vshrl.u32 %v1882, 7
        %v1884 = vsub.s32 %v1881, %v1883
        %v1885 = vrot.slane %v1877, %v1884
        %v1887 = vunpack.c.l.s4 1934713408
        %v1888 = vunpack.c.0.s8 %v1887
        %v1889 = vlaneseq
        %v1890 = vshrl.u32 %v1889, 7
        %v1891 = vsub.s32 %v1888, %v1890
        %v1892 = vrot.slane %v1878, %v1891
        %v1893 = vcombine.low %v1828, %v1844
        %v1894 = vcombine.high %v1828, %v1844
        %v1896 = vunpack.c.l.s4 1934713408
        %v1897 = vunpack.c.0.s8 %v1896
        %v1898 = vlaneseq
        %v1899 = vshrl.u32 %v1898, 7
        %v1900 = vsub.s32 %v1897, %v1899
        %v1901 = vrot.slane %v1893, %v1900
        %v1903 = vunpack.c.l.s4 1934713408
        %v1904 = vunpack.c.0.s8 %v1903
        %v1905 = vlaneseq
        %v1906 = vshrl.u32 %v1905, 7
        %v1907 = vsub.s32 %v1904, %v1906
        %v1908 = vrot.slane %v1894, %v1907
        %v1909 = vcombine.low %v1853, %v1885
        %v1910 = vcombine.high %v1853, %v1885
        %v1911 = vcombine.low %v1860, %v1892
        %v1912 = vcombine.high %v1860, %v1892
        %v1913 = vcombine.low %v1869, %v1901
        %v1914 = vcombine.high %v1869, %v1901
        %v1915 = vcombine.low %v1876, %v1908
        %v1916 = vcombine.high %v1876, %v1908
        %v1917 = vcombine.low %v1394, %v1752
        %v1918 = vcombine.high %v1394, %v1752
        %v1920 = vunpack.c.l.s4 1983009808
        %v1921 = vunpack.c.0.s8 %v1920
        %v1922 = vlaneseq
        %v1923 = vshrl.u32 %v1922, 7
        %v1924 = vsub.s32 %v1921, %v1923
        %v1925 = vrot.slane %v1917, %v1924
        %v1927 = vunpack.c.l.s4 1983009808
        %v1928 = vunpack.c.0.s8 %v1927
        %v1929 = vlaneseq
        %v1930 = vshrl.u32 %v1929, 7
        %v1931 = vsub.s32 %v1928, %v1930
        %v1932 = vrot.slane %v1918, %v1931
        %v1933 = vcombine.low %v1746, %v1758
        %v1934 = vcombine.high %v1746, %v1758
        %v1936 = vunpack.c.l.s4 1983009808
        %v1937 = vunpack.c.0.s8 %v1936
        %v1938 = vlaneseq
        %v1939 = vshrl.u32 %v1938, 7
        %v1940 = vsub.s32 %v1937, %v1939
        %v1941 = vrot.slane %v1933, %v1940
        %v1943 = vunpack.c.l.s4 1983009808
        %v1944 = vunpack.c.0.s8 %v1943
        %v1945 = vlaneseq
        %v1946 = vshrl.u32 %v1945, 7
        %v1947 = vsub.s32 %v1944, %v1946
        %v1948 = vrot.slane %v1934, %v1947
        %v1949 = vcombine.low %v1396, %v1772
        %v1950 = vcombine.high %v1396, %v1772
        %v1952 = vunpack.c.l.s4 1983009808
        %v1953 = vunpack.c.0.s8 %v1952
        %v1954 = vlaneseq
        %v1955 = vshrl.u32 %v1954, 7
        %v1956 = vsub.s32 %v1953, %v1955
        %v1957 = vrot.slane %v1949, %v1956
        %v1959 = vunpack.c.l.s4 1983009808
        %v1960 = vunpack.c.0.s8 %v1959
        %v1961 = vlaneseq
        %v1962 = vshrl.u32 %v1961, 7
        %v1963 = vsub.s32 %v1960, %v1962
        %v1964 = vrot.slane %v1950, %v1963
        %v1965 = vcombine.low %v1766, %v1778
        %v1966 = vcombine.high %v1766, %v1778
        %v1968 = vunpack.c.l.s4 1983009808
        %v1969 = vunpack.c.0.s8 %v1968
        %v1970 = vlaneseq
        %v1971 = vshrl.u32 %v1970, 7
        %v1972 = vsub.s32 %v1969, %v1971
        %v1973 = vrot.slane %v1965, %v1972
        %v1975 = vunpack.c.l.s4 1983009808
        %v1976 = vunpack.c.0.s8 %v1975
        %v1977 = vlaneseq
        %v1978 = vshrl.u32 %v1977, 7
        %v1979 = vsub.s32 %v1976, %v1978
        %v1980 = vrot.slane %v1966, %v1979
        %v1981 = vcombine.low %v1925, %v1941
        %v1982 = vcombine.high %v1925, %v1941
        %v1984 = vunpack.c.l.s4 1934713408
        %v1985 = vunpack.c.0.s8 %v1984
        %v1986 = vlaneseq
        %v1987 = vshrl.u32 %v1986, 7
        %v1988 = vsub.s32 %v1985, %v1987
        %v1989 = vrot.slane %v1981, %v1988
        %v1991 = vunpack.c.l.s4 1934713408
        %v1992 = vunpack.c.0.s8 %v1991
        %v1993 = vlaneseq
        %v1994 = vshrl.u32 %v1993, 7
        %v1995 = vsub.s32 %v1992, %v1994
        %v1996 = vrot.slane %v1982, %v1995
        %v1997 = vcombine.low %v1932, %v1948
        %v1998 = vcombine.high %v1932, %v1948
        %v2000 = vunpack.c.l.s4 1934713408
        %v2001 = vunpack.c.0.s8 %v2000
        %v2002 = vlaneseq
        %v2003 = vshrl.u32 %v2002, 7
        %v2004 = vsub.s32 %v2001, %v2003
        %v2005 = vrot.slane %v1997, %v2004
        %v2007 = vunpack.c.l.s4 1934713408
        %v2008 = vunpack.c.0.s8 %v2007
        %v2009 = vlaneseq
        %v2010 = vshrl.u32 %v2009, 7
        %v2011 = vsub.s32 %v2008, %v2010
        %v2012 = vrot.slane %v1998, %v2011
        %v2013 = vcombine.low %v1957, %v1973
        %v2014 = vcombine.high %v1957, %v1973
        %v2016 = vunpack.c.l.s4 1934713408
        %v2017 = vunpack.c.0.s8 %v2016
        %v2018 = vlaneseq
        %v2019 = vshrl.u32 %v2018, 7
        %v2020 = vsub.s32 %v2017, %v2019
        %v2021 = vrot.slane %v2013, %v2020
        %v2023 = vunpack.c.l.s4 1934713408
        %v2024 = vunpack.c.0.s8 %v2023
        %v2025 = vlaneseq
        %v2026 = vshrl.u32 %v2025, 7
        %v2027 = vsub.s32 %v2024, %v2026
        %v2028 = vrot.slane %v2014, %v2027
        %v2029 = vcombine.low %v1964, %v1980
        %v2030 = vcombine.high %v1964, %v1980
        %v2032 = vunpack.c.l.s4 1934713408
        %v2033 = vunpack.c.0.s8 %v2032
        %v2034 = vlaneseq
        %v2035 = vshrl.u32 %v2034, 7
        %v2036 = vsub.s32 %v2033, %v2035
        %v2037 = vrot.slane %v2029, %v2036
        %v2039 = vunpack.c.l.s4 1934713408
        %v2040 = vunpack.c.0.s8 %v2039
        %v2041 = vlaneseq
        %v2042 = vshrl.u32 %v2041, 7
        %v2043 = vsub.s32 %v2040, %v2042
        %v2044 = vrot.slane %v2030, %v2043
        %v2045 = vcombine.low %v1989, %v2021
        %v2046 = vcombine.high %v1989, %v2021
        %v2047 = vcombine.low %v1996, %v2028
        %v2048 = vcombine.high %v1996, %v2028
        %v2049 = vcombine.low %v2005, %v2037
        %v2050 = vcombine.high %v2005, %v2037
        %v2051 = vcombine.low %v2012, %v2044
        %v2052 = vcombine.high %v2012, %v2044
        %v2053 = vcombine.low %v1909, %v1911
        %v2054 = vcombine.high %v1909, %v1911
        %v2056 = vunpack.c.l.s4 1983009808
        %v2057 = vunpack.c.0.s8 %v2056
        %v2058 = vlaneseq
        %v2059 = vshrl.u32 %v2058, 7
        %v2060 = vsub.s32 %v2057, %v2059
        %v2061 = vrot.slane %v2053, %v2060
        %v2063 = vunpack.c.l.s4 1983009808
        %v2064 = vunpack.c.0.s8 %v2063
        %v2065 = vlaneseq
        %v2066 = vshrl.u32 %v2065, 7
        %v2067 = vsub.s32 %v2064, %v2066
        %v2068 = vrot.slane %v2054, %v2067
        %v2069 = vcombine.low %v1910, %v1912
        %v2070 = vcombine.high %v1910, %v1912
        %v2072 = vunpack.c.l.s4 1983009808
        %v2073 = vunpack.c.0.s8 %v2072
        %v2074 = vlaneseq
        %v2075 = vshrl.u32 %v2074, 7
        %v2076 = vsub.s32 %v2073, %v2075
        %v2077 = vrot.slane %v2069, %v2076
        %v2079 = vunpack.c.l.s4 1983009808
        %v2080 = vunpack.c.0.s8 %v2079
        %v2081 = vlaneseq
        %v2082 = vshrl.u32 %v2081, 7
        %v2083 = vsub.s32 %v2080, %v2082
        %v2084 = vrot.slane %v2070, %v2083
        %v2085 = vcombine.low %v1913, %v1915
        %v2086 = vcombine.high %v1913, %v1915
        %v2088 = vunpack.c.l.s4 1983009808
        %v2089 = vunpack.c.0.s8 %v2088
        %v2090 = vlaneseq
        %v2091 = vshrl.u32 %v2090, 7
        %v2092 = vsub.s32 %v2089, %v2091
        %v2093 = vrot.slane %v2085, %v2092
        %v2095 = vunpack.c.l.s4 1983009808
        %v2096 = vunpack.c.0.s8 %v2095
        %v2097 = vlaneseq
        %v2098 = vshrl.u32 %v2097, 7
        %v2099 = vsub.s32 %v2096, %v2098
        %v2100 = vrot.slane %v2086, %v2099
        %v2101 = vcombine.low %v1914, %v1916
        %v2102 = vcombine.high %v1914, %v1916
        %v2104 = vunpack.c.l.s4 1983009808
        %v2105 = vunpack.c.0.s8 %v2104
        %v2106 = vlaneseq
        %v2107 = vshrl.u32 %v2106, 7
        %v2108 = vsub.s32 %v2105, %v2107
        %v2109 = vrot.slane %v2101, %v2108
        %v2111 = vunpack.c.l.s4 1983009808
        %v2112 = vunpack.c.0.s8 %v2111
        %v2113 = vlaneseq
        %v2114 = vshrl.u32 %v2113, 7
        %v2115 = vsub.s32 %v2112, %v2114
        %v2116 = vrot.slane %v2102, %v2115
        %v2117 = vcombine.low %v2061, %v2077
        %v2118 = vcombine.high %v2061, %v2077
        %v2120 = vunpack.c.l.s4 1934713408
        %v2121 = vunpack.c.0.s8 %v2120
        %v2122 = vlaneseq
        %v2123 = vshrl.u32 %v2122, 7
        %v2124 = vsub.s32 %v2121, %v2123
        %v2125 = vrot.slane %v2117, %v2124
        %v2127 = vunpack.c.l.s4 1934713408
        %v2128 = vunpack.c.0.s8 %v2127
        %v2129 = vlaneseq
        %v2130 = vshrl.u32 %v2129, 7
        %v2131 = vsub.s32 %v2128, %v2130
        %v2132 = vrot.slane %v2118, %v2131
        %v2133 = vcombine.low %v2068, %v2084
        %v2134 = vcombine.high %v2068, %v2084
        %v2136 = vunpack.c.l.s4 1934713408
        %v2137 = vunpack.c.0.s8 %v2136
        %v2138 = vlaneseq
        %v2139 = vshrl.u32 %v2138, 7
        %v2140 = vsub.s32 %v2137, %v2139
        %v2141 = vrot.slane %v2133, %v2140
        %v2143 = vunpack.c.l.s4 1934713408
        %v2144 = vunpack.c.0.s8 %v2143
        %v2145 = vlaneseq
        %v2146 = vshrl.u32 %v2145, 7
        %v2147 = vsub.s32 %v2144, %v2146
        %v2148 = vrot.slane %v2134, %v2147
        %v2149 = vcombine.low %v2093, %v2109
        %v2150 = vcombine.high %v2093, %v2109
        %v2152 = vunpack.c.l.s4 1934713408
        %v2153 = vunpack.c.0.s8 %v2152
        %v2154 = vlaneseq
        %v2155 = vshrl.u32 %v2154, 7
        %v2156 = vsub.s32 %v2153, %v2155
        %v2157 = vrot.slane %v2149, %v2156
        %v2159 = vunpack.c.l.s4 1934713408
        %v2160 = vunpack.c.0.s8 %v2159
        %v2161 = vlaneseq
        %v2162 = vshrl.u32 %v2161, 7
        %v2163 = vsub.s32 %v2160, %v2162
        %v2164 = vrot.slane %v2150, %v2163
        %v2165 = vcombine.low %v2100, %v2116
        %v2166 = vcombine.high %v2100, %v2116
        %v2168 = vunpack.c.l.s4 1934713408
        %v2169 = vunpack.c.0.s8 %v2168
        %v2170 = vlaneseq
        %v2171 = vshrl.u32 %v2170, 7
        %v2172 = vsub.s32 %v2169, %v2171
        %v2173 = vrot.slane %v2165, %v2172
        %v2175 = vunpack.c.l.s4 1934713408
        %v2176 = vunpack.c.0.s8 %v2175
        %v2177 = vlaneseq
        %v2178 = vshrl.u32 %v2177, 7
        %v2179 = vsub.s32 %v2176, %v2178
        %v2180 = vrot.slane %v2166, %v2179
        %v2181 = vcombine.low %v2125, %v2157
        %v2182 = vcombine.high %v2125, %v2157
        %v2183 = vcombine.low %v2132, %v2164
        %v2184 = vcombine.high %v2132, %v2164
        %v2185 = vcombine.low %v2141, %v2173
        %v2186 = vcombine.high %v2141, %v2173
        %v2187 = vcombine.low %v2148, %v2180
        %v2188 = vcombine.high %v2148, %v2180
        %v2189 = vcombine.low %v2045, %v2047
        %v2190 = vcombine.high %v2045, %v2047
        %v2192 = vunpack.c.l.s4 1983009808
        %v2193 = vunpack.c.0.s8 %v2192
        %v2194 = vlaneseq
        %v2195 = vshrl.u32 %v2194, 7
        %v2196 = vsub.s32 %v2193, %v2195
        %v2197 = vrot.slane %v2189, %v2196
        %v2199 = vunpack.c.l.s4 1983009808
        %v2200 = vunpack.c.0.s8 %v2199
        %v2201 = vlaneseq
        %v2202 = vshrl.u32 %v2201, 7
        %v2203 = vsub.s32 %v2200, %v2202
        %v2204 = vrot.slane %v2190, %v2203
        %v2205 = vcombine.low %v2046, %v2048
        %v2206 = vcombine.high %v2046, %v2048
        %v2208 = vunpack.c.l.s4 1983009808
        %v2209 = vunpack.c.0.s8 %v2208
        %v2210 = vlaneseq
        %v2211 = vshrl.u32 %v2210, 7
        %v2212 = vsub.s32 %v2209, %v2211
        %v2213 = vrot.slane %v2205, %v2212
        %v2215 = vunpack.c.l.s4 1983009808
        %v2216 = vunpack.c.0.s8 %v2215
        %v2217 = vlaneseq
        %v2218 = vshrl.u32 %v2217, 7
        %v2219 = vsub.s32 %v2216, %v2218
        %v2220 = vrot.slane %v2206, %v2219
        %v2221 = vcombine.low %v2049, %v2051
        %v2222 = vcombine.high %v2049, %v2051
        %v2224 = vunpack.c.l.s4 1983009808
        %v2225 = vunpack.c.0.s8 %v2224
        %v2226 = vlaneseq
        %v2227 = vshrl.u32 %v2226, 7
        %v2228 = vsub.s32 %v2225, %v2227
        %v2229 = vrot.slane %v2221, %v2228
        %v2231 = vunpack.c.l.s4 1983009808
        %v2232 = vunpack.c.0.s8 %v2231
        %v2233 = vlaneseq
        %v2234 = vshrl.u32 %v2233, 7
        %v2235 = vsub.s32 %v2232, %v2234
        %v2236 = vrot.slane %v2222, %v2235
        %v2237 = vcombine.low %v2050, %v2052
        %v2238 = vcombine.high %v2050, %v2052
        %v2240 = vunpack.c.l.s4 1983009808
        %v2241 = vunpack.c.0.s8 %v2240
        %v2242 = vlaneseq
        %v2243 = vshrl.u32 %v2242, 7
        %v2244 = vsub.s32 %v2241, %v2243
        %v2245 = vrot.slane %v2237, %v2244
        %v2247 = vunpack.c.l.s4 1983009808
        %v2248 = vunpack.c.0.s8 %v2247
        %v2249 = vlaneseq
        %v2250 = vshrl.u32 %v2249, 7
        %v2251 = vsub.s32 %v2248, %v2250
        %v2252 = vrot.slane %v2238, %v2251
        %v2253 = vcombine.low %v2197, %v2213
        %v2254 = vcombine.high %v2197, %v2213
        %v2256 = vunpack.c.l.s4 1934713408
        %v2257 = vunpack.c.0.s8 %v2256
        %v2258 = vlaneseq
        %v2259 = vshrl.u32 %v2258, 7
        %v2260 = vsub.s32 %v2257, %v2259
        %v2261 = vrot.slane %v2253, %v2260
        %v2263 = vunpack.c.l.s4 1934713408
        %v2264 = vunpack.c.0.s8 %v2263
        %v2265 = vlaneseq
        %v2266 = vshrl.u32 %v2265, 7
        %v2267 = vsub.s32 %v2264, %v2266
        %v2268 = vrot.slane %v2254, %v2267
        %v2269 = vcombine.low %v2204, %v2220
        %v2270 = vcombine.high %v2204, %v2220
        %v2272 = vunpack.c.l.s4 1934713408
        %v2273 = vunpack.c.0.s8 %v2272
        %v2274 = vlaneseq
        %v2275 = vshrl.u32 %v2274, 7
        %v2276 = vsub.s32 %v2273, %v2275
        %v2277 = vrot.slane %v2269, %v2276
        %v2279 = vunpack.c.l.s4 1934713408
        %v2280 = vunpack.c.0.s8 %v2279
        %v2281 = vlaneseq
        %v2282 = vshrl.u32 %v2281, 7
        %v2283 = vsub.s32 %v2280, %v2282
        %v2284 = vrot.slane %v2270, %v2283
        %v2285 = vcombine.low %v2229, %v2245
        %v2286 = vcombine.high %v2229, %v2245
        %v2288 = vunpack.c.l.s4 1934713408
        %v2289 = vunpack.c.0.s8 %v2288
        %v2290 = vlaneseq
        %v2291 = vshrl.u32 %v2290, 7
        %v2292 = vsub.s32 %v2289, %v2291
        %v2293 = vrot.slane %v2285, %v2292
        %v2295 = vunpack.c.l.s4 1934713408
        %v2296 = vunpack.c.0.s8 %v2295
        %v2297 = vlaneseq
        %v2298 = vshrl.u32 %v2297, 7
        %v2299 = vsub.s32 %v2296, %v2298
        %v2300 = vrot.slane %v2286, %v2299
        %v2301 = vcombine.low %v2236, %v2252
        %v2302 = vcombine.high %v2236, %v2252
        %v2304 = vunpack.c.l.s4 1934713408
        %v2305 = vunpack.c.0.s8 %v2304
        %v2306 = vlaneseq
        %v2307 = vshrl.u32 %v2306, 7
        %v2308 = vsub.s32 %v2305, %v2307
        %v2309 = vrot.slane %v2301, %v2308
        %v2311 = vunpack.c.l.s4 1934713408
        %v2312 = vunpack.c.0.s8 %v2311
        %v2313 = vlaneseq
        %v2314 = vshrl.u32 %v2313, 7
        %v2315 = vsub.s32 %v2312, %v2314
        %v2316 = vrot.slane %v2302, %v2315
        %v2317 = vcombine.low %v2261, %v2293
        %v2318 = vcombine.high %v2261, %v2293
        %v2319 = vcombine.low %v2268, %v2300
        %v2320 = vcombine.high %v2268, %v2300
        %v2321 = vcombine.low %v2277, %v2309
        %v2322 = vcombine.high %v2277, %v2309
        %v2323 = vcombine.low %v2284, %v2316
        %v2324 = vcombine.high %v2284, %v2316
        %v2325 = vpack.c.bf16 %v2317, %v2181
        %v2326 = vpack.c.bf16 %v2318, %v2182
        %v2327 = vpack.c.bf16 %v2319, %v2183
        %v2328 = vpack.c.bf16 %v2320, %v2184
        %v2329 = vpack.c.bf16 %v2321, %v2185
        %v2330 = vpack.c.bf16 %v2322, %v2186
        %v2331 = vpack.c.bf16 %v2323, %v2187
        %v2332 = vpack.c.bf16 %v2324, %v2188
        %2335 = vrot.lane.b32.xlu0 %v1433, 96
        %v2336 = vpop.permute.xlu0 %2335
        %2337 = vrot.lane.b32.xlu0 %v1437, 96
        %v2338 = vpop.permute.xlu0 %2337
        %2341 = vrot.lane.b32.xlu0 %v1433, 64
        %v2342 = vpop.permute.xlu0 %2341
        %2343 = vrot.lane.b32.xlu0 %v1437, 64
        %v2344 = vpop.permute.xlu0 %2343
        %2347 = vrot.lane.b32.xlu0 %v1433, 32
        %v2348 = vpop.permute.xlu0 %2347
        %2349 = vrot.lane.b32.xlu0 %v1437, 32
        %v2350 = vpop.permute.xlu0 %2349
        %2355 = vrot.lane.b32.xlu0 %v1435, 96
        %v2356 = vpop.permute.xlu0 %2355
        %2357 = vrot.lane.b32.xlu0 %v1439, 96
        %v2358 = vpop.permute.xlu0 %2357
        %2361 = vrot.lane.b32.xlu0 %v1435, 64
        %v2362 = vpop.permute.xlu0 %2361
        %2363 = vrot.lane.b32.xlu0 %v1439, 64
        %v2364 = vpop.permute.xlu0 %2363
        %2367 = vrot.lane.b32.xlu0 %v1435, 32
        %v2368 = vpop.permute.xlu0 %2367
        %2369 = vrot.lane.b32.xlu0 %v1439, 32
        %v2370 = vpop.permute.xlu0 %2369
        %v2373 = vcombine.low %v1433, %v2342
        %v2374 = vcombine.high %v1433, %v2342
        %v2376 = vunpack.c.l.s4 1983009808
        %v2377 = vunpack.c.0.s8 %v2376
        %v2378 = vlaneseq
        %v2379 = vshrl.u32 %v2378, 7
        %v2380 = vsub.s32 %v2377, %v2379
        %v2381 = vrot.slane %v2373, %v2380
        %v2383 = vunpack.c.l.s4 1983009808
        %v2384 = vunpack.c.0.s8 %v2383
        %v2385 = vlaneseq
        %v2386 = vshrl.u32 %v2385, 7
        %v2387 = vsub.s32 %v2384, %v2386
        %v2388 = vrot.slane %v2374, %v2387
        %v2389 = vcombine.low %v2336, %v2348
        %v2390 = vcombine.high %v2336, %v2348
        %v2392 = vunpack.c.l.s4 1983009808
        %v2393 = vunpack.c.0.s8 %v2392
        %v2394 = vlaneseq
        %v2395 = vshrl.u32 %v2394, 7
        %v2396 = vsub.s32 %v2393, %v2395
        %v2397 = vrot.slane %v2389, %v2396
        %v2399 = vunpack.c.l.s4 1983009808
        %v2400 = vunpack.c.0.s8 %v2399
        %v2401 = vlaneseq
        %v2402 = vshrl.u32 %v2401, 7
        %v2403 = vsub.s32 %v2400, %v2402
        %v2404 = vrot.slane %v2390, %v2403
        %v2405 = vcombine.low %v1435, %v2362
        %v2406 = vcombine.high %v1435, %v2362
        %v2408 = vunpack.c.l.s4 1983009808
        %v2409 = vunpack.c.0.s8 %v2408
        %v2410 = vlaneseq
        %v2411 = vshrl.u32 %v2410, 7
        %v2412 = vsub.s32 %v2409, %v2411
        %v2413 = vrot.slane %v2405, %v2412
        %v2415 = vunpack.c.l.s4 1983009808
        %v2416 = vunpack.c.0.s8 %v2415
        %v2417 = vlaneseq
        %v2418 = vshrl.u32 %v2417, 7
        %v2419 = vsub.s32 %v2416, %v2418
        %v2420 = vrot.slane %v2406, %v2419
        %v2421 = vcombine.low %v2356, %v2368
        %v2422 = vcombine.high %v2356, %v2368
        %v2424 = vunpack.c.l.s4 1983009808
        %v2425 = vunpack.c.0.s8 %v2424
        %v2426 = vlaneseq
        %v2427 = vshrl.u32 %v2426, 7
        %v2428 = vsub.s32 %v2425, %v2427
        %v2429 = vrot.slane %v2421, %v2428
        %v2431 = vunpack.c.l.s4 1983009808
        %v2432 = vunpack.c.0.s8 %v2431
        %v2433 = vlaneseq
        %v2434 = vshrl.u32 %v2433, 7
        %v2435 = vsub.s32 %v2432, %v2434
        %v2436 = vrot.slane %v2422, %v2435
        %v2437 = vcombine.low %v2381, %v2397
        %v2438 = vcombine.high %v2381, %v2397
        %v2440 = vunpack.c.l.s4 1934713408
        %v2441 = vunpack.c.0.s8 %v2440
        %v2442 = vlaneseq
        %v2443 = vshrl.u32 %v2442, 7
        %v2444 = vsub.s32 %v2441, %v2443
        %v2445 = vrot.slane %v2437, %v2444
        %v2447 = vunpack.c.l.s4 1934713408
        %v2448 = vunpack.c.0.s8 %v2447
        %v2449 = vlaneseq
        %v2450 = vshrl.u32 %v2449, 7
        %v2451 = vsub.s32 %v2448, %v2450
        %v2452 = vrot.slane %v2438, %v2451
        %v2453 = vcombine.low %v2388, %v2404
        %v2454 = vcombine.high %v2388, %v2404
        %v2456 = vunpack.c.l.s4 1934713408
        %v2457 = vunpack.c.0.s8 %v2456
        %v2458 = vlaneseq
        %v2459 = vshrl.u32 %v2458, 7
        %v2460 = vsub.s32 %v2457, %v2459
        %v2461 = vrot.slane %v2453, %v2460
        %v2463 = vunpack.c.l.s4 1934713408
        %v2464 = vunpack.c.0.s8 %v2463
        %v2465 = vlaneseq
        %v2466 = vshrl.u32 %v2465, 7
        %v2467 = vsub.s32 %v2464, %v2466
        %v2468 = vrot.slane %v2454, %v2467
        %v2469 = vcombine.low %v2413, %v2429
        %v2470 = vcombine.high %v2413, %v2429
        %v2472 = vunpack.c.l.s4 1934713408
        %v2473 = vunpack.c.0.s8 %v2472
        %v2474 = vlaneseq
        %v2475 = vshrl.u32 %v2474, 7
        %v2476 = vsub.s32 %v2473, %v2475
        %v2477 = vrot.slane %v2469, %v2476
        %v2479 = vunpack.c.l.s4 1934713408
        %v2480 = vunpack.c.0.s8 %v2479
        %v2481 = vlaneseq
        %v2482 = vshrl.u32 %v2481, 7
        %v2483 = vsub.s32 %v2480, %v2482
        %v2484 = vrot.slane %v2470, %v2483
        %v2485 = vcombine.low %v2420, %v2436
        %v2486 = vcombine.high %v2420, %v2436
        %v2488 = vunpack.c.l.s4 1934713408
        %v2489 = vunpack.c.0.s8 %v2488
        %v2490 = vlaneseq
        %v2491 = vshrl.u32 %v2490, 7
        %v2492 = vsub.s32 %v2489, %v2491
        %v2493 = vrot.slane %v2485, %v2492
        %v2495 = vunpack.c.l.s4 1934713408
        %v2496 = vunpack.c.0.s8 %v2495
        %v2497 = vlaneseq
        %v2498 = vshrl.u32 %v2497, 7
        %v2499 = vsub.s32 %v2496, %v2498
        %v2500 = vrot.slane %v2486, %v2499
        %v2501 = vcombine.low %v2445, %v2477
        %v2502 = vcombine.high %v2445, %v2477
        %v2503 = vcombine.low %v2452, %v2484
        %v2504 = vcombine.high %v2452, %v2484
        %v2505 = vcombine.low %v2461, %v2493
        %v2506 = vcombine.high %v2461, %v2493
        %v2507 = vcombine.low %v2468, %v2500
        %v2508 = vcombine.high %v2468, %v2500
        %v2509 = vcombine.low %v1437, %v2344
        %v2510 = vcombine.high %v1437, %v2344
        %v2512 = vunpack.c.l.s4 1983009808
        %v2513 = vunpack.c.0.s8 %v2512
        %v2514 = vlaneseq
        %v2515 = vshrl.u32 %v2514, 7
        %v2516 = vsub.s32 %v2513, %v2515
        %v2517 = vrot.slane %v2509, %v2516
        %v2519 = vunpack.c.l.s4 1983009808
        %v2520 = vunpack.c.0.s8 %v2519
        %v2521 = vlaneseq
        %v2522 = vshrl.u32 %v2521, 7
        %v2523 = vsub.s32 %v2520, %v2522
        %v2524 = vrot.slane %v2510, %v2523
        %v2525 = vcombine.low %v2338, %v2350
        %v2526 = vcombine.high %v2338, %v2350
        %v2528 = vunpack.c.l.s4 1983009808
        %v2529 = vunpack.c.0.s8 %v2528
        %v2530 = vlaneseq
        %v2531 = vshrl.u32 %v2530, 7
        %v2532 = vsub.s32 %v2529, %v2531
        %v2533 = vrot.slane %v2525, %v2532
        %v2535 = vunpack.c.l.s4 1983009808
        %v2536 = vunpack.c.0.s8 %v2535
        %v2537 = vlaneseq
        %v2538 = vshrl.u32 %v2537, 7
        %v2539 = vsub.s32 %v2536, %v2538
        %v2540 = vrot.slane %v2526, %v2539
        %v2541 = vcombine.low %v1439, %v2364
        %v2542 = vcombine.high %v1439, %v2364
        %v2544 = vunpack.c.l.s4 1983009808
        %v2545 = vunpack.c.0.s8 %v2544
        %v2546 = vlaneseq
        %v2547 = vshrl.u32 %v2546, 7
        %v2548 = vsub.s32 %v2545, %v2547
        %v2549 = vrot.slane %v2541, %v2548
        %v2551 = vunpack.c.l.s4 1983009808
        %v2552 = vunpack.c.0.s8 %v2551
        %v2553 = vlaneseq
        %v2554 = vshrl.u32 %v2553, 7
        %v2555 = vsub.s32 %v2552, %v2554
        %v2556 = vrot.slane %v2542, %v2555
        %v2557 = vcombine.low %v2358, %v2370
        %v2558 = vcombine.high %v2358, %v2370
        %v2560 = vunpack.c.l.s4 1983009808
        %v2561 = vunpack.c.0.s8 %v2560
        %v2562 = vlaneseq
        %v2563 = vshrl.u32 %v2562, 7
        %v2564 = vsub.s32 %v2561, %v2563
        %v2565 = vrot.slane %v2557, %v2564
        %v2567 = vunpack.c.l.s4 1983009808
        %v2568 = vunpack.c.0.s8 %v2567
        %v2569 = vlaneseq
        %v2570 = vshrl.u32 %v2569, 7
        %v2571 = vsub.s32 %v2568, %v2570
        %v2572 = vrot.slane %v2558, %v2571
        %v2573 = vcombine.low %v2517, %v2533
        %v2574 = vcombine.high %v2517, %v2533
        %v2576 = vunpack.c.l.s4 1934713408
        %v2577 = vunpack.c.0.s8 %v2576
        %v2578 = vlaneseq
        %v2579 = vshrl.u32 %v2578, 7
        %v2580 = vsub.s32 %v2577, %v2579
        %v2581 = vrot.slane %v2573, %v2580
        %v2583 = vunpack.c.l.s4 1934713408
        %v2584 = vunpack.c.0.s8 %v2583
        %v2585 = vlaneseq
        %v2586 = vshrl.u32 %v2585, 7
        %v2587 = vsub.s32 %v2584, %v2586
        %v2588 = vrot.slane %v2574, %v2587
        %v2589 = vcombine.low %v2524, %v2540
        %v2590 = vcombine.high %v2524, %v2540
        %v2592 = vunpack.c.l.s4 1934713408
        %v2593 = vunpack.c.0.s8 %v2592
        %v2594 = vlaneseq
        %v2595 = vshrl.u32 %v2594, 7
        %v2596 = vsub.s32 %v2593, %v2595
        %v2597 = vrot.slane %v2589, %v2596
        %v2599 = vunpack.c.l.s4 1934713408
        %v2600 = vunpack.c.0.s8 %v2599
        %v2601 = vlaneseq
        %v2602 = vshrl.u32 %v2601, 7
        %v2603 = vsub.s32 %v2600, %v2602
        %v2604 = vrot.slane %v2590, %v2603
        %v2605 = vcombine.low %v2549, %v2565
        %v2606 = vcombine.high %v2549, %v2565
        %v2608 = vunpack.c.l.s4 1934713408
        %v2609 = vunpack.c.0.s8 %v2608
        %v2610 = vlaneseq
        %v2611 = vshrl.u32 %v2610, 7
        %v2612 = vsub.s32 %v2609, %v2611
        %v2613 = vrot.slane %v2605, %v2612
        %v2615 = vunpack.c.l.s4 1934713408
        %v2616 = vunpack.c.0.s8 %v2615
        %v2617 = vlaneseq
        %v2618 = vshrl.u32 %v2617, 7
        %v2619 = vsub.s32 %v2616, %v2618
        %v2620 = vrot.slane %v2606, %v2619
        %v2621 = vcombine.low %v2556, %v2572
        %v2622 = vcombine.high %v2556, %v2572
        %v2624 = vunpack.c.l.s4 1934713408
        %v2625 = vunpack.c.0.s8 %v2624
        %v2626 = vlaneseq
        %v2627 = vshrl.u32 %v2626, 7
        %v2628 = vsub.s32 %v2625, %v2627
        %v2629 = vrot.slane %v2621, %v2628
        %v2631 = vunpack.c.l.s4 1934713408
        %v2632 = vunpack.c.0.s8 %v2631
        %v2633 = vlaneseq
        %v2634 = vshrl.u32 %v2633, 7
        %v2635 = vsub.s32 %v2632, %v2634
        %v2636 = vrot.slane %v2622, %v2635
        %v2637 = vcombine.low %v2581, %v2613
        %v2638 = vcombine.high %v2581, %v2613
        %v2639 = vcombine.low %v2588, %v2620
        %v2640 = vcombine.high %v2588, %v2620
        %v2641 = vcombine.low %v2597, %v2629
        %v2642 = vcombine.high %v2597, %v2629
        %v2643 = vcombine.low %v2604, %v2636
        %v2644 = vcombine.high %v2604, %v2636
        %v2645 = vcombine.low %v2501, %v2503
        %v2646 = vcombine.high %v2501, %v2503
        %v2648 = vunpack.c.l.s4 1983009808
        %v2649 = vunpack.c.0.s8 %v2648
        %v2650 = vlaneseq
        %v2651 = vshrl.u32 %v2650, 7
        %v2652 = vsub.s32 %v2649, %v2651
        %v2653 = vrot.slane %v2645, %v2652
        %v2655 = vunpack.c.l.s4 1983009808
        %v2656 = vunpack.c.0.s8 %v2655
        %v2657 = vlaneseq
        %v2658 = vshrl.u32 %v2657, 7
        %v2659 = vsub.s32 %v2656, %v2658
        %v2660 = vrot.slane %v2646, %v2659
        %v2661 = vcombine.low %v2502, %v2504
        %v2662 = vcombine.high %v2502, %v2504
        %v2664 = vunpack.c.l.s4 1983009808
        %v2665 = vunpack.c.0.s8 %v2664
        %v2666 = vlaneseq
        %v2667 = vshrl.u32 %v2666, 7
        %v2668 = vsub.s32 %v2665, %v2667
        %v2669 = vrot.slane %v2661, %v2668
        %v2671 = vunpack.c.l.s4 1983009808
        %v2672 = vunpack.c.0.s8 %v2671
        %v2673 = vlaneseq
        %v2674 = vshrl.u32 %v2673, 7
        %v2675 = vsub.s32 %v2672, %v2674
        %v2676 = vrot.slane %v2662, %v2675
        %v2677 = vcombine.low %v2505, %v2507
        %v2678 = vcombine.high %v2505, %v2507
        %v2680 = vunpack.c.l.s4 1983009808
        %v2681 = vunpack.c.0.s8 %v2680
        %v2682 = vlaneseq
        %v2683 = vshrl.u32 %v2682, 7
        %v2684 = vsub.s32 %v2681, %v2683
        %v2685 = vrot.slane %v2677, %v2684
        %v2687 = vunpack.c.l.s4 1983009808
        %v2688 = vunpack.c.0.s8 %v2687
        %v2689 = vlaneseq
        %v2690 = vshrl.u32 %v2689, 7
        %v2691 = vsub.s32 %v2688, %v2690
        %v2692 = vrot.slane %v2678, %v2691
        %v2693 = vcombine.low %v2506, %v2508
        %v2694 = vcombine.high %v2506, %v2508
        %v2696 = vunpack.c.l.s4 1983009808
        %v2697 = vunpack.c.0.s8 %v2696
        %v2698 = vlaneseq
        %v2699 = vshrl.u32 %v2698, 7
        %v2700 = vsub.s32 %v2697, %v2699
        %v2701 = vrot.slane %v2693, %v2700
        %v2703 = vunpack.c.l.s4 1983009808
        %v2704 = vunpack.c.0.s8 %v2703
        %v2705 = vlaneseq
        %v2706 = vshrl.u32 %v2705, 7
        %v2707 = vsub.s32 %v2704, %v2706
        %v2708 = vrot.slane %v2694, %v2707
        %v2709 = vcombine.low %v2653, %v2669
        %v2710 = vcombine.high %v2653, %v2669
        %v2712 = vunpack.c.l.s4 1934713408
        %v2713 = vunpack.c.0.s8 %v2712
        %v2714 = vlaneseq
        %v2715 = vshrl.u32 %v2714, 7
        %v2716 = vsub.s32 %v2713, %v2715
        %v2717 = vrot.slane %v2709, %v2716
        %v2719 = vunpack.c.l.s4 1934713408
        %v2720 = vunpack.c.0.s8 %v2719
        %v2721 = vlaneseq
        %v2722 = vshrl.u32 %v2721, 7
        %v2723 = vsub.s32 %v2720, %v2722
        %v2724 = vrot.slane %v2710, %v2723
        %v2725 = vcombine.low %v2660, %v2676
        %v2726 = vcombine.high %v2660, %v2676
        %v2728 = vunpack.c.l.s4 1934713408
        %v2729 = vunpack.c.0.s8 %v2728
        %v2730 = vlaneseq
        %v2731 = vshrl.u32 %v2730, 7
        %v2732 = vsub.s32 %v2729, %v2731
        %v2733 = vrot.slane %v2725, %v2732
        %v2735 = vunpack.c.l.s4 1934713408
        %v2736 = vunpack.c.0.s8 %v2735
        %v2737 = vlaneseq
        %v2738 = vshrl.u32 %v2737, 7
        %v2739 = vsub.s32 %v2736, %v2738
        %v2740 = vrot.slane %v2726, %v2739
        %v2741 = vcombine.low %v2685, %v2701
        %v2742 = vcombine.high %v2685, %v2701
        %v2744 = vunpack.c.l.s4 1934713408
        %v2745 = vunpack.c.0.s8 %v2744
        %v2746 = vlaneseq
        %v2747 = vshrl.u32 %v2746, 7
        %v2748 = vsub.s32 %v2745, %v2747
        %v2749 = vrot.slane %v2741, %v2748
        %v2751 = vunpack.c.l.s4 1934713408
        %v2752 = vunpack.c.0.s8 %v2751
        %v2753 = vlaneseq
        %v2754 = vshrl.u32 %v2753, 7
        %v2755 = vsub.s32 %v2752, %v2754
        %v2756 = vrot.slane %v2742, %v2755
        %v2757 = vcombine.low %v2692, %v2708
        %v2758 = vcombine.high %v2692, %v2708
        %v2760 = vunpack.c.l.s4 1934713408
        %v2761 = vunpack.c.0.s8 %v2760
        %v2762 = vlaneseq
        %v2763 = vshrl.u32 %v2762, 7
        %v2764 = vsub.s32 %v2761, %v2763
        %v2765 = vrot.slane %v2757, %v2764
        %v2767 = vunpack.c.l.s4 1934713408
        %v2768 = vunpack.c.0.s8 %v2767
        %v2769 = vlaneseq
        %v2770 = vshrl.u32 %v2769, 7
        %v2771 = vsub.s32 %v2768, %v2770
        %v2772 = vrot.slane %v2758, %v2771
        %v2773 = vcombine.low %v2717, %v2749
        %v2774 = vcombine.high %v2717, %v2749
        %v2775 = vcombine.low %v2724, %v2756
        %v2776 = vcombine.high %v2724, %v2756
        %v2777 = vcombine.low %v2733, %v2765
        %v2778 = vcombine.high %v2733, %v2765
        %v2779 = vcombine.low %v2740, %v2772
        %v2780 = vcombine.high %v2740, %v2772
        %v2781 = vcombine.low %v2637, %v2639
        %v2782 = vcombine.high %v2637, %v2639
        %v2784 = vunpack.c.l.s4 1983009808
        %v2785 = vunpack.c.0.s8 %v2784
        %v2786 = vlaneseq
        %v2787 = vshrl.u32 %v2786, 7
        %v2788 = vsub.s32 %v2785, %v2787
        %v2789 = vrot.slane %v2781, %v2788
        %v2791 = vunpack.c.l.s4 1983009808
        %v2792 = vunpack.c.0.s8 %v2791
        %v2793 = vlaneseq
        %v2794 = vshrl.u32 %v2793, 7
        %v2795 = vsub.s32 %v2792, %v2794
        %v2796 = vrot.slane %v2782, %v2795
        %v2797 = vcombine.low %v2638, %v2640
        %v2798 = vcombine.high %v2638, %v2640
        %v2800 = vunpack.c.l.s4 1983009808
        %v2801 = vunpack.c.0.s8 %v2800
        %v2802 = vlaneseq
        %v2803 = vshrl.u32 %v2802, 7
        %v2804 = vsub.s32 %v2801, %v2803
        %v2805 = vrot.slane %v2797, %v2804
        %v2807 = vunpack.c.l.s4 1983009808
        %v2808 = vunpack.c.0.s8 %v2807
        %v2809 = vlaneseq
        %v2810 = vshrl.u32 %v2809, 7
        %v2811 = vsub.s32 %v2808, %v2810
        %v2812 = vrot.slane %v2798, %v2811
        %v2813 = vcombine.low %v2641, %v2643
        %v2814 = vcombine.high %v2641, %v2643
        %v2816 = vunpack.c.l.s4 1983009808
        %v2817 = vunpack.c.0.s8 %v2816
        %v2818 = vlaneseq
        %v2819 = vshrl.u32 %v2818, 7
        %v2820 = vsub.s32 %v2817, %v2819
        %v2821 = vrot.slane %v2813, %v2820
        %v2823 = vunpack.c.l.s4 1983009808
        %v2824 = vunpack.c.0.s8 %v2823
        %v2825 = vlaneseq
        %v2826 = vshrl.u32 %v2825, 7
        %v2827 = vsub.s32 %v2824, %v2826
        %v2828 = vrot.slane %v2814, %v2827
        %v2829 = vcombine.low %v2642, %v2644
        %v2830 = vcombine.high %v2642, %v2644
        %v2832 = vunpack.c.l.s4 1983009808
        %v2833 = vunpack.c.0.s8 %v2832
        %v2834 = vlaneseq
        %v2835 = vshrl.u32 %v2834, 7
        %v2836 = vsub.s32 %v2833, %v2835
        %v2837 = vrot.slane %v2829, %v2836
        %v2839 = vunpack.c.l.s4 1983009808
        %v2840 = vunpack.c.0.s8 %v2839
        %v2841 = vlaneseq
        %v2842 = vshrl.u32 %v2841, 7
        %v2843 = vsub.s32 %v2840, %v2842
        %v2844 = vrot.slane %v2830, %v2843
        %v2845 = vcombine.low %v2789, %v2805
        %v2846 = vcombine.high %v2789, %v2805
        %v2848 = vunpack.c.l.s4 1934713408
        %v2849 = vunpack.c.0.s8 %v2848
        %v2850 = vlaneseq
        %v2851 = vshrl.u32 %v2850, 7
        %v2852 = vsub.s32 %v2849, %v2851
        %v2853 = vrot.slane %v2845, %v2852
        %v2855 = vunpack.c.l.s4 1934713408
        %v2856 = vunpack.c.0.s8 %v2855
        %v2857 = vlaneseq
        %v2858 = vshrl.u32 %v2857, 7
        %v2859 = vsub.s32 %v2856, %v2858
        %v2860 = vrot.slane %v2846, %v2859
        %v2861 = vcombine.low %v2796, %v2812
        %v2862 = vcombine.high %v2796, %v2812
        %v2864 = vunpack.c.l.s4 1934713408
        %v2865 = vunpack.c.0.s8 %v2864
        %v2866 = vlaneseq
        %v2867 = vshrl.u32 %v2866, 7
        %v2868 = vsub.s32 %v2865, %v2867
        %v2869 = vrot.slane %v2861, %v2868
        %v2871 = vunpack.c.l.s4 1934713408
        %v2872 = vunpack.c.0.s8 %v2871
        %v2873 = vlaneseq
        %v2874 = vshrl.u32 %v2873, 7
        %v2875 = vsub.s32 %v2872, %v2874
        %v2876 = vrot.slane %v2862, %v2875
        %v2877 = vcombine.low %v2821, %v2837
        %v2878 = vcombine.high %v2821, %v2837
        %v2880 = vunpack.c.l.s4 1934713408
        %v2881 = vunpack.c.0.s8 %v2880
        %v2882 = vlaneseq
        %v2883 = vshrl.u32 %v2882, 7
        %v2884 = vsub.s32 %v2881, %v2883
        %v2885 = vrot.slane %v2877, %v2884
        %v2887 = vunpack.c.l.s4 1934713408
        %v2888 = vunpack.c.0.s8 %v2887
        %v2889 = vlaneseq
        %v2890 = vshrl.u32 %v2889, 7
        %v2891 = vsub.s32 %v2888, %v2890
        %v2892 = vrot.slane %v2878, %v2891
        %v2893 = vcombine.low %v2828, %v2844
        %v2894 = vcombine.high %v2828, %v2844
        %v2896 = vunpack.c.l.s4 1934713408
        %v2897 = vunpack.c.0.s8 %v2896
        %v2898 = vlaneseq
        %v2899 = vshrl.u32 %v2898, 7
        %v2900 = vsub.s32 %v2897, %v2899
        %v2901 = vrot.slane %v2893, %v2900
        %v2903 = vunpack.c.l.s4 1934713408
        %v2904 = vunpack.c.0.s8 %v2903
        %v2905 = vlaneseq
        %v2906 = vshrl.u32 %v2905, 7
        %v2907 = vsub.s32 %v2904, %v2906
        %v2908 = vrot.slane %v2894, %v2907
        %v2909 = vcombine.low %v2853, %v2885
        %v2910 = vcombine.high %v2853, %v2885
        %v2911 = vcombine.low %v2860, %v2892
        %v2912 = vcombine.high %v2860, %v2892
        %v2913 = vcombine.low %v2869, %v2901
        %v2914 = vcombine.high %v2869, %v2901
        %v2915 = vcombine.low %v2876, %v2908
        %v2916 = vcombine.high %v2876, %v2908
        %v2917 = vpack.c.bf16 %v2909, %v2773
        %v2918 = vpack.c.bf16 %v2910, %v2774
        %v2919 = vpack.c.bf16 %v2911, %v2775
        %v2920 = vpack.c.bf16 %v2912, %v2776
        %v2921 = vpack.c.bf16 %v2913, %v2777
        %v2922 = vpack.c.bf16 %v2914, %v2778
        %v2923 = vpack.c.bf16 %v2915, %v2779
        %v2924 = vpack.c.bf16 %v2916, %v2780
        %vm2925 = vcmask 261120
        %v2927 = vsel %vm2925, %v1733, 0
        %v2930 = vsel %vm2925, %v2325, 0
        %2932 = vmatprep.subr.bf16.mxu0 0
        %2933 = vmatpush1.bf16.xpose.msra.mxu0 0
        %2934 = vmatprep.subr.bf16.mxu0 0
        %2935 = vmatpush1.bf16.xpose.msra.mxu0 0
        %2936 = vmatprep.subr.bf16.mxu0 0
        %2937 = vmatpush1.bf16.xpose.msra.mxu0 0
        %2938 = vmatprep.subr.bf16.mxu0 0
        %2939 = vmatpush1.bf16.xpose.msra.mxu0 0
        %2940 = vmatprep.subr.bf16.mxu0 0
        %2941 = vmatpush1.bf16.xpose.msra.mxu0 0
        %2942 = vmatprep.subr.bf16.mxu0 0
        %2943 = vmatpush1.bf16.xpose.msra.mxu0 0
        %2944 = vmatprep.subr.bf16.mxu0 0
        %2945 = vmatpush1.bf16.xpose.msra.mxu0 0
        %2946 = vmatprep.subr.bf16.mxu0 0
        %2947 = vmatpush1.bf16.xpose.msra.mxu0 %v2930
        %2948 = vmatprep.subr.bf16.mxu0 0
        %2949 = vmatpush2.bf16.xpose.msra.mxu0 0
        %2950 = vmatprep.subr.bf16.mxu0 0
        %2951 = vmatpush2.bf16.xpose.msra.mxu0 0
        %2952 = vmatprep.subr.bf16.mxu0 0
        %2953 = vmatpush2.bf16.xpose.msra.mxu0 0
        %2954 = vmatprep.subr.bf16.mxu0 0
        %2955 = vmatpush2.bf16.xpose.msra.mxu0 0
        %2956 = vmatprep.subr.bf16.mxu0 0
        %2957 = vmatpush2.bf16.xpose.msra.mxu0 0
        %2958 = vmatprep.subr.bf16.mxu0 0
        %2959 = vmatpush2.bf16.xpose.msra.mxu0 0
        %2960 = vmatprep.subr.bf16.mxu0 0
        %2961 = vmatpush2.bf16.xpose.msra.mxu0 0
        %2962 = vmatprep.subr.bf16.mxu0 0
        %2963 = vmatpush2.bf16.xpose.msra.mxu0 0
        %2964 = vmatprep.mubr.bf16.mxu0 0
        %2965 = vmatmul.mubr.bf16.gmra.mxu0 %v2927
        %v2966 = vpop.f32.mrf.mxu0
        %v2967 = vadd.f32 0.0, %v2966
        %v2968 = vpop.f32.mrf.mxu0
        %v2969 = vpop.f32.mrf.mxu0
        %v2970 = vpop.f32.mrf.mxu0
        %2971 = vdwg.mxu0
        %v2973 = vsel %vm2925, %v1734, 0
        %v2976 = vsel %vm2925, %v2326, 0
        %2978 = vmatprep.subr.bf16.mxu0 0
        %2979 = vmatpush1.bf16.xpose.msra.mxu0 0
        %2980 = vmatprep.subr.bf16.mxu0 0
        %2981 = vmatpush1.bf16.xpose.msra.mxu0 0
        %2982 = vmatprep.subr.bf16.mxu0 0
        %2983 = vmatpush1.bf16.xpose.msra.mxu0 0
        %2984 = vmatprep.subr.bf16.mxu0 0
        %2985 = vmatpush1.bf16.xpose.msra.mxu0 0
        %2986 = vmatprep.subr.bf16.mxu0 0
        %2987 = vmatpush1.bf16.xpose.msra.mxu0 0
        %2988 = vmatprep.subr.bf16.mxu0 0
        %2989 = vmatpush1.bf16.xpose.msra.mxu0 0
        %2990 = vmatprep.subr.bf16.mxu0 0
        %2991 = vmatpush1.bf16.xpose.msra.mxu0 0
        %2992 = vmatprep.subr.bf16.mxu0 0
        %2993 = vmatpush1.bf16.xpose.msra.mxu0 %v2976
        %2994 = vmatprep.subr.bf16.mxu0 0
        %2995 = vmatpush2.bf16.xpose.msra.mxu0 0
        %2996 = vmatprep.subr.bf16.mxu0 0
        %2997 = vmatpush2.bf16.xpose.msra.mxu0 0
        %2998 = vmatprep.subr.bf16.mxu0 0
        %2999 = vmatpush2.bf16.xpose.msra.mxu0 0
        %3000 = vmatprep.subr.bf16.mxu0 0
        %3001 = vmatpush2.bf16.xpose.msra.mxu0 0
        %3002 = vmatprep.subr.bf16.mxu0 0
        %3003 = vmatpush2.bf16.xpose.msra.mxu0 0
        %3004 = vmatprep.subr.bf16.mxu0 0
        %3005 = vmatpush2.bf16.xpose.msra.mxu0 0
        %3006 = vmatprep.subr.bf16.mxu0 0
        %3007 = vmatpush2.bf16.xpose.msra.mxu0 0
        %3008 = vmatprep.subr.bf16.mxu0 0
        %3009 = vmatpush2.bf16.xpose.msra.mxu0 0
        %3010 = vmatprep.mubr.bf16.mxu0 0
        %3011 = vmatmul.mubr.bf16.gmra.mxu0 %v2973
        %v3012 = vpop.f32.mrf.mxu0
        %v3013 = vadd.f32 0.0, %v3012
        %v3014 = vpop.f32.mrf.mxu0
        %v3015 = vpop.f32.mrf.mxu0
        %v3016 = vpop.f32.mrf.mxu0
        %3017 = vdwg.mxu0
        %v3019 = vsel %vm2925, %v1735, 0
        %v3022 = vsel %vm2925, %v2327, 0
        %3024 = vmatprep.subr.bf16.mxu0 0
        %3025 = vmatpush1.bf16.xpose.msra.mxu0 0
        %3026 = vmatprep.subr.bf16.mxu0 0
        %3027 = vmatpush1.bf16.xpose.msra.mxu0 0
        %3028 = vmatprep.subr.bf16.mxu0 0
        %3029 = vmatpush1.bf16.xpose.msra.mxu0 0
        %3030 = vmatprep.subr.bf16.mxu0 0
        %3031 = vmatpush1.bf16.xpose.msra.mxu0 0
        %3032 = vmatprep.subr.bf16.mxu0 0
        %3033 = vmatpush1.bf16.xpose.msra.mxu0 0
        %3034 = vmatprep.subr.bf16.mxu0 0
        %3035 = vmatpush1.bf16.xpose.msra.mxu0 0
        %3036 = vmatprep.subr.bf16.mxu0 0
        %3037 = vmatpush1.bf16.xpose.msra.mxu0 0
        %3038 = vmatprep.subr.bf16.mxu0 0
        %3039 = vmatpush1.bf16.xpose.msra.mxu0 %v3022
        %3040 = vmatprep.subr.bf16.mxu0 0
        %3041 = vmatpush2.bf16.xpose.msra.mxu0 0
        %3042 = vmatprep.subr.bf16.mxu0 0
        %3043 = vmatpush2.bf16.xpose.msra.mxu0 0
        %3044 = vmatprep.subr.bf16.mxu0 0
        %3045 = vmatpush2.bf16.xpose.msra.mxu0 0
        %3046 = vmatprep.subr.bf16.mxu0 0
        %3047 = vmatpush2.bf16.xpose.msra.mxu0 0
        %3048 = vmatprep.subr.bf16.mxu0 0
        %3049 = vmatpush2.bf16.xpose.msra.mxu0 0
        %3050 = vmatprep.subr.bf16.mxu0 0
        %3051 = vmatpush2.bf16.xpose.msra.mxu0 0
        %3052 = vmatprep.subr.bf16.mxu0 0
        %3053 = vmatpush2.bf16.xpose.msra.mxu0 0
        %3054 = vmatprep.subr.bf16.mxu0 0
        %3055 = vmatpush2.bf16.xpose.msra.mxu0 0
        %3056 = vmatprep.mubr.bf16.mxu0 0
        %3057 = vmatmul.mubr.bf16.gmra.mxu0 %v3019
        %v3058 = vpop.f32.mrf.mxu0
        %v3059 = vadd.f32 0.0, %v3058
        %v3060 = vpop.f32.mrf.mxu0
        %v3061 = vpop.f32.mrf.mxu0
        %v3062 = vpop.f32.mrf.mxu0
        %3063 = vdwg.mxu0
        %v3065 = vsel %vm2925, %v1736, 0
        %v3068 = vsel %vm2925, %v2328, 0
        %3070 = vmatprep.subr.bf16.mxu0 0
        %3071 = vmatpush1.bf16.xpose.msra.mxu0 0
        %3072 = vmatprep.subr.bf16.mxu0 0
        %3073 = vmatpush1.bf16.xpose.msra.mxu0 0
        %3074 = vmatprep.subr.bf16.mxu0 0
        %3075 = vmatpush1.bf16.xpose.msra.mxu0 0
        %3076 = vmatprep.subr.bf16.mxu0 0
        %3077 = vmatpush1.bf16.xpose.msra.mxu0 0
        %3078 = vmatprep.subr.bf16.mxu0 0
        %3079 = vmatpush1.bf16.xpose.msra.mxu0 0
        %3080 = vmatprep.subr.bf16.mxu0 0
        %3081 = vmatpush1.bf16.xpose.msra.mxu0 0
        %3082 = vmatprep.subr.bf16.mxu0 0
        %3083 = vmatpush1.bf16.xpose.msra.mxu0 0
        %3084 = vmatprep.subr.bf16.mxu0 0
        %3085 = vmatpush1.bf16.xpose.msra.mxu0 %v3068
        %3086 = vmatprep.subr.bf16.mxu0 0
        %3087 = vmatpush2.bf16.xpose.msra.mxu0 0
        %3088 = vmatprep.subr.bf16.mxu0 0
        %3089 = vmatpush2.bf16.xpose.msra.mxu0 0
        %3090 = vmatprep.subr.bf16.mxu0 0
        %3091 = vmatpush2.bf16.xpose.msra.mxu0 0
        %3092 = vmatprep.subr.bf16.mxu0 0
        %3093 = vmatpush2.bf16.xpose.msra.mxu0 0
        %3094 = vmatprep.subr.bf16.mxu0 0
        %3095 = vmatpush2.bf16.xpose.msra.mxu0 0
        %3096 = vmatprep.subr.bf16.mxu0 0
        %3097 = vmatpush2.bf16.xpose.msra.mxu0 0
        %3098 = vmatprep.subr.bf16.mxu0 0
        %3099 = vmatpush2.bf16.xpose.msra.mxu0 0
        %3100 = vmatprep.subr.bf16.mxu0 0
        %3101 = vmatpush2.bf16.xpose.msra.mxu0 0
        %3102 = vmatprep.mubr.bf16.mxu0 0
        %3103 = vmatmul.mubr.bf16.gmra.mxu0 %v3065
        %v3104 = vpop.f32.mrf.mxu0
        %v3105 = vadd.f32 0.0, %v3104
        %v3106 = vpop.f32.mrf.mxu0
        %v3107 = vpop.f32.mrf.mxu0
        %v3108 = vpop.f32.mrf.mxu0
        %3109 = vdwg.mxu0
        %v3111 = vsel %vm2925, %v1737, 0
        %v3114 = vsel %vm2925, %v2329, 0
        %3116 = vmatprep.subr.bf16.mxu0 0
        %3117 = vmatpush1.bf16.xpose.msra.mxu0 0
        %3118 = vmatprep.subr.bf16.mxu0 0
        %3119 = vmatpush1.bf16.xpose.msra.mxu0 0
        %3120 = vmatprep.subr.bf16.mxu0 0
        %3121 = vmatpush1.bf16.xpose.msra.mxu0 0
        %3122 = vmatprep.subr.bf16.mxu0 0
        %3123 = vmatpush1.bf16.xpose.msra.mxu0 0
        %3124 = vmatprep.subr.bf16.mxu0 0
        %3125 = vmatpush1.bf16.xpose.msra.mxu0 0
        %3126 = vmatprep.subr.bf16.mxu0 0
        %3127 = vmatpush1.bf16.xpose.msra.mxu0 0
        %3128 = vmatprep.subr.bf16.mxu0 0
        %3129 = vmatpush1.bf16.xpose.msra.mxu0 0
        %3130 = vmatprep.subr.bf16.mxu0 0
        %3131 = vmatpush1.bf16.xpose.msra.mxu0 %v3114
        %3132 = vmatprep.subr.bf16.mxu0 0
        %3133 = vmatpush2.bf16.xpose.msra.mxu0 0
        %3134 = vmatprep.subr.bf16.mxu0 0
        %3135 = vmatpush2.bf16.xpose.msra.mxu0 0
        %3136 = vmatprep.subr.bf16.mxu0 0
        %3137 = vmatpush2.bf16.xpose.msra.mxu0 0
        %3138 = vmatprep.subr.bf16.mxu0 0
        %3139 = vmatpush2.bf16.xpose.msra.mxu0 0
        %3140 = vmatprep.subr.bf16.mxu0 0
        %3141 = vmatpush2.bf16.xpose.msra.mxu0 0
        %3142 = vmatprep.subr.bf16.mxu0 0
        %3143 = vmatpush2.bf16.xpose.msra.mxu0 0
        %3144 = vmatprep.subr.bf16.mxu0 0
        %3145 = vmatpush2.bf16.xpose.msra.mxu0 0
        %3146 = vmatprep.subr.bf16.mxu0 0
        %3147 = vmatpush2.bf16.xpose.msra.mxu0 0
        %3148 = vmatprep.mubr.bf16.mxu0 0
        %3149 = vmatmul.mubr.bf16.gmra.mxu0 %v3111
        %v3150 = vpop.f32.mrf.mxu0
        %v3151 = vadd.f32 0.0, %v3150
        %v3152 = vpop.f32.mrf.mxu0
        %v3153 = vpop.f32.mrf.mxu0
        %v3154 = vpop.f32.mrf.mxu0
        %3155 = vdwg.mxu0
        %v3157 = vsel %vm2925, %v1738, 0
        %v3160 = vsel %vm2925, %v2330, 0
        %3162 = vmatprep.subr.bf16.mxu0 0
        %3163 = vmatpush1.bf16.xpose.msra.mxu0 0
        %3164 = vmatprep.subr.bf16.mxu0 0
        %3165 = vmatpush1.bf16.xpose.msra.mxu0 0
        %3166 = vmatprep.subr.bf16.mxu0 0
        %3167 = vmatpush1.bf16.xpose.msra.mxu0 0
        %3168 = vmatprep.subr.bf16.mxu0 0
        %3169 = vmatpush1.bf16.xpose.msra.mxu0 0
        %3170 = vmatprep.subr.bf16.mxu0 0
        %3171 = vmatpush1.bf16.xpose.msra.mxu0 0
        %3172 = vmatprep.subr.bf16.mxu0 0
        %3173 = vmatpush1.bf16.xpose.msra.mxu0 0
        %3174 = vmatprep.subr.bf16.mxu0 0
        %3175 = vmatpush1.bf16.xpose.msra.mxu0 0
        %3176 = vmatprep.subr.bf16.mxu0 0
        %3177 = vmatpush1.bf16.xpose.msra.mxu0 %v3160
        %3178 = vmatprep.subr.bf16.mxu0 0
        %3179 = vmatpush2.bf16.xpose.msra.mxu0 0
        %3180 = vmatprep.subr.bf16.mxu0 0
        %3181 = vmatpush2.bf16.xpose.msra.mxu0 0
        %3182 = vmatprep.subr.bf16.mxu0 0
        %3183 = vmatpush2.bf16.xpose.msra.mxu0 0
        %3184 = vmatprep.subr.bf16.mxu0 0
        %3185 = vmatpush2.bf16.xpose.msra.mxu0 0
        %3186 = vmatprep.subr.bf16.mxu0 0
        %3187 = vmatpush2.bf16.xpose.msra.mxu0 0
        %3188 = vmatprep.subr.bf16.mxu0 0
        %3189 = vmatpush2.bf16.xpose.msra.mxu0 0
        %3190 = vmatprep.subr.bf16.mxu0 0
        %3191 = vmatpush2.bf16.xpose.msra.mxu0 0
        %3192 = vmatprep.subr.bf16.mxu0 0
        %3193 = vmatpush2.bf16.xpose.msra.mxu0 0
        %3194 = vmatprep.mubr.bf16.mxu0 0
        %3195 = vmatmul.mubr.bf16.gmra.mxu0 %v3157
        %v3196 = vpop.f32.mrf.mxu0
        %v3197 = vadd.f32 0.0, %v3196
        %v3198 = vpop.f32.mrf.mxu0
        %v3199 = vpop.f32.mrf.mxu0
        %v3200 = vpop.f32.mrf.mxu0
        %3201 = vdwg.mxu0
        %v3203 = vsel %vm2925, %v1739, 0
        %v3206 = vsel %vm2925, %v2331, 0
        %3208 = vmatprep.subr.bf16.mxu0 0
        %3209 = vmatpush1.bf16.xpose.msra.mxu0 0
        %3210 = vmatprep.subr.bf16.mxu0 0
        %3211 = vmatpush1.bf16.xpose.msra.mxu0 0
        %3212 = vmatprep.subr.bf16.mxu0 0
        %3213 = vmatpush1.bf16.xpose.msra.mxu0 0
        %3214 = vmatprep.subr.bf16.mxu0 0
        %3215 = vmatpush1.bf16.xpose.msra.mxu0 0
        %3216 = vmatprep.subr.bf16.mxu0 0
        %3217 = vmatpush1.bf16.xpose.msra.mxu0 0
        %3218 = vmatprep.subr.bf16.mxu0 0
        %3219 = vmatpush1.bf16.xpose.msra.mxu0 0
        %3220 = vmatprep.subr.bf16.mxu0 0
        %3221 = vmatpush1.bf16.xpose.msra.mxu0 0
        %3222 = vmatprep.subr.bf16.mxu0 0
        %3223 = vmatpush1.bf16.xpose.msra.mxu0 %v3206
        %3224 = vmatprep.subr.bf16.mxu0 0
        %3225 = vmatpush2.bf16.xpose.msra.mxu0 0
        %3226 = vmatprep.subr.bf16.mxu0 0
        %3227 = vmatpush2.bf16.xpose.msra.mxu0 0
        %3228 = vmatprep.subr.bf16.mxu0 0
        %3229 = vmatpush2.bf16.xpose.msra.mxu0 0
        %3230 = vmatprep.subr.bf16.mxu0 0
        %3231 = vmatpush2.bf16.xpose.msra.mxu0 0
        %3232 = vmatprep.subr.bf16.mxu0 0
        %3233 = vmatpush2.bf16.xpose.msra.mxu0 0
        %3234 = vmatprep.subr.bf16.mxu0 0
        %3235 = vmatpush2.bf16.xpose.msra.mxu0 0
        %3236 = vmatprep.subr.bf16.mxu0 0
        %3237 = vmatpush2.bf16.xpose.msra.mxu0 0
        %3238 = vmatprep.subr.bf16.mxu0 0
        %3239 = vmatpush2.bf16.xpose.msra.mxu0 0
        %3240 = vmatprep.mubr.bf16.mxu0 0
        %3241 = vmatmul.mubr.bf16.gmra.mxu0 %v3203
        %v3242 = vpop.f32.mrf.mxu0
        %v3243 = vadd.f32 0.0, %v3242
        %v3244 = vpop.f32.mrf.mxu0
        %v3245 = vpop.f32.mrf.mxu0
        %v3246 = vpop.f32.mrf.mxu0
        %3247 = vdwg.mxu0
        %v3249 = vsel %vm2925, %v1740, 0
        %v3252 = vsel %vm2925, %v2332, 0
        %3254 = vmatprep.subr.bf16.mxu0 0
        %3255 = vmatpush1.bf16.xpose.msra.mxu0 0
        %3256 = vmatprep.subr.bf16.mxu0 0
        %3257 = vmatpush1.bf16.xpose.msra.mxu0 0
        %3258 = vmatprep.subr.bf16.mxu0 0
        %3259 = vmatpush1.bf16.xpose.msra.mxu0 0
        %3260 = vmatprep.subr.bf16.mxu0 0
        %3261 = vmatpush1.bf16.xpose.msra.mxu0 0
        %3262 = vmatprep.subr.bf16.mxu0 0
        %3263 = vmatpush1.bf16.xpose.msra.mxu0 0
        %3264 = vmatprep.subr.bf16.mxu0 0
        %3265 = vmatpush1.bf16.xpose.msra.mxu0 0
        %3266 = vmatprep.subr.bf16.mxu0 0
        %3267 = vmatpush1.bf16.xpose.msra.mxu0 0
        %3268 = vmatprep.subr.bf16.mxu0 0
        %3269 = vmatpush1.bf16.xpose.msra.mxu0 %v3252
        %3270 = vmatprep.subr.bf16.mxu0 0
        %3271 = vmatpush2.bf16.xpose.msra.mxu0 0
        %3272 = vmatprep.subr.bf16.mxu0 0
        %3273 = vmatpush2.bf16.xpose.msra.mxu0 0
        %3274 = vmatprep.subr.bf16.mxu0 0
        %3275 = vmatpush2.bf16.xpose.msra.mxu0 0
        %3276 = vmatprep.subr.bf16.mxu0 0
        %3277 = vmatpush2.bf16.xpose.msra.mxu0 0
        %3278 = vmatprep.subr.bf16.mxu0 0
        %3279 = vmatpush2.bf16.xpose.msra.mxu0 0
        %3280 = vmatprep.subr.bf16.mxu0 0
        %3281 = vmatpush2.bf16.xpose.msra.mxu0 0
        %3282 = vmatprep.subr.bf16.mxu0 0
        %3283 = vmatpush2.bf16.xpose.msra.mxu0 0
        %3284 = vmatprep.subr.bf16.mxu0 0
        %3285 = vmatpush2.bf16.xpose.msra.mxu0 0
        %3286 = vmatprep.mubr.bf16.mxu0 0
        %3287 = vmatmul.mubr.bf16.gmra.mxu0 %v3249
        %v3288 = vpop.f32.mrf.mxu0
        %v3289 = vadd.f32 0.0, %v3288
        %v3290 = vpop.f32.mrf.mxu0
        %v3291 = vpop.f32.mrf.mxu0
        %v3292 = vpop.f32.mrf.mxu0
        %3293 = vdwg.mxu0
        %vm3294 = vcmask 130048
        %v3295 = vsel %vm3294, %v2967, -inf
        %3296 = vmax.xlane.f32.xlu0 %v3295
        %v3297 = vpop.xlane.xlu0 %3296
        %v3298 = vsel %vm3294, %v3013, -inf
        %3299 = vmax.xlane.f32.xlu0 %v3298
        %v3300 = vpop.xlane.xlu0 %3299
        %v3301 = vsel %vm3294, %v3059, -inf
        %3302 = vmax.xlane.f32.xlu0 %v3301
        %v3303 = vpop.xlane.xlu0 %3302
        %v3304 = vsel %vm3294, %v3105, -inf
        %3305 = vmax.xlane.f32.xlu0 %v3304
        %v3306 = vpop.xlane.xlu0 %3305
        %v3307 = vsel %vm3294, %v3151, -inf
        %3308 = vmax.xlane.f32.xlu0 %v3307
        %v3309 = vpop.xlane.xlu0 %3308
        %v3310 = vsel %vm3294, %v3197, -inf
        %3311 = vmax.xlane.f32.xlu0 %v3310
        %v3312 = vpop.xlane.xlu0 %3311
        %v3313 = vsel %vm3294, %v3243, -inf
        %3314 = vmax.xlane.f32.xlu0 %v3313
        %v3315 = vpop.xlane.xlu0 %3314
        %v3316 = vsel %vm3294, %v3289, -inf
        %3317 = vmax.xlane.f32.xlu0 %v3316
        %v3318 = vpop.xlane.xlu0 %3317
        %v3319 = vsub.f32 %v2967, %v3297
        %v3320 = vsub.f32 %v3013, %v3300
        %v3321 = vsub.f32 %v3059, %v3303
        %v3322 = vsub.f32 %v3105, %v3306
        %v3323 = vsub.f32 %v3151, %v3309
        %v3324 = vsub.f32 %v3197, %v3312
        %v3325 = vsub.f32 %v3243, %v3315
        %v3326 = vsub.f32 %v3289, %v3318
        %v3327 = vmul.f32 %v3319, 1.442695
        %v3328 = vpow.pop %v3327
        %v3329 = vmul.f32 %v3320, 1.442695
        %v3330 = vpow.pop %v3329
        %v3331 = vmul.f32 %v3321, 1.442695
        %v3332 = vpow.pop %v3331
        %v3333 = vmul.f32 %v3322, 1.442695
        %v3334 = vpow.pop %v3333
        %v3335 = vmul.f32 %v3323, 1.442695
        %v3336 = vpow.pop %v3335
        %v3337 = vmul.f32 %v3324, 1.442695
        %v3338 = vpow.pop %v3337
        %v3339 = vmul.f32 %v3325, 1.442695
        %v3340 = vpow.pop %v3339
        %v3341 = vmul.f32 %v3326, 1.442695
        %v3342 = vpow.pop %v3341
        %v3343 = vsel %vm3294, %v3328, 0.0
        %3344 = vadd.xlane.f32.xlu0 %v3343
        %v3345 = vpop.xlane.xlu0 %3344
        %v3346 = vsel %vm3294, %v3330, 0.0
        %3347 = vadd.xlane.f32.xlu0 %v3346
        %v3348 = vpop.xlane.xlu0 %3347
        %v3349 = vsel %vm3294, %v3332, 0.0
        %3350 = vadd.xlane.f32.xlu0 %v3349
        %v3351 = vpop.xlane.xlu0 %3350
        %v3352 = vsel %vm3294, %v3334, 0.0
        %3353 = vadd.xlane.f32.xlu0 %v3352
        %v3354 = vpop.xlane.xlu0 %3353
        %v3355 = vsel %vm3294, %v3336, 0.0
        %3356 = vadd.xlane.f32.xlu0 %v3355
        %v3357 = vpop.xlane.xlu0 %3356
        %v3358 = vsel %vm3294, %v3338, 0.0
        %3359 = vadd.xlane.f32.xlu0 %v3358
        %v3360 = vpop.xlane.xlu0 %3359
        %v3361 = vsel %vm3294, %v3340, 0.0
        %3362 = vadd.xlane.f32.xlu0 %v3361
        %v3363 = vpop.xlane.xlu0 %3362
        %v3364 = vsel %vm3294, %v3342, 0.0
        %3365 = vadd.xlane.f32.xlu0 %v3364
        %v3366 = vpop.xlane.xlu0 %3365
        %v3367 = vrcp.pop %v3345
        %v3368 = vrcp.pop %v3348
        %v3369 = vrcp.pop %v3351
        %v3370 = vrcp.pop %v3354
        %v3371 = vrcp.pop %v3357
        %v3372 = vrcp.pop %v3360
        %v3373 = vrcp.pop %v3363
        %v3374 = vrcp.pop %v3366
        %v3375 = vmul.f32 %v3328, %v3367
        %v3376 = vmul.f32 %v3330, %v3368
        %v3377 = vmul.f32 %v3332, %v3369
        %v3378 = vmul.f32 %v3334, %v3370
        %v3379 = vmul.f32 %v3336, %v3371
        %v3380 = vmul.f32 %v3338, %v3372
        %v3381 = vmul.f32 %v3340, %v3373
        %v3382 = vmul.f32 %v3342, %v3374
        %v3383 = vpack.c.bf16 %v3375, %v3375
        %v3384 = vpack.c.bf16 %v3376, %v3376
        %v3385 = vpack.c.bf16 %v3377, %v3377
        %v3386 = vpack.c.bf16 %v3378, %v3378
        %v3387 = vpack.c.bf16 %v3379, %v3379
        %v3388 = vpack.c.bf16 %v3380, %v3380
        %v3389 = vpack.c.bf16 %v3381, %v3381
        %v3390 = vpack.c.bf16 %v3382, %v3382
        %v3392 = vsel %vm3294, %v3383, 0
        %3394 = vmatprep.subr.bf16.mxu0 0
        %3395 = vmatpush1.bf16.msra.mxu0 0
        %3396 = vmatprep.subr.bf16.mxu0 0
        %3397 = vmatpush1.bf16.msra.mxu0 0
        %3398 = vmatprep.subr.bf16.mxu0 0
        %3399 = vmatpush1.bf16.msra.mxu0 0
        %3400 = vmatprep.subr.bf16.mxu0 0
        %3401 = vmatpush1.bf16.msra.mxu0 0
        %3402 = vmatprep.subr.bf16.mxu0 0
        %3403 = vmatpush1.bf16.msra.mxu0 0
        %3404 = vmatprep.subr.bf16.mxu0 0
        %3405 = vmatpush1.bf16.msra.mxu0 0
        %3406 = vmatprep.subr.bf16.mxu0 0
        %3407 = vmatpush1.bf16.msra.mxu0 0
        %3408 = vmatprep.subr.bf16.mxu0 0
        %3409 = vmatpush1.bf16.msra.mxu0 %v2917
        %3410 = vmatprep.subr.bf16.mxu0 0
        %3411 = vmatpush2.bf16.msra.mxu0 0
        %3412 = vmatprep.subr.bf16.mxu0 0
        %3413 = vmatpush2.bf16.msra.mxu0 0
        %3414 = vmatprep.subr.bf16.mxu0 0
        %3415 = vmatpush2.bf16.msra.mxu0 0
        %3416 = vmatprep.subr.bf16.mxu0 0
        %3417 = vmatpush2.bf16.msra.mxu0 0
        %3418 = vmatprep.subr.bf16.mxu0 0
        %3419 = vmatpush2.bf16.msra.mxu0 0
        %3420 = vmatprep.subr.bf16.mxu0 0
        %3421 = vmatpush2.bf16.msra.mxu0 0
        %3422 = vmatprep.subr.bf16.mxu0 0
        %3423 = vmatpush2.bf16.msra.mxu0 0
        %3424 = vmatprep.subr.bf16.mxu0 0
        %3425 = vmatpush2.bf16.msra.mxu0 0
        %3426 = vmatprep.mubr.bf16.mxu0 0
        %3427 = vmatmul.mubr.bf16.gmra.mxu0 %v3392
        %v3428 = vpop.f32.mrf.mxu0
        %v3429 = vadd.f32 0.0, %v3428
        %v3430 = vpop.f32.mrf.mxu0
        %v3431 = vpop.f32.mrf.mxu0
        %v3432 = vpop.f32.mrf.mxu0
        %3433 = vdwg.mxu0
        %v3435 = vsel %vm3294, %v3384, 0
        %3437 = vmatprep.subr.bf16.mxu0 0
        %3438 = vmatpush1.bf16.msra.mxu0 0
        %3439 = vmatprep.subr.bf16.mxu0 0
        %3440 = vmatpush1.bf16.msra.mxu0 0
        %3441 = vmatprep.subr.bf16.mxu0 0
        %3442 = vmatpush1.bf16.msra.mxu0 0
        %3443 = vmatprep.subr.bf16.mxu0 0
        %3444 = vmatpush1.bf16.msra.mxu0 0
        %3445 = vmatprep.subr.bf16.mxu0 0
        %3446 = vmatpush1.bf16.msra.mxu0 0
        %3447 = vmatprep.subr.bf16.mxu0 0
        %3448 = vmatpush1.bf16.msra.mxu0 0
        %3449 = vmatprep.subr.bf16.mxu0 0
        %3450 = vmatpush1.bf16.msra.mxu0 0
        %3451 = vmatprep.subr.bf16.mxu0 0
        %3452 = vmatpush1.bf16.msra.mxu0 %v2918
        %3453 = vmatprep.subr.bf16.mxu0 0
        %3454 = vmatpush2.bf16.msra.mxu0 0
        %3455 = vmatprep.subr.bf16.mxu0 0
        %3456 = vmatpush2.bf16.msra.mxu0 0
        %3457 = vmatprep.subr.bf16.mxu0 0
        %3458 = vmatpush2.bf16.msra.mxu0 0
        %3459 = vmatprep.subr.bf16.mxu0 0
        %3460 = vmatpush2.bf16.msra.mxu0 0
        %3461 = vmatprep.subr.bf16.mxu0 0
        %3462 = vmatpush2.bf16.msra.mxu0 0
        %3463 = vmatprep.subr.bf16.mxu0 0
        %3464 = vmatpush2.bf16.msra.mxu0 0
        %3465 = vmatprep.subr.bf16.mxu0 0
        %3466 = vmatpush2.bf16.msra.mxu0 0
        %3467 = vmatprep.subr.bf16.mxu0 0
        %3468 = vmatpush2.bf16.msra.mxu0 0
        %3469 = vmatprep.mubr.bf16.mxu0 0
        %3470 = vmatmul.mubr.bf16.gmra.mxu0 %v3435
        %v3471 = vpop.f32.mrf.mxu0
        %v3472 = vadd.f32 0.0, %v3471
        %v3473 = vpop.f32.mrf.mxu0
        %v3474 = vpop.f32.mrf.mxu0
        %v3475 = vpop.f32.mrf.mxu0
        %3476 = vdwg.mxu0
        %v3478 = vsel %vm3294, %v3385, 0
        %3480 = vmatprep.subr.bf16.mxu0 0
        %3481 = vmatpush1.bf16.msra.mxu0 0
        %3482 = vmatprep.subr.bf16.mxu0 0
        %3483 = vmatpush1.bf16.msra.mxu0 0
        %3484 = vmatprep.subr.bf16.mxu0 0
        %3485 = vmatpush1.bf16.msra.mxu0 0
        %3486 = vmatprep.subr.bf16.mxu0 0
        %3487 = vmatpush1.bf16.msra.mxu0 0
        %3488 = vmatprep.subr.bf16.mxu0 0
        %3489 = vmatpush1.bf16.msra.mxu0 0
        %3490 = vmatprep.subr.bf16.mxu0 0
        %3491 = vmatpush1.bf16.msra.mxu0 0
        %3492 = vmatprep.subr.bf16.mxu0 0
        %3493 = vmatpush1.bf16.msra.mxu0 0
        %3494 = vmatprep.subr.bf16.mxu0 0
        %3495 = vmatpush1.bf16.msra.mxu0 %v2919
        %3496 = vmatprep.subr.bf16.mxu0 0
        %3497 = vmatpush2.bf16.msra.mxu0 0
        %3498 = vmatprep.subr.bf16.mxu0 0
        %3499 = vmatpush2.bf16.msra.mxu0 0
        %3500 = vmatprep.subr.bf16.mxu0 0
        %3501 = vmatpush2.bf16.msra.mxu0 0
        %3502 = vmatprep.subr.bf16.mxu0 0
        %3503 = vmatpush2.bf16.msra.mxu0 0
        %3504 = vmatprep.subr.bf16.mxu0 0
        %3505 = vmatpush2.bf16.msra.mxu0 0
        %3506 = vmatprep.subr.bf16.mxu0 0
        %3507 = vmatpush2.bf16.msra.mxu0 0
        %3508 = vmatprep.subr.bf16.mxu0 0
        %3509 = vmatpush2.bf16.msra.mxu0 0
        %3510 = vmatprep.subr.bf16.mxu0 0
        %3511 = vmatpush2.bf16.msra.mxu0 0
        %3512 = vmatprep.mubr.bf16.mxu0 0
        %3513 = vmatmul.mubr.bf16.gmra.mxu0 %v3478
        %v3514 = vpop.f32.mrf.mxu0
        %v3515 = vadd.f32 0.0, %v3514
        %v3516 = vpop.f32.mrf.mxu0
        %v3517 = vpop.f32.mrf.mxu0
        %v3518 = vpop.f32.mrf.mxu0
        %3519 = vdwg.mxu0
        %v3521 = vsel %vm3294, %v3386, 0
        %3523 = vmatprep.subr.bf16.mxu0 0
        %3524 = vmatpush1.bf16.msra.mxu0 0
        %3525 = vmatprep.subr.bf16.mxu0 0
        %3526 = vmatpush1.bf16.msra.mxu0 0
        %3527 = vmatprep.subr.bf16.mxu0 0
        %3528 = vmatpush1.bf16.msra.mxu0 0
        %3529 = vmatprep.subr.bf16.mxu0 0
        %3530 = vmatpush1.bf16.msra.mxu0 0
        %3531 = vmatprep.subr.bf16.mxu0 0
        %3532 = vmatpush1.bf16.msra.mxu0 0
        %3533 = vmatprep.subr.bf16.mxu0 0
        %3534 = vmatpush1.bf16.msra.mxu0 0
        %3535 = vmatprep.subr.bf16.mxu0 0
        %3536 = vmatpush1.bf16.msra.mxu0 0
        %3537 = vmatprep.subr.bf16.mxu0 0
        %3538 = vmatpush1.bf16.msra.mxu0 %v2920
        %3539 = vmatprep.subr.bf16.mxu0 0
        %3540 = vmatpush2.bf16.msra.mxu0 0
        %3541 = vmatprep.subr.bf16.mxu0 0
        %3542 = vmatpush2.bf16.msra.mxu0 0
        %3543 = vmatprep.subr.bf16.mxu0 0
        %3544 = vmatpush2.bf16.msra.mxu0 0
        %3545 = vmatprep.subr.bf16.mxu0 0
        %3546 = vmatpush2.bf16.msra.mxu0 0
        %3547 = vmatprep.subr.bf16.mxu0 0
        %3548 = vmatpush2.bf16.msra.mxu0 0
        %3549 = vmatprep.subr.bf16.mxu0 0
        %3550 = vmatpush2.bf16.msra.mxu0 0
        %3551 = vmatprep.subr.bf16.mxu0 0
        %3552 = vmatpush2.bf16.msra.mxu0 0
        %3553 = vmatprep.subr.bf16.mxu0 0
        %3554 = vmatpush2.bf16.msra.mxu0 0
        %3555 = vmatprep.mubr.bf16.mxu0 0
        %3556 = vmatmul.mubr.bf16.gmra.mxu0 %v3521
        %v3557 = vpop.f32.mrf.mxu0
        %v3558 = vadd.f32 0.0, %v3557
        %v3559 = vpop.f32.mrf.mxu0
        %v3560 = vpop.f32.mrf.mxu0
        %v3561 = vpop.f32.mrf.mxu0
        %3562 = vdwg.mxu0
        %v3564 = vsel %vm3294, %v3387, 0
        %3566 = vmatprep.subr.bf16.mxu0 0
        %3567 = vmatpush1.bf16.msra.mxu0 0
        %3568 = vmatprep.subr.bf16.mxu0 0
        %3569 = vmatpush1.bf16.msra.mxu0 0
        %3570 = vmatprep.subr.bf16.mxu0 0
        %3571 = vmatpush1.bf16.msra.mxu0 0
        %3572 = vmatprep.subr.bf16.mxu0 0
        %3573 = vmatpush1.bf16.msra.mxu0 0
        %3574 = vmatprep.subr.bf16.mxu0 0
        %3575 = vmatpush1.bf16.msra.mxu0 0
        %3576 = vmatprep.subr.bf16.mxu0 0
        %3577 = vmatpush1.bf16.msra.mxu0 0
        %3578 = vmatprep.subr.bf16.mxu0 0
        %3579 = vmatpush1.bf16.msra.mxu0 0
        %3580 = vmatprep.subr.bf16.mxu0 0
        %3581 = vmatpush1.bf16.msra.mxu0 %v2921
        %3582 = vmatprep.subr.bf16.mxu0 0
        %3583 = vmatpush2.bf16.msra.mxu0 0
        %3584 = vmatprep.subr.bf16.mxu0 0
        %3585 = vmatpush2.bf16.msra.mxu0 0
        %3586 = vmatprep.subr.bf16.mxu0 0
        %3587 = vmatpush2.bf16.msra.mxu0 0
        %3588 = vmatprep.subr.bf16.mxu0 0
        %3589 = vmatpush2.bf16.msra.mxu0 0
        %3590 = vmatprep.subr.bf16.mxu0 0
        %3591 = vmatpush2.bf16.msra.mxu0 0
        %3592 = vmatprep.subr.bf16.mxu0 0
        %3593 = vmatpush2.bf16.msra.mxu0 0
        %3594 = vmatprep.subr.bf16.mxu0 0
        %3595 = vmatpush2.bf16.msra.mxu0 0
        %3596 = vmatprep.subr.bf16.mxu0 0
        %3597 = vmatpush2.bf16.msra.mxu0 0
        %3598 = vmatprep.mubr.bf16.mxu0 0
        %3599 = vmatmul.mubr.bf16.gmra.mxu0 %v3564
        %v3600 = vpop.f32.mrf.mxu0
        %v3601 = vadd.f32 0.0, %v3600
        %v3602 = vpop.f32.mrf.mxu0
        %v3603 = vpop.f32.mrf.mxu0
        %v3604 = vpop.f32.mrf.mxu0
        %3605 = vdwg.mxu0
        %v3607 = vsel %vm3294, %v3388, 0
        %3609 = vmatprep.subr.bf16.mxu0 0
        %3610 = vmatpush1.bf16.msra.mxu0 0
        %3611 = vmatprep.subr.bf16.mxu0 0
        %3612 = vmatpush1.bf16.msra.mxu0 0
        %3613 = vmatprep.subr.bf16.mxu0 0
        %3614 = vmatpush1.bf16.msra.mxu0 0
        %3615 = vmatprep.subr.bf16.mxu0 0
        %3616 = vmatpush1.bf16.msra.mxu0 0
        %3617 = vmatprep.subr.bf16.mxu0 0
        %3618 = vmatpush1.bf16.msra.mxu0 0
        %3619 = vmatprep.subr.bf16.mxu0 0
        %3620 = vmatpush1.bf16.msra.mxu0 0
        %3621 = vmatprep.subr.bf16.mxu0 0
        %3622 = vmatpush1.bf16.msra.mxu0 0
        %3623 = vmatprep.subr.bf16.mxu0 0
        %3624 = vmatpush1.bf16.msra.mxu0 %v2922
        %3625 = vmatprep.subr.bf16.mxu0 0
        %3626 = vmatpush2.bf16.msra.mxu0 0
        %3627 = vmatprep.subr.bf16.mxu0 0
        %3628 = vmatpush2.bf16.msra.mxu0 0
        %3629 = vmatprep.subr.bf16.mxu0 0
        %3630 = vmatpush2.bf16.msra.mxu0 0
        %3631 = vmatprep.subr.bf16.mxu0 0
        %3632 = vmatpush2.bf16.msra.mxu0 0
        %3633 = vmatprep.subr.bf16.mxu0 0
        %3634 = vmatpush2.bf16.msra.mxu0 0
        %3635 = vmatprep.subr.bf16.mxu0 0
        %3636 = vmatpush2.bf16.msra.mxu0 0
        %3637 = vmatprep.subr.bf16.mxu0 0
        %3638 = vmatpush2.bf16.msra.mxu0 0
        %3639 = vmatprep.subr.bf16.mxu0 0
        %3640 = vmatpush2.bf16.msra.mxu0 0
        %3641 = vmatprep.mubr.bf16.mxu0 0
        %3642 = vmatmul.mubr.bf16.gmra.mxu0 %v3607
        %v3643 = vpop.f32.mrf.mxu0
        %v3644 = vadd.f32 0.0, %v3643
        %v3645 = vpop.f32.mrf.mxu0
        %v3646 = vpop.f32.mrf.mxu0
        %v3647 = vpop.f32.mrf.mxu0
        %3648 = vdwg.mxu0
        %v3650 = vsel %vm3294, %v3389, 0
        %3652 = vmatprep.subr.bf16.mxu0 0
        %3653 = vmatpush1.bf16.msra.mxu0 0
        %3654 = vmatprep.subr.bf16.mxu0 0
        %3655 = vmatpush1.bf16.msra.mxu0 0
        %3656 = vmatprep.subr.bf16.mxu0 0
        %3657 = vmatpush1.bf16.msra.mxu0 0
        %3658 = vmatprep.subr.bf16.mxu0 0
        %3659 = vmatpush1.bf16.msra.mxu0 0
        %3660 = vmatprep.subr.bf16.mxu0 0
        %3661 = vmatpush1.bf16.msra.mxu0 0
        %3662 = vmatprep.subr.bf16.mxu0 0
        %3663 = vmatpush1.bf16.msra.mxu0 0
        %3664 = vmatprep.subr.bf16.mxu0 0
        %3665 = vmatpush1.bf16.msra.mxu0 0
        %3666 = vmatprep.subr.bf16.mxu0 0
        %3667 = vmatpush1.bf16.msra.mxu0 %v2923
        %3668 = vmatprep.subr.bf16.mxu0 0
        %3669 = vmatpush2.bf16.msra.mxu0 0
        %3670 = vmatprep.subr.bf16.mxu0 0
        %3671 = vmatpush2.bf16.msra.mxu0 0
        %3672 = vmatprep.subr.bf16.mxu0 0
        %3673 = vmatpush2.bf16.msra.mxu0 0
        %3674 = vmatprep.subr.bf16.mxu0 0
        %3675 = vmatpush2.bf16.msra.mxu0 0
        %3676 = vmatprep.subr.bf16.mxu0 0
        %3677 = vmatpush2.bf16.msra.mxu0 0
        %3678 = vmatprep.subr.bf16.mxu0 0
        %3679 = vmatpush2.bf16.msra.mxu0 0
        %3680 = vmatprep.subr.bf16.mxu0 0
        %3681 = vmatpush2.bf16.msra.mxu0 0
        %3682 = vmatprep.subr.bf16.mxu0 0
        %3683 = vmatpush2.bf16.msra.mxu0 0
        %3684 = vmatprep.mubr.bf16.mxu0 0
        %3685 = vmatmul.mubr.bf16.gmra.mxu0 %v3650
        %v3686 = vpop.f32.mrf.mxu0
        %v3687 = vadd.f32 0.0, %v3686
        %v3688 = vpop.f32.mrf.mxu0
        %v3689 = vpop.f32.mrf.mxu0
        %v3690 = vpop.f32.mrf.mxu0
        %3691 = vdwg.mxu0
        %v3693 = vsel %vm3294, %v3390, 0
        %3695 = vmatprep.subr.bf16.mxu0 0
        %3696 = vmatpush1.bf16.msra.mxu0 0
        %3697 = vmatprep.subr.bf16.mxu0 0
        %3698 = vmatpush1.bf16.msra.mxu0 0
        %3699 = vmatprep.subr.bf16.mxu0 0
        %3700 = vmatpush1.bf16.msra.mxu0 0
        %3701 = vmatprep.subr.bf16.mxu0 0
        %3702 = vmatpush1.bf16.msra.mxu0 0
        %3703 = vmatprep.subr.bf16.mxu0 0
        %3704 = vmatpush1.bf16.msra.mxu0 0
        %3705 = vmatprep.subr.bf16.mxu0 0
        %3706 = vmatpush1.bf16.msra.mxu0 0
        %3707 = vmatprep.subr.bf16.mxu0 0
        %3708 = vmatpush1.bf16.msra.mxu0 0
        %3709 = vmatprep.subr.bf16.mxu0 0
        %3710 = vmatpush1.bf16.msra.mxu0 %v2924
        %3711 = vmatprep.subr.bf16.mxu0 0
        %3712 = vmatpush2.bf16.msra.mxu0 0
        %3713 = vmatprep.subr.bf16.mxu0 0
        %3714 = vmatpush2.bf16.msra.mxu0 0
        %3715 = vmatprep.subr.bf16.mxu0 0
        %3716 = vmatpush2.bf16.msra.mxu0 0
        %3717 = vmatprep.subr.bf16.mxu0 0
        %3718 = vmatpush2.bf16.msra.mxu0 0
        %3719 = vmatprep.subr.bf16.mxu0 0
        %3720 = vmatpush2.bf16.msra.mxu0 0
        %3721 = vmatprep.subr.bf16.mxu0 0
        %3722 = vmatpush2.bf16.msra.mxu0 0
        %3723 = vmatprep.subr.bf16.mxu0 0
        %3724 = vmatpush2.bf16.msra.mxu0 0
        %3725 = vmatprep.subr.bf16.mxu0 0
        %3726 = vmatpush2.bf16.msra.mxu0 0
        %3727 = vmatprep.mubr.bf16.mxu0 0
        %3728 = vmatmul.mubr.bf16.gmra.mxu0 %v3693
        %v3729 = vpop.f32.mrf.mxu0
        %v3730 = vadd.f32 0.0, %v3729
        %v3731 = vpop.f32.mrf.mxu0
        %v3732 = vpop.f32.mrf.mxu0
        %v3733 = vpop.f32.mrf.mxu0
        %3734 = vdwg.mxu0
        %v3735 = vcombine.low %v3429, %v3515
        %v3736 = vcombine.high %v3429, %v3515
        %v3738 = vunpack.c.l.s4 1983009808
        %v3739 = vunpack.c.0.s8 %v3738
        %v3740 = vlaneseq
        %v3741 = vshrl.u32 %v3740, 7
        %v3742 = vsub.s32 %v3739, %v3741
        %v3743 = vrot.slane %v3735, %v3742
        %v3745 = vunpack.c.l.s4 1983009808
        %v3746 = vunpack.c.0.s8 %v3745
        %v3747 = vlaneseq
        %v3748 = vshrl.u32 %v3747, 7
        %v3749 = vsub.s32 %v3746, %v3748
        %v3750 = vrot.slane %v3736, %v3749
        %v3751 = vcombine.low %v3472, %v3558
        %v3752 = vcombine.high %v3472, %v3558
        %v3754 = vunpack.c.l.s4 1983009808
        %v3755 = vunpack.c.0.s8 %v3754
        %v3756 = vlaneseq
        %v3757 = vshrl.u32 %v3756, 7
        %v3758 = vsub.s32 %v3755, %v3757
        %v3759 = vrot.slane %v3751, %v3758
        %v3761 = vunpack.c.l.s4 1983009808
        %v3762 = vunpack.c.0.s8 %v3761
        %v3763 = vlaneseq
        %v3764 = vshrl.u32 %v3763, 7
        %v3765 = vsub.s32 %v3762, %v3764
        %v3766 = vrot.slane %v3752, %v3765
        %v3767 = vcombine.low %v3601, %v3687
        %v3768 = vcombine.high %v3601, %v3687
        %v3770 = vunpack.c.l.s4 1983009808
        %v3771 = vunpack.c.0.s8 %v3770
        %v3772 = vlaneseq
        %v3773 = vshrl.u32 %v3772, 7
        %v3774 = vsub.s32 %v3771, %v3773
        %v3775 = vrot.slane %v3767, %v3774
        %v3777 = vunpack.c.l.s4 1983009808
        %v3778 = vunpack.c.0.s8 %v3777
        %v3779 = vlaneseq
        %v3780 = vshrl.u32 %v3779, 7
        %v3781 = vsub.s32 %v3778, %v3780
        %v3782 = vrot.slane %v3768, %v3781
        %v3783 = vcombine.low %v3644, %v3730
        %v3784 = vcombine.high %v3644, %v3730
        %v3786 = vunpack.c.l.s4 1983009808
        %v3787 = vunpack.c.0.s8 %v3786
        %v3788 = vlaneseq
        %v3789 = vshrl.u32 %v3788, 7
        %v3790 = vsub.s32 %v3787, %v3789
        %v3791 = vrot.slane %v3783, %v3790
        %v3793 = vunpack.c.l.s4 1983009808
        %v3794 = vunpack.c.0.s8 %v3793
        %v3795 = vlaneseq
        %v3796 = vshrl.u32 %v3795, 7
        %v3797 = vsub.s32 %v3794, %v3796
        %v3798 = vrot.slane %v3784, %v3797
        %v3799 = vcombine.low %v3743, %v3759
        %v3800 = vcombine.high %v3743, %v3759
        %v3802 = vunpack.c.l.s4 1934713408
        %v3803 = vunpack.c.0.s8 %v3802
        %v3804 = vlaneseq
        %v3805 = vshrl.u32 %v3804, 7
        %v3806 = vsub.s32 %v3803, %v3805
        %v3807 = vrot.slane %v3799, %v3806
        %v3809 = vunpack.c.l.s4 1934713408
        %v3810 = vunpack.c.0.s8 %v3809
        %v3811 = vlaneseq
        %v3812 = vshrl.u32 %v3811, 7
        %v3813 = vsub.s32 %v3810, %v3812
        %v3814 = vrot.slane %v3800, %v3813
        %v3815 = vcombine.low %v3750, %v3766
        %v3816 = vcombine.high %v3750, %v3766
        %v3818 = vunpack.c.l.s4 1934713408
        %v3819 = vunpack.c.0.s8 %v3818
        %v3820 = vlaneseq
        %v3821 = vshrl.u32 %v3820, 7
        %v3822 = vsub.s32 %v3819, %v3821
        %v3823 = vrot.slane %v3815, %v3822
        %v3825 = vunpack.c.l.s4 1934713408
        %v3826 = vunpack.c.0.s8 %v3825
        %v3827 = vlaneseq
        %v3828 = vshrl.u32 %v3827, 7
        %v3829 = vsub.s32 %v3826, %v3828
        %v3830 = vrot.slane %v3816, %v3829
        %v3831 = vcombine.low %v3775, %v3791
        %v3832 = vcombine.high %v3775, %v3791
        %v3834 = vunpack.c.l.s4 1934713408
        %v3835 = vunpack.c.0.s8 %v3834
        %v3836 = vlaneseq
        %v3837 = vshrl.u32 %v3836, 7
        %v3838 = vsub.s32 %v3835, %v3837
        %v3839 = vrot.slane %v3831, %v3838
        %v3841 = vunpack.c.l.s4 1934713408
        %v3842 = vunpack.c.0.s8 %v3841
        %v3843 = vlaneseq
        %v3844 = vshrl.u32 %v3843, 7
        %v3845 = vsub.s32 %v3842, %v3844
        %v3846 = vrot.slane %v3832, %v3845
        %v3847 = vcombine.low %v3782, %v3798
        %v3848 = vcombine.high %v3782, %v3798
        %v3850 = vunpack.c.l.s4 1934713408
        %v3851 = vunpack.c.0.s8 %v3850
        %v3852 = vlaneseq
        %v3853 = vshrl.u32 %v3852, 7
        %v3854 = vsub.s32 %v3851, %v3853
        %v3855 = vrot.slane %v3847, %v3854
        %v3857 = vunpack.c.l.s4 1934713408
        %v3858 = vunpack.c.0.s8 %v3857
        %v3859 = vlaneseq
        %v3860 = vshrl.u32 %v3859, 7
        %v3861 = vsub.s32 %v3858, %v3860
        %v3862 = vrot.slane %v3848, %v3861
        %v3863 = vcombine.low %v3807, %v3839
        %v3864 = vcombine.high %v3807, %v3839
        %v3865 = vcombine.low %v3814, %v3846
        %v3866 = vcombine.high %v3814, %v3846
        %v3867 = vcombine.low %v3823, %v3855
        %v3868 = vcombine.high %v3823, %v3855
        %v3869 = vcombine.low %v3830, %v3862
        %v3870 = vcombine.high %v3830, %v3862
        %v3871 = vcombine.low %v3863, %v3865
        %v3872 = vcombine.high %v3863, %v3865
        %v3874 = vunpack.c.l.s4 1983009808
        %v3875 = vunpack.c.0.s8 %v3874
        %v3876 = vlaneseq
        %v3877 = vshrl.u32 %v3876, 7
        %v3878 = vsub.s32 %v3875, %v3877
        %v3879 = vrot.slane %v3871, %v3878
        %v3881 = vunpack.c.l.s4 1983009808
        %v3882 = vunpack.c.0.s8 %v3881
        %v3883 = vlaneseq
        %v3884 = vshrl.u32 %v3883, 7
        %v3885 = vsub.s32 %v3882, %v3884
        %v3886 = vrot.slane %v3872, %v3885
        %v3887 = vcombine.low %v3864, %v3866
        %v3888 = vcombine.high %v3864, %v3866
        %v3890 = vunpack.c.l.s4 1983009808
        %v3891 = vunpack.c.0.s8 %v3890
        %v3892 = vlaneseq
        %v3893 = vshrl.u32 %v3892, 7
        %v3894 = vsub.s32 %v3891, %v3893
        %v3895 = vrot.slane %v3887, %v3894
        %v3897 = vunpack.c.l.s4 1983009808
        %v3898 = vunpack.c.0.s8 %v3897
        %v3899 = vlaneseq
        %v3900 = vshrl.u32 %v3899, 7
        %v3901 = vsub.s32 %v3898, %v3900
        %v3902 = vrot.slane %v3888, %v3901
        %v3903 = vcombine.low %v3867, %v3869
        %v3904 = vcombine.high %v3867, %v3869
        %v3906 = vunpack.c.l.s4 1983009808
        %v3907 = vunpack.c.0.s8 %v3906
        %v3908 = vlaneseq
        %v3909 = vshrl.u32 %v3908, 7
        %v3910 = vsub.s32 %v3907, %v3909
        %v3911 = vrot.slane %v3903, %v3910
        %v3913 = vunpack.c.l.s4 1983009808
        %v3914 = vunpack.c.0.s8 %v3913
        %v3915 = vlaneseq
        %v3916 = vshrl.u32 %v3915, 7
        %v3917 = vsub.s32 %v3914, %v3916
        %v3918 = vrot.slane %v3904, %v3917
        %v3919 = vcombine.low %v3868, %v3870
        %v3920 = vcombine.high %v3868, %v3870
        %v3922 = vunpack.c.l.s4 1983009808
        %v3923 = vunpack.c.0.s8 %v3922
        %v3924 = vlaneseq
        %v3925 = vshrl.u32 %v3924, 7
        %v3926 = vsub.s32 %v3923, %v3925
        %v3927 = vrot.slane %v3919, %v3926
        %v3929 = vunpack.c.l.s4 1983009808
        %v3930 = vunpack.c.0.s8 %v3929
        %v3931 = vlaneseq
        %v3932 = vshrl.u32 %v3931, 7
        %v3933 = vsub.s32 %v3930, %v3932
        %v3934 = vrot.slane %v3920, %v3933
        %v3935 = vcombine.low %v3879, %v3895
        %v3936 = vcombine.high %v3879, %v3895
        %v3938 = vunpack.c.l.s4 1934713408
        %v3939 = vunpack.c.0.s8 %v3938
        %v3940 = vlaneseq
        %v3941 = vshrl.u32 %v3940, 7
        %v3942 = vsub.s32 %v3939, %v3941
        %v3943 = vrot.slane %v3935, %v3942
        %v3945 = vunpack.c.l.s4 1934713408
        %v3946 = vunpack.c.0.s8 %v3945
        %v3947 = vlaneseq
        %v3948 = vshrl.u32 %v3947, 7
        %v3949 = vsub.s32 %v3946, %v3948
        %v3950 = vrot.slane %v3936, %v3949
        %v3951 = vcombine.low %v3886, %v3902
        %v3952 = vcombine.high %v3886, %v3902
        %v3954 = vunpack.c.l.s4 1934713408
        %v3955 = vunpack.c.0.s8 %v3954
        %v3956 = vlaneseq
        %v3957 = vshrl.u32 %v3956, 7
        %v3958 = vsub.s32 %v3955, %v3957
        %v3959 = vrot.slane %v3951, %v3958
        %v3961 = vunpack.c.l.s4 1934713408
        %v3962 = vunpack.c.0.s8 %v3961
        %v3963 = vlaneseq
        %v3964 = vshrl.u32 %v3963, 7
        %v3965 = vsub.s32 %v3962, %v3964
        %v3966 = vrot.slane %v3952, %v3965
        %v3967 = vcombine.low %v3911, %v3927
        %v3968 = vcombine.high %v3911, %v3927
        %v3970 = vunpack.c.l.s4 1934713408
        %v3971 = vunpack.c.0.s8 %v3970
        %v3972 = vlaneseq
        %v3973 = vshrl.u32 %v3972, 7
        %v3974 = vsub.s32 %v3971, %v3973
        %v3975 = vrot.slane %v3967, %v3974
        %v3977 = vunpack.c.l.s4 1934713408
        %v3978 = vunpack.c.0.s8 %v3977
        %v3979 = vlaneseq
        %v3980 = vshrl.u32 %v3979, 7
        %v3981 = vsub.s32 %v3978, %v3980
        %v3982 = vrot.slane %v3968, %v3981
        %v3983 = vcombine.low %v3918, %v3934
        %v3984 = vcombine.high %v3918, %v3934
        %v3986 = vunpack.c.l.s4 1934713408
        %v3987 = vunpack.c.0.s8 %v3986
        %v3988 = vlaneseq
        %v3989 = vshrl.u32 %v3988, 7
        %v3990 = vsub.s32 %v3987, %v3989
        %v3991 = vrot.slane %v3983, %v3990
        %v3993 = vunpack.c.l.s4 1934713408
        %v3994 = vunpack.c.0.s8 %v3993
        %v3995 = vlaneseq
        %v3996 = vshrl.u32 %v3995, 7
        %v3997 = vsub.s32 %v3994, %v3996
        %v3998 = vrot.slane %v3984, %v3997
        %v3999 = vcombine.low %v3943, %v3975
        %v4000 = vcombine.high %v3943, %v3975
        %v4001 = vcombine.low %v3950, %v3982
        %v4002 = vcombine.high %v3950, %v3982
        %v4003 = vcombine.low %v3959, %v3991
        %v4004 = vcombine.high %v3959, %v3991
        %v4005 = vcombine.low %v3966, %v3998
        %v4006 = vcombine.high %v3966, %v3998
        %4008 = vrot.lane.b32.xlu0 %v4000, 32
        %v4009 = vpop.permute.xlu0 %4008
        %4012 = vrot.lane.b32.xlu0 %v4001, 64
        %v4013 = vpop.permute.xlu0 %4012
        %4016 = vrot.lane.b32.xlu0 %v4002, 96
        %v4017 = vpop.permute.xlu0 %4016
        %4020 = vrot.lane.b32.xlu0 %v4004, 32
        %v4021 = vpop.permute.xlu0 %4020
        %4024 = vrot.lane.b32.xlu0 %v4005, 64
        %v4025 = vpop.permute.xlu0 %4024
        %4028 = vrot.lane.b32.xlu0 %v4006, 96
        %v4029 = vpop.permute.xlu0 %4028
        %v4031 = vsel %vm2925, %v3999, %v4009
        %vm4032 = vcmask 523264
        %v4033 = vsel %vm4032, %v4031, %v4013
        %vm4034 = vcmask 785408
        %v4035 = vsel %vm4034, %v4033, %v4017
        %v4036 = vsel %vm2925, %v4003, %v4021
        %v4037 = vsel %vm4032, %v4036, %v4025
        %v4038 = vsel %vm4034, %v4037, %v4029
        %v4039 = vpack.c.bf16 %v4035, %v4035
        %v4040 = vpack.c.bf16 %v4038, %v4038
        %v4041 = vld [vmem:[#allocation10] sm:$0xff]
        %v4042 = vld [vmem:[#allocation10 + $0x8] sm:$0xff]
        %v4043 = vld [vmem:[#allocation10 + $0x10] sm:$0xff]
        %v4044 = vld [vmem:[#allocation10 + $0x18] sm:$0xff]
        %v4045 = vld [vmem:[#allocation10 + $0x20] sm:$0xff]
        %v4046 = vld [vmem:[#allocation10 + $0x28] sm:$0xff]
        %v4047 = vld [vmem:[#allocation10 + $0x30] sm:$0xff]
        %v4048 = vld [vmem:[#allocation10 + $0x38] sm:$0xff]
        %v4049 = vld [vmem:[#allocation10 + $0x40] sm:$0xff]
        %v4050 = vld [vmem:[#allocation10 + $0x48] sm:$0xff]
        %v4051 = vld [vmem:[#allocation10 + $0x50] sm:$0xff]
        %v4052 = vld [vmem:[#allocation10 + $0x58] sm:$0xff]
        %v4053 = vld [vmem:[#allocation10 + $0x60] sm:$0xff]
        %v4054 = vld [vmem:[#allocation10 + $0x68] sm:$0xff]
        %v4055 = vld [vmem:[#allocation10 + $0x70] sm:$0xff]
        %v4056 = vld [vmem:[#allocation10 + $0x78] sm:$0xff]
        %v4057 = vld [vmem:[#allocation10 + $0x80] sm:$0xff]
        %v4058 = vld [vmem:[#allocation10 + $0x88] sm:$0xff]
        %v4059 = vld [vmem:[#allocation10 + $0x90] sm:$0xff]
        %v4060 = vld [vmem:[#allocation10 + $0x98] sm:$0xff]
        %v4061 = vld [vmem:[#allocation10 + $0xa0] sm:$0xff]
        %v4062 = vld [vmem:[#allocation10 + $0xa8] sm:$0xff]
        %v4063 = vld [vmem:[#allocation10 + $0xb0] sm:$0xff]
        %v4064 = vld [vmem:[#allocation10 + $0xb8] sm:$0xff]
        %v4065 = vld [vmem:[#allocation10 + $0xc0] sm:$0xff]
        %v4066 = vld [vmem:[#allocation10 + $0xc8] sm:$0xff]
        %v4067 = vld [vmem:[#allocation10 + $0xd0] sm:$0xff]
        %v4068 = vld [vmem:[#allocation10 + $0xd8] sm:$0xff]
        %v4069 = vld [vmem:[#allocation10 + $0xe0] sm:$0xff]
        %v4070 = vld [vmem:[#allocation10 + $0xe8] sm:$0xff]
        %v4071 = vld [vmem:[#allocation10 + $0xf0] sm:$0xff]
        %v4072 = vld [vmem:[#allocation10 + $0xf8] sm:$0xff]
        %v4073 = vld [vmem:[%s7] sm:$0x3]
        %v4075 = vlaneseq
        %v4076 = vshrl.u32 %v4075, 7
        %v4077 = vsub.s32 0, %v4076
        %v4078 = vrot.slane %v4073, %v4077
        %v4079 = vlaneseq
        %v4080 = vshrl.u32 %v4079, 7
        %v4081 = vsub.s32 1, %v4080
        %v4082 = vrot.slane %v4073, %v4081
        %v4117 = vunpack.c.l.b16 %v4041
        %v4118 = vunpack.c.h.b16 %v4041
        %v4119 = vunpack.c.l.b16 %v4042
        %v4120 = vunpack.c.h.b16 %v4042
        %v4121 = vunpack.c.l.b16 %v4043
        %v4122 = vunpack.c.h.b16 %v4043
        %v4123 = vunpack.c.l.b16 %v4044
        %v4124 = vunpack.c.h.b16 %v4044
        %v4125 = vunpack.c.l.b16 %v4045
        %v4126 = vunpack.c.h.b16 %v4045
        %v4127 = vunpack.c.l.b16 %v4046
        %v4128 = vunpack.c.h.b16 %v4046
        %v4129 = vunpack.c.l.b16 %v4047
        %v4130 = vunpack.c.h.b16 %v4047
        %v4131 = vunpack.c.l.b16 %v4048
        %v4132 = vunpack.c.h.b16 %v4048
        %v4133 = vunpack.c.l.b16 %v4049
        %v4134 = vunpack.c.h.b16 %v4049
        %v4135 = vunpack.c.l.b16 %v4050
        %v4136 = vunpack.c.h.b16 %v4050
        %v4137 = vunpack.c.l.b16 %v4051
        %v4138 = vunpack.c.h.b16 %v4051
        %v4139 = vunpack.c.l.b16 %v4052
        %v4140 = vunpack.c.h.b16 %v4052
        %v4141 = vunpack.c.l.b16 %v4053
        %v4142 = vunpack.c.h.b16 %v4053
        %v4143 = vunpack.c.l.b16 %v4054
        %v4144 = vunpack.c.h.b16 %v4054
        %v4145 = vunpack.c.l.b16 %v4055
        %v4146 = vunpack.c.h.b16 %v4055
        %v4147 = vunpack.c.l.b16 %v4056
        %v4148 = vunpack.c.h.b16 %v4056
        %v4149 = vunpack.c.l.b16 %v4057
        %v4150 = vunpack.c.h.b16 %v4057
        %v4151 = vunpack.c.l.b16 %v4058
        %v4152 = vunpack.c.h.b16 %v4058
        %v4153 = vunpack.c.l.b16 %v4059
        %v4154 = vunpack.c.h.b16 %v4059
        %v4155 = vunpack.c.l.b16 %v4060
        %v4156 = vunpack.c.h.b16 %v4060
        %v4157 = vunpack.c.l.b16 %v4061
        %v4158 = vunpack.c.h.b16 %v4061
        %v4159 = vunpack.c.l.b16 %v4062
        %v4160 = vunpack.c.h.b16 %v4062
        %v4161 = vunpack.c.l.b16 %v4063
        %v4162 = vunpack.c.h.b16 %v4063
        %v4163 = vunpack.c.l.b16 %v4064
        %v4164 = vunpack.c.h.b16 %v4064
        %v4165 = vunpack.c.l.b16 %v4065
        %v4166 = vunpack.c.h.b16 %v4065
        %v4167 = vunpack.c.l.b16 %v4066
        %v4168 = vunpack.c.h.b16 %v4066
        %v4169 = vunpack.c.l.b16 %v4067
        %v4170 = vunpack.c.h.b16 %v4067
        %v4171 = vunpack.c.l.b16 %v4068
        %v4172 = vunpack.c.h.b16 %v4068
        %v4173 = vunpack.c.l.b16 %v4069
        %v4174 = vunpack.c.h.b16 %v4069
        %v4175 = vunpack.c.l.b16 %v4070
        %v4176 = vunpack.c.h.b16 %v4070
        %v4177 = vunpack.c.l.b16 %v4071
        %v4178 = vunpack.c.h.b16 %v4071
        %v4179 = vunpack.c.l.b16 %v4072
        %v4180 = vunpack.c.h.b16 %v4072
        %v4181 = vpack.c.b16 %v4119, %v4117
        %v4182 = vpack.c.b16 %v4120, %v4118
        %v4183 = vpack.c.b16 %v4123, %v4121
        %v4184 = vpack.c.b16 %v4124, %v4122
        %v4185 = vpack.c.b16 %v4127, %v4125
        %v4186 = vpack.c.b16 %v4128, %v4126
        %v4187 = vpack.c.b16 %v4131, %v4129
        %v4188 = vpack.c.b16 %v4132, %v4130
        %v4189 = vpack.c.b16 %v4135, %v4133
        %v4190 = vpack.c.b16 %v4136, %v4134
        %v4191 = vpack.c.b16 %v4139, %v4137
        %v4192 = vpack.c.b16 %v4140, %v4138
        %v4193 = vpack.c.b16 %v4143, %v4141
        %v4194 = vpack.c.b16 %v4144, %v4142
        %v4195 = vpack.c.b16 %v4147, %v4145
        %v4196 = vpack.c.b16 %v4148, %v4146
        %v4197 = vpack.c.b16 %v4151, %v4149
        %v4198 = vpack.c.b16 %v4152, %v4150
        %v4199 = vpack.c.b16 %v4155, %v4153
        %v4200 = vpack.c.b16 %v4156, %v4154
        %v4201 = vpack.c.b16 %v4159, %v4157
        %v4202 = vpack.c.b16 %v4160, %v4158
        %v4203 = vpack.c.b16 %v4163, %v4161
        %v4204 = vpack.c.b16 %v4164, %v4162
        %v4205 = vpack.c.b16 %v4167, %v4165
        %v4206 = vpack.c.b16 %v4168, %v4166
        %v4207 = vpack.c.b16 %v4171, %v4169
        %v4208 = vpack.c.b16 %v4172, %v4170
        %v4209 = vpack.c.b16 %v4175, %v4173
        %v4210 = vpack.c.b16 %v4176, %v4174
        %v4211 = vpack.c.b16 %v4179, %v4177
        %v4212 = vpack.c.b16 %v4180, %v4178
        %4245 = vmatprep.subr.bf16.mxu0 %v4196
        %4246 = vmatpush1.bf16.msra.mxu0 %v4195
        %4247 = vmatprep.subr.bf16.mxu0 %v4194
        %4248 = vmatpush1.bf16.msra.mxu0 %v4193
        %4249 = vmatprep.subr.bf16.mxu0 %v4192
        %4250 = vmatpush1.bf16.msra.mxu0 %v4191
        %4251 = vmatprep.subr.bf16.mxu0 %v4190
        %4252 = vmatpush1.bf16.msra.mxu0 %v4189
        %4253 = vmatprep.subr.bf16.mxu0 %v4188
        %4254 = vmatpush1.bf16.msra.mxu0 %v4187
        %4255 = vmatprep.subr.bf16.mxu0 %v4186
        %4256 = vmatpush1.bf16.msra.mxu0 %v4185
        %4257 = vmatprep.subr.bf16.mxu0 %v4184
        %4258 = vmatpush1.bf16.msra.mxu0 %v4183
        %4259 = vmatprep.subr.bf16.mxu0 %v4182
        %4260 = vmatpush1.bf16.msra.mxu0 %v4181
        %4261 = vmatprep.subr.bf16.mxu0 %v4212
        %4262 = vmatpush2.bf16.msra.mxu0 %v4211
        %4263 = vmatprep.subr.bf16.mxu0 %v4210
        %4264 = vmatpush2.bf16.msra.mxu0 %v4209
        %4265 = vmatprep.subr.bf16.mxu0 %v4208
        %4266 = vmatpush2.bf16.msra.mxu0 %v4207
        %4267 = vmatprep.subr.bf16.mxu0 %v4206
        %4268 = vmatpush2.bf16.msra.mxu0 %v4205
        %4269 = vmatprep.subr.bf16.mxu0 %v4204
        %4270 = vmatpush2.bf16.msra.mxu0 %v4203
        %4271 = vmatprep.subr.bf16.mxu0 %v4202
        %4272 = vmatpush2.bf16.msra.mxu0 %v4201
        %4273 = vmatprep.subr.bf16.mxu0 %v4200
        %4274 = vmatpush2.bf16.msra.mxu0 %v4199
        %4275 = vmatprep.subr.bf16.mxu0 %v4198
        %4276 = vmatpush2.bf16.msra.mxu0 %v4197
        %4277 = vmatprep.mubr.bf16.mxu0 %v4040
        %4278 = vmatmul.mubr.bf16.gmra.mxu0 %v4039
        %v4279 = vpop.f32.mrf.mxu0
        %v4280 = vadd.f32 %v4078, %v4279
        %v4281 = vpop.f32.mrf.mxu0
        %v4282 = vadd.f32 %v4082, %v4281
        %v4283 = vpop.f32.mrf.mxu0
        %v4284 = vpop.f32.mrf.mxu0
        %4285 = vdwg.mxu0
        %v4286 = vadd.f32 %v694, %v4280
        %v4287 = vadd.f32 %v695, %v4282
        %v4288 = vld [vmem:[#allocation11] sm:$0x3]
        %v4289 = vld [vmem:[#allocation13] sm:$0x3]
        %v4290 = vadd.f32 %v4286, %v4287
        %4291 = vadd.xlane.f32.xlu0 %v4290
        %v4292 = vpop.xlane.xlu0 %4291
        %v4293 = vrcp.pop 256.0
        %v4294 = vmul.f32 %v4292, %v4293
        %v4295 = vsub.f32 %v4286, %v4294
        %v4296 = vsub.f32 %v4287, %v4294
        %v4297 = vmul.f32 %v4295, %v4295
        %v4298 = vmul.f32 %v4296, %v4296
        %v4299 = vadd.f32 %v4297, %v4298
        %4300 = vadd.xlane.f32.xlu0 %v4299
        %v4301 = vpop.xlane.xlu0 %4300
        %v4302 = vmul.f32 %v4301, %v4293
        %v4303 = vadd.f32 %v4302, 1e-05
        %v4304 = vrsqrt.pop %v4303
        %v4305 = vmul.f32 %v4295, %v4304
        %v4306 = vmul.f32 %v4296, %v4304
        %v4308 = vlaneseq
        %v4309 = vshrl.u32 %v4308, 7
        %v4310 = vsub.s32 0, %v4309
        %v4311 = vrot.slane %v4288, %v4310
        %v4312 = vlaneseq
        %v4313 = vshrl.u32 %v4312, 7
        %v4314 = vsub.s32 1, %v4313
        %v4315 = vrot.slane %v4288, %v4314
        %v4318 = vmul.f32 %v4305, %v4311
        %v4319 = vmul.f32 %v4306, %v4315
        %v4321 = vlaneseq
        %v4322 = vshrl.u32 %v4321, 7
        %v4323 = vsub.s32 0, %v4322
        %v4324 = vrot.slane %v4289, %v4323
        %v4325 = vlaneseq
        %v4326 = vshrl.u32 %v4325, 7
        %v4327 = vsub.s32 1, %v4326
        %v4328 = vrot.slane %v4289, %v4327
        %v4331 = vadd.f32 %v4318, %v4324
        %v4332 = vadd.f32 %v4319, %v4328
        %v4333 = vpack.c.bf16 %v4331, %v4331
        %v4334 = vpack.c.bf16 %v4332, %v4332
        %v4335 = vld [vmem:[#allocation14] sm:$0xff]
        %v4336 = vld [vmem:[#allocation14 + $0x8] sm:$0xff]
        %v4337 = vld [vmem:[#allocation14 + $0x10] sm:$0xff]
        %v4338 = vld [vmem:[#allocation14 + $0x18] sm:$0xff]
        %v4339 = vld [vmem:[#allocation14 + $0x20] sm:$0xff]
        %v4340 = vld [vmem:[#allocation14 + $0x28] sm:$0xff]
        %v4341 = vld [vmem:[#allocation14 + $0x30] sm:$0xff]
        %v4342 = vld [vmem:[#allocation14 + $0x38] sm:$0xff]
        %v4343 = vld [vmem:[#allocation14 + $0x40] sm:$0xff]
        %v4344 = vld [vmem:[#allocation14 + $0x48] sm:$0xff]
        %v4345 = vld [vmem:[#allocation14 + $0x50] sm:$0xff]
        %v4346 = vld [vmem:[#allocation14 + $0x58] sm:$0xff]
        %v4347 = vld [vmem:[#allocation14 + $0x60] sm:$0xff]
        %v4348 = vld [vmem:[#allocation14 + $0x68] sm:$0xff]
        %v4349 = vld [vmem:[#allocation14 + $0x70] sm:$0xff]
        %v4350 = vld [vmem:[#allocation14 + $0x78] sm:$0xff]
        %v4351 = vld [vmem:[#allocation14 + $0x80] sm:$0xff]
        %v4352 = vld [vmem:[#allocation14 + $0x88] sm:$0xff]
        %v4353 = vld [vmem:[#allocation14 + $0x90] sm:$0xff]
        %v4354 = vld [vmem:[#allocation14 + $0x98] sm:$0xff]
        %v4355 = vld [vmem:[#allocation14 + $0xa0] sm:$0xff]
        %v4356 = vld [vmem:[#allocation14 + $0xa8] sm:$0xff]
        %v4357 = vld [vmem:[#allocation14 + $0xb0] sm:$0xff]
        %v4358 = vld [vmem:[#allocation14 + $0xb8] sm:$0xff]
        %v4359 = vld [vmem:[#allocation14 + $0xc0] sm:$0xff]
        %v4360 = vld [vmem:[#allocation14 + $0xc8] sm:$0xff]
        %v4361 = vld [vmem:[#allocation14 + $0xd0] sm:$0xff]
        %v4362 = vld [vmem:[#allocation14 + $0xd8] sm:$0xff]
        %v4363 = vld [vmem:[#allocation14 + $0xe0] sm:$0xff]
        %v4364 = vld [vmem:[#allocation14 + $0xe8] sm:$0xff]
        %v4365 = vld [vmem:[#allocation14 + $0xf0] sm:$0xff]
        %v4366 = vld [vmem:[#allocation14 + $0xf8] sm:$0xff]
        %v4367 = vld [vmem:[#allocation14 + $0x100] sm:$0xff]
        %v4368 = vld [vmem:[#allocation14 + $0x108] sm:$0xff]
        %v4369 = vld [vmem:[#allocation14 + $0x110] sm:$0xff]
        %v4370 = vld [vmem:[#allocation14 + $0x118] sm:$0xff]
        %v4371 = vld [vmem:[#allocation14 + $0x120] sm:$0xff]
        %v4372 = vld [vmem:[#allocation14 + $0x128] sm:$0xff]
        %v4373 = vld [vmem:[#allocation14 + $0x130] sm:$0xff]
        %v4374 = vld [vmem:[#allocation14 + $0x138] sm:$0xff]
        %v4375 = vld [vmem:[#allocation14 + $0x140] sm:$0xff]
        %v4376 = vld [vmem:[#allocation14 + $0x148] sm:$0xff]
        %v4377 = vld [vmem:[#allocation14 + $0x150] sm:$0xff]
        %v4378 = vld [vmem:[#allocation14 + $0x158] sm:$0xff]
        %v4379 = vld [vmem:[#allocation14 + $0x160] sm:$0xff]
        %v4380 = vld [vmem:[#allocation14 + $0x168] sm:$0xff]
        %v4381 = vld [vmem:[#allocation14 + $0x170] sm:$0xff]
        %v4382 = vld [vmem:[#allocation14 + $0x178] sm:$0xff]
        %v4383 = vld [vmem:[#allocation14 + $0x180] sm:$0xff]
        %v4384 = vld [vmem:[#allocation14 + $0x188] sm:$0xff]
        %v4385 = vld [vmem:[#allocation14 + $0x190] sm:$0xff]
        %v4386 = vld [vmem:[#allocation14 + $0x198] sm:$0xff]
        %v4387 = vld [vmem:[#allocation14 + $0x1a0] sm:$0xff]
        %v4388 = vld [vmem:[#allocation14 + $0x1a8] sm:$0xff]
        %v4389 = vld [vmem:[#allocation14 + $0x1b0] sm:$0xff]
        %v4390 = vld [vmem:[#allocation14 + $0x1b8] sm:$0xff]
        %v4391 = vld [vmem:[#allocation14 + $0x1c0] sm:$0xff]
        %v4392 = vld [vmem:[#allocation14 + $0x1c8] sm:$0xff]
        %v4393 = vld [vmem:[#allocation14 + $0x1d0] sm:$0xff]
        %v4394 = vld [vmem:[#allocation14 + $0x1d8] sm:$0xff]
        %v4395 = vld [vmem:[#allocation14 + $0x1e0] sm:$0xff]
        %v4396 = vld [vmem:[#allocation14 + $0x1e8] sm:$0xff]
        %v4397 = vld [vmem:[#allocation14 + $0x1f0] sm:$0xff]
        %v4398 = vld [vmem:[#allocation14 + $0x1f8] sm:$0xff]
        %v4399 = vld [vmem:[#allocation14 + $0x200] sm:$0xff]
        %v4400 = vld [vmem:[#allocation14 + $0x208] sm:$0xff]
        %v4401 = vld [vmem:[#allocation14 + $0x210] sm:$0xff]
        %v4402 = vld [vmem:[#allocation14 + $0x218] sm:$0xff]
        %v4403 = vld [vmem:[#allocation14 + $0x220] sm:$0xff]
        %v4404 = vld [vmem:[#allocation14 + $0x228] sm:$0xff]
        %v4405 = vld [vmem:[#allocation14 + $0x230] sm:$0xff]
        %v4406 = vld [vmem:[#allocation14 + $0x238] sm:$0xff]
        %v4407 = vld [vmem:[#allocation14 + $0x240] sm:$0xff]
        %v4408 = vld [vmem:[#allocation14 + $0x248] sm:$0xff]
        %v4409 = vld [vmem:[#allocation14 + $0x250] sm:$0xff]
        %v4410 = vld [vmem:[#allocation14 + $0x258] sm:$0xff]
        %v4411 = vld [vmem:[#allocation14 + $0x260] sm:$0xff]
        %v4412 = vld [vmem:[#allocation14 + $0x268] sm:$0xff]
        %v4413 = vld [vmem:[#allocation14 + $0x270] sm:$0xff]
        %v4414 = vld [vmem:[#allocation14 + $0x278] sm:$0xff]
        %v4415 = vld [vmem:[#allocation14 + $0x280] sm:$0xff]
        %v4416 = vld [vmem:[#allocation14 + $0x288] sm:$0xff]
        %v4417 = vld [vmem:[#allocation14 + $0x290] sm:$0xff]
        %v4418 = vld [vmem:[#allocation14 + $0x298] sm:$0xff]
        %v4419 = vld [vmem:[#allocation14 + $0x2a0] sm:$0xff]
        %v4420 = vld [vmem:[#allocation14 + $0x2a8] sm:$0xff]
        %v4421 = vld [vmem:[#allocation14 + $0x2b0] sm:$0xff]
        %v4422 = vld [vmem:[#allocation14 + $0x2b8] sm:$0xff]
        %v4423 = vld [vmem:[#allocation14 + $0x2c0] sm:$0xff]
        %v4424 = vld [vmem:[#allocation14 + $0x2c8] sm:$0xff]
        %v4425 = vld [vmem:[#allocation14 + $0x2d0] sm:$0xff]
        %v4426 = vld [vmem:[#allocation14 + $0x2d8] sm:$0xff]
        %v4427 = vld [vmem:[#allocation14 + $0x2e0] sm:$0xff]
        %v4428 = vld [vmem:[#allocation14 + $0x2e8] sm:$0xff]
        %v4429 = vld [vmem:[#allocation14 + $0x2f0] sm:$0xff]
        %v4430 = vld [vmem:[#allocation14 + $0x2f8] sm:$0xff]
        %v4431 = vld [vmem:[#allocation14 + $0x300] sm:$0xff]
        %v4432 = vld [vmem:[#allocation14 + $0x308] sm:$0xff]
        %v4433 = vld [vmem:[#allocation14 + $0x310] sm:$0xff]
        %v4434 = vld [vmem:[#allocation14 + $0x318] sm:$0xff]
        %v4435 = vld [vmem:[#allocation14 + $0x320] sm:$0xff]
        %v4436 = vld [vmem:[#allocation14 + $0x328] sm:$0xff]
        %v4437 = vld [vmem:[#allocation14 + $0x330] sm:$0xff]
        %v4438 = vld [vmem:[#allocation14 + $0x338] sm:$0xff]
        %v4439 = vld [vmem:[#allocation14 + $0x340] sm:$0xff]
        %v4440 = vld [vmem:[#allocation14 + $0x348] sm:$0xff]
        %v4441 = vld [vmem:[#allocation14 + $0x350] sm:$0xff]
        %v4442 = vld [vmem:[#allocation14 + $0x358] sm:$0xff]
        %v4443 = vld [vmem:[#allocation14 + $0x360] sm:$0xff]
        %v4444 = vld [vmem:[#allocation14 + $0x368] sm:$0xff]
        %v4445 = vld [vmem:[#allocation14 + $0x370] sm:$0xff]
        %v4446 = vld [vmem:[#allocation14 + $0x378] sm:$0xff]
        %v4447 = vld [vmem:[#allocation14 + $0x380] sm:$0xff]
        %v4448 = vld [vmem:[#allocation14 + $0x388] sm:$0xff]
        %v4449 = vld [vmem:[#allocation14 + $0x390] sm:$0xff]
        %v4450 = vld [vmem:[#allocation14 + $0x398] sm:$0xff]
        %v4451 = vld [vmem:[#allocation14 + $0x3a0] sm:$0xff]
        %v4452 = vld [vmem:[#allocation14 + $0x3a8] sm:$0xff]
        %v4453 = vld [vmem:[#allocation14 + $0x3b0] sm:$0xff]
        %v4454 = vld [vmem:[#allocation14 + $0x3b8] sm:$0xff]
        %v4455 = vld [vmem:[#allocation14 + $0x3c0] sm:$0xff]
        %v4456 = vld [vmem:[#allocation14 + $0x3c8] sm:$0xff]
        %v4457 = vld [vmem:[#allocation14 + $0x3d0] sm:$0xff]
        %v4458 = vld [vmem:[#allocation14 + $0x3d8] sm:$0xff]
        %v4459 = vld [vmem:[#allocation14 + $0x3e0] sm:$0xff]
        %v4460 = vld [vmem:[#allocation14 + $0x3e8] sm:$0xff]
        %v4461 = vld [vmem:[#allocation14 + $0x3f0] sm:$0xff]
        %v4462 = vld [vmem:[#allocation14 + $0x3f8] sm:$0xff]
        %v4463 = vld [vmem:[%s11] sm:$0xff]
        %v4465 = vlaneseq
        %v4466 = vshrl.u32 %v4465, 7
        %v4467 = vsub.s32 0, %v4466
        %v4468 = vrot.slane %v4463, %v4467
        %v4469 = vlaneseq
        %v4470 = vshrl.u32 %v4469, 7
        %v4471 = vsub.s32 1, %v4470
        %v4472 = vrot.slane %v4463, %v4471
        %v4473 = vlaneseq
        %v4474 = vshrl.u32 %v4473, 7
        %v4475 = vsub.s32 2, %v4474
        %v4476 = vrot.slane %v4463, %v4475
        %v4477 = vlaneseq
        %v4478 = vshrl.u32 %v4477, 7
        %v4479 = vsub.s32 3, %v4478
        %v4480 = vrot.slane %v4463, %v4479
        %v4481 = vlaneseq
        %v4482 = vshrl.u32 %v4481, 7
        %v4483 = vsub.s32 4, %v4482
        %v4484 = vrot.slane %v4463, %v4483
        %v4485 = vlaneseq
        %v4486 = vshrl.u32 %v4485, 7
        %v4487 = vsub.s32 5, %v4486
        %v4488 = vrot.slane %v4463, %v4487
        %v4489 = vlaneseq
        %v4490 = vshrl.u32 %v4489, 7
        %v4491 = vsub.s32 6, %v4490
        %v4492 = vrot.slane %v4463, %v4491
        %v4493 = vlaneseq
        %v4494 = vshrl.u32 %v4493, 7
        %v4495 = vsub.s32 7, %v4494
        %v4496 = vrot.slane %v4463, %v4495
        %v4633 = vunpack.c.l.b16 %v4335
        %v4634 = vunpack.c.h.b16 %v4335
        %v4635 = vunpack.c.l.b16 %v4336
        %v4636 = vunpack.c.h.b16 %v4336
        %v4637 = vunpack.c.l.b16 %v4337
        %v4638 = vunpack.c.h.b16 %v4337
        %v4639 = vunpack.c.l.b16 %v4338
        %v4640 = vunpack.c.h.b16 %v4338
        %v4641 = vunpack.c.l.b16 %v4339
        %v4642 = vunpack.c.h.b16 %v4339
        %v4643 = vunpack.c.l.b16 %v4340
        %v4644 = vunpack.c.h.b16 %v4340
        %v4645 = vunpack.c.l.b16 %v4341
        %v4646 = vunpack.c.h.b16 %v4341
        %v4647 = vunpack.c.l.b16 %v4342
        %v4648 = vunpack.c.h.b16 %v4342
        %v4649 = vunpack.c.l.b16 %v4343
        %v4650 = vunpack.c.h.b16 %v4343
        %v4651 = vunpack.c.l.b16 %v4344
        %v4652 = vunpack.c.h.b16 %v4344
        %v4653 = vunpack.c.l.b16 %v4345
        %v4654 = vunpack.c.h.b16 %v4345
        %v4655 = vunpack.c.l.b16 %v4346
        %v4656 = vunpack.c.h.b16 %v4346
        %v4657 = vunpack.c.l.b16 %v4347
        %v4658 = vunpack.c.h.b16 %v4347
        %v4659 = vunpack.c.l.b16 %v4348
        %v4660 = vunpack.c.h.b16 %v4348
        %v4661 = vunpack.c.l.b16 %v4349
        %v4662 = vunpack.c.h.b16 %v4349
        %v4663 = vunpack.c.l.b16 %v4350
        %v4664 = vunpack.c.h.b16 %v4350
        %v4665 = vunpack.c.l.b16 %v4351
        %v4666 = vunpack.c.h.b16 %v4351
        %v4667 = vunpack.c.l.b16 %v4352
        %v4668 = vunpack.c.h.b16 %v4352
        %v4669 = vunpack.c.l.b16 %v4353
        %v4670 = vunpack.c.h.b16 %v4353
        %v4671 = vunpack.c.l.b16 %v4354
        %v4672 = vunpack.c.h.b16 %v4354
        %v4673 = vunpack.c.l.b16 %v4355
        %v4674 = vunpack.c.h.b16 %v4355
        %v4675 = vunpack.c.l.b16 %v4356
        %v4676 = vunpack.c.h.b16 %v4356
        %v4677 = vunpack.c.l.b16 %v4357
        %v4678 = vunpack.c.h.b16 %v4357
        %v4679 = vunpack.c.l.b16 %v4358
        %v4680 = vunpack.c.h.b16 %v4358
        %v4681 = vunpack.c.l.b16 %v4359
        %v4682 = vunpack.c.h.b16 %v4359
        %v4683 = vunpack.c.l.b16 %v4360
        %v4684 = vunpack.c.h.b16 %v4360
        %v4685 = vunpack.c.l.b16 %v4361
        %v4686 = vunpack.c.h.b16 %v4361
        %v4687 = vunpack.c.l.b16 %v4362
        %v4688 = vunpack.c.h.b16 %v4362
        %v4689 = vunpack.c.l.b16 %v4363
        %v4690 = vunpack.c.h.b16 %v4363
        %v4691 = vunpack.c.l.b16 %v4364
        %v4692 = vunpack.c.h.b16 %v4364
        %v4693 = vunpack.c.l.b16 %v4365
        %v4694 = vunpack.c.h.b16 %v4365
        %v4695 = vunpack.c.l.b16 %v4366
        %v4696 = vunpack.c.h.b16 %v4366
        %v4697 = vunpack.c.l.b16 %v4367
        %v4698 = vunpack.c.h.b16 %v4367
        %v4699 = vunpack.c.l.b16 %v4368
        %v4700 = vunpack.c.h.b16 %v4368
        %v4701 = vunpack.c.l.b16 %v4369
        %v4702 = vunpack.c.h.b16 %v4369
        %v4703 = vunpack.c.l.b16 %v4370
        %v4704 = vunpack.c.h.b16 %v4370
        %v4705 = vunpack.c.l.b16 %v4371
        %v4706 = vunpack.c.h.b16 %v4371
        %v4707 = vunpack.c.l.b16 %v4372
        %v4708 = vunpack.c.h.b16 %v4372
        %v4709 = vunpack.c.l.b16 %v4373
        %v4710 = vunpack.c.h.b16 %v4373
        %v4711 = vunpack.c.l.b16 %v4374
        %v4712 = vunpack.c.h.b16 %v4374
        %v4713 = vunpack.c.l.b16 %v4375
        %v4714 = vunpack.c.h.b16 %v4375
        %v4715 = vunpack.c.l.b16 %v4376
        %v4716 = vunpack.c.h.b16 %v4376
        %v4717 = vunpack.c.l.b16 %v4377
        %v4718 = vunpack.c.h.b16 %v4377
        %v4719 = vunpack.c.l.b16 %v4378
        %v4720 = vunpack.c.h.b16 %v4378
        %v4721 = vunpack.c.l.b16 %v4379
        %v4722 = vunpack.c.h.b16 %v4379
        %v4723 = vunpack.c.l.b16 %v4380
        %v4724 = vunpack.c.h.b16 %v4380
        %v4725 = vunpack.c.l.b16 %v4381
        %v4726 = vunpack.c.h.b16 %v4381
        %v4727 = vunpack.c.l.b16 %v4382
        %v4728 = vunpack.c.h.b16 %v4382
        %v4729 = vunpack.c.l.b16 %v4383
        %v4730 = vunpack.c.h.b16 %v4383
        %v4731 = vunpack.c.l.b16 %v4384
        %v4732 = vunpack.c.h.b16 %v4384
        %v4733 = vunpack.c.l.b16 %v4385
        %v4734 = vunpack.c.h.b16 %v4385
        %v4735 = vunpack.c.l.b16 %v4386
        %v4736 = vunpack.c.h.b16 %v4386
        %v4737 = vunpack.c.l.b16 %v4387
        %v4738 = vunpack.c.h.b16 %v4387
        %v4739 = vunpack.c.l.b16 %v4388
        %v4740 = vunpack.c.h.b16 %v4388
        %v4741 = vunpack.c.l.b16 %v4389
        %v4742 = vunpack.c.h.b16 %v4389
        %v4743 = vunpack.c.l.b16 %v4390
        %v4744 = vunpack.c.h.b16 %v4390
        %v4745 = vunpack.c.l.b16 %v4391
        %v4746 = vunpack.c.h.b16 %v4391
        %v4747 = vunpack.c.l.b16 %v4392
        %v4748 = vunpack.c.h.b16 %v4392
        %v4749 = vunpack.c.l.b16 %v4393
        %v4750 = vunpack.c.h.b16 %v4393
        %v4751 = vunpack.c.l.b16 %v4394
        %v4752 = vunpack.c.h.b16 %v4394
        %v4753 = vunpack.c.l.b16 %v4395
        %v4754 = vunpack.c.h.b16 %v4395
        %v4755 = vunpack.c.l.b16 %v4396
        %v4756 = vunpack.c.h.b16 %v4396
        %v4757 = vunpack.c.l.b16 %v4397
        %v4758 = vunpack.c.h.b16 %v4397
        %v4759 = vunpack.c.l.b16 %v4398
        %v4760 = vunpack.c.h.b16 %v4398
        %v4761 = vunpack.c.l.b16 %v4399
        %v4762 = vunpack.c.h.b16 %v4399
        %v4763 = vunpack.c.l.b16 %v4400
        %v4764 = vunpack.c.h.b16 %v4400
        %v4765 = vunpack.c.l.b16 %v4401
        %v4766 = vunpack.c.h.b16 %v4401
        %v4767 = vunpack.c.l.b16 %v4402
        %v4768 = vunpack.c.h.b16 %v4402
        %v4769 = vunpack.c.l.b16 %v4403
        %v4770 = vunpack.c.h.b16 %v4403
        %v4771 = vunpack.c.l.b16 %v4404
        %v4772 = vunpack.c.h.b16 %v4404
        %v4773 = vunpack.c.l.b16 %v4405
        %v4774 = vunpack.c.h.b16 %v4405
        %v4775 = vunpack.c.l.b16 %v4406
        %v4776 = vunpack.c.h.b16 %v4406
        %v4777 = vunpack.c.l.b16 %v4407
        %v4778 = vunpack.c.h.b16 %v4407
        %v4779 = vunpack.c.l.b16 %v4408
        %v4780 = vunpack.c.h.b16 %v4408
        %v4781 = vunpack.c.l.b16 %v4409
        %v4782 = vunpack.c.h.b16 %v4409
        %v4783 = vunpack.c.l.b16 %v4410
        %v4784 = vunpack.c.h.b16 %v4410
        %v4785 = vunpack.c.l.b16 %v4411
        %v4786 = vunpack.c.h.b16 %v4411
        %v4787 = vunpack.c.l.b16 %v4412
        %v4788 = vunpack.c.h.b16 %v4412
        %v4789 = vunpack.c.l.b16 %v4413
        %v4790 = vunpack.c.h.b16 %v4413
        %v4791 = vunpack.c.l.b16 %v4414
        %v4792 = vunpack.c.h.b16 %v4414
        %v4793 = vunpack.c.l.b16 %v4415
        %v4794 = vunpack.c.h.b16 %v4415
        %v4795 = vunpack.c.l.b16 %v4416
        %v4796 = vunpack.c.h.b16 %v4416
        %v4797 = vunpack.c.l.b16 %v4417
        %v4798 = vunpack.c.h.b16 %v4417
        %v4799 = vunpack.c.l.b16 %v4418
        %v4800 = vunpack.c.h.b16 %v4418
        %v4801 = vunpack.c.l.b16 %v4419
        %v4802 = vunpack.c.h.b16 %v4419
        %v4803 = vunpack.c.l.b16 %v4420
        %v4804 = vunpack.c.h.b16 %v4420
        %v4805 = vunpack.c.l.b16 %v4421
        %v4806 = vunpack.c.h.b16 %v4421
        %v4807 = vunpack.c.l.b16 %v4422
        %v4808 = vunpack.c.h.b16 %v4422
        %v4809 = vunpack.c.l.b16 %v4423
        %v4810 = vunpack.c.h.b16 %v4423
        %v4811 = vunpack.c.l.b16 %v4424
        %v4812 = vunpack.c.h.b16 %v4424
        %v4813 = vunpack.c.l.b16 %v4425
        %v4814 = vunpack.c.h.b16 %v4425
        %v4815 = vunpack.c.l.b16 %v4426
        %v4816 = vunpack.c.h.b16 %v4426
        %v4817 = vunpack.c.l.b16 %v4427
        %v4818 = vunpack.c.h.b16 %v4427
        %v4819 = vunpack.c.l.b16 %v4428
        %v4820 = vunpack.c.h.b16 %v4428
        %v4821 = vunpack.c.l.b16 %v4429
        %v4822 = vunpack.c.h.b16 %v4429
        %v4823 = vunpack.c.l.b16 %v4430
        %v4824 = vunpack.c.h.b16 %v4430
        %v4825 = vunpack.c.l.b16 %v4431
        %v4826 = vunpack.c.h.b16 %v4431
        %v4827 = vunpack.c.l.b16 %v4432
        %v4828 = vunpack.c.h.b16 %v4432
        %v4829 = vunpack.c.l.b16 %v4433
        %v4830 = vunpack.c.h.b16 %v4433
        %v4831 = vunpack.c.l.b16 %v4434
        %v4832 = vunpack.c.h.b16 %v4434
        %v4833 = vunpack.c.l.b16 %v4435
        %v4834 = vunpack.c.h.b16 %v4435
        %v4835 = vunpack.c.l.b16 %v4436
        %v4836 = vunpack.c.h.b16 %v4436
        %v4837 = vunpack.c.l.b16 %v4437
        %v4838 = vunpack.c.h.b16 %v4437
        %v4839 = vunpack.c.l.b16 %v4438
        %v4840 = vunpack.c.h.b16 %v4438
        %v4841 = vunpack.c.l.b16 %v4439
        %v4842 = vunpack.c.h.b16 %v4439
        %v4843 = vunpack.c.l.b16 %v4440
        %v4844 = vunpack.c.h.b16 %v4440
        %v4845 = vunpack.c.l.b16 %v4441
        %v4846 = vunpack.c.h.b16 %v4441
        %v4847 = vunpack.c.l.b16 %v4442
        %v4848 = vunpack.c.h.b16 %v4442
        %v4849 = vunpack.c.l.b16 %v4443
        %v4850 = vunpack.c.h.b16 %v4443
        %v4851 = vunpack.c.l.b16 %v4444
        %v4852 = vunpack.c.h.b16 %v4444
        %v4853 = vunpack.c.l.b16 %v4445
        %v4854 = vunpack.c.h.b16 %v4445
        %v4855 = vunpack.c.l.b16 %v4446
        %v4856 = vunpack.c.h.b16 %v4446
        %v4857 = vunpack.c.l.b16 %v4447
        %v4858 = vunpack.c.h.b16 %v4447
        %v4859 = vunpack.c.l.b16 %v4448
        %v4860 = vunpack.c.h.b16 %v4448
        %v4861 = vunpack.c.l.b16 %v4449
        %v4862 = vunpack.c.h.b16 %v4449
        %v4863 = vunpack.c.l.b16 %v4450
        %v4864 = vunpack.c.h.b16 %v4450
        %v4865 = vunpack.c.l.b16 %v4451
        %v4866 = vunpack.c.h.b16 %v4451
        %v4867 = vunpack.c.l.b16 %v4452
        %v4868 = vunpack.c.h.b16 %v4452
        %v4869 = vunpack.c.l.b16 %v4453
        %v4870 = vunpack.c.h.b16 %v4453
        %v4871 = vunpack.c.l.b16 %v4454
        %v4872 = vunpack.c.h.b16 %v4454
        %v4873 = vunpack.c.l.b16 %v4455
        %v4874 = vunpack.c.h.b16 %v4455
        %v4875 = vunpack.c.l.b16 %v4456
        %v4876 = vunpack.c.h.b16 %v4456
        %v4877 = vunpack.c.l.b16 %v4457
        %v4878 = vunpack.c.h.b16 %v4457
        %v4879 = vunpack.c.l.b16 %v4458
        %v4880 = vunpack.c.h.b16 %v4458
        %v4881 = vunpack.c.l.b16 %v4459
        %v4882 = vunpack.c.h.b16 %v4459
        %v4883 = vunpack.c.l.b16 %v4460
        %v4884 = vunpack.c.h.b16 %v4460
        %v4885 = vunpack.c.l.b16 %v4461
        %v4886 = vunpack.c.h.b16 %v4461
        %v4887 = vunpack.c.l.b16 %v4462
        %v4888 = vunpack.c.h.b16 %v4462
        %v4889 = vpack.c.b16 %v4641, %v4633
        %v4890 = vpack.c.b16 %v4642, %v4634
        %v4891 = vpack.c.b16 %v4643, %v4635
        %v4892 = vpack.c.b16 %v4644, %v4636
        %v4893 = vpack.c.b16 %v4645, %v4637
        %v4894 = vpack.c.b16 %v4646, %v4638
        %v4895 = vpack.c.b16 %v4647, %v4639
        %v4896 = vpack.c.b16 %v4648, %v4640
        %v4897 = vpack.c.b16 %v4657, %v4649
        %v4898 = vpack.c.b16 %v4658, %v4650
        %v4899 = vpack.c.b16 %v4659, %v4651
        %v4900 = vpack.c.b16 %v4660, %v4652
        %v4901 = vpack.c.b16 %v4661, %v4653
        %v4902 = vpack.c.b16 %v4662, %v4654
        %v4903 = vpack.c.b16 %v4663, %v4655
        %v4904 = vpack.c.b16 %v4664, %v4656
        %v4905 = vpack.c.b16 %v4673, %v4665
        %v4906 = vpack.c.b16 %v4674, %v4666
        %v4907 = vpack.c.b16 %v4675, %v4667
        %v4908 = vpack.c.b16 %v4676, %v4668
        %v4909 = vpack.c.b16 %v4677, %v4669
        %v4910 = vpack.c.b16 %v4678, %v4670
        %v4911 = vpack.c.b16 %v4679, %v4671
        %v4912 = vpack.c.b16 %v4680, %v4672
        %v4913 = vpack.c.b16 %v4689, %v4681
        %v4914 = vpack.c.b16 %v4690, %v4682
        %v4915 = vpack.c.b16 %v4691, %v4683
        %v4916 = vpack.c.b16 %v4692, %v4684
        %v4917 = vpack.c.b16 %v4693, %v4685
        %v4918 = vpack.c.b16 %v4694, %v4686
        %v4919 = vpack.c.b16 %v4695, %v4687
        %v4920 = vpack.c.b16 %v4696, %v4688
        %v4921 = vpack.c.b16 %v4705, %v4697
        %v4922 = vpack.c.b16 %v4706, %v4698
        %v4923 = vpack.c.b16 %v4707, %v4699
        %v4924 = vpack.c.b16 %v4708, %v4700
        %v4925 = vpack.c.b16 %v4709, %v4701
        %v4926 = vpack.c.b16 %v4710, %v4702
        %v4927 = vpack.c.b16 %v4711, %v4703
        %v4928 = vpack.c.b16 %v4712, %v4704
        %v4929 = vpack.c.b16 %v4721, %v4713
        %v4930 = vpack.c.b16 %v4722, %v4714
        %v4931 = vpack.c.b16 %v4723, %v4715
        %v4932 = vpack.c.b16 %v4724, %v4716
        %v4933 = vpack.c.b16 %v4725, %v4717
        %v4934 = vpack.c.b16 %v4726, %v4718
        %v4935 = vpack.c.b16 %v4727, %v4719
        %v4936 = vpack.c.b16 %v4728, %v4720
        %v4937 = vpack.c.b16 %v4737, %v4729
        %v4938 = vpack.c.b16 %v4738, %v4730
        %v4939 = vpack.c.b16 %v4739, %v4731
        %v4940 = vpack.c.b16 %v4740, %v4732
        %v4941 = vpack.c.b16 %v4741, %v4733
        %v4942 = vpack.c.b16 %v4742, %v4734
        %v4943 = vpack.c.b16 %v4743, %v4735
        %v4944 = vpack.c.b16 %v4744, %v4736
        %v4945 = vpack.c.b16 %v4753, %v4745
        %v4946 = vpack.c.b16 %v4754, %v4746
        %v4947 = vpack.c.b16 %v4755, %v4747
        %v4948 = vpack.c.b16 %v4756, %v4748
        %v4949 = vpack.c.b16 %v4757, %v4749
        %v4950 = vpack.c.b16 %v4758, %v4750
        %v4951 = vpack.c.b16 %v4759, %v4751
        %v4952 = vpack.c.b16 %v4760, %v4752
        %v4953 = vpack.c.b16 %v4769, %v4761
        %v4954 = vpack.c.b16 %v4770, %v4762
        %v4955 = vpack.c.b16 %v4771, %v4763
        %v4956 = vpack.c.b16 %v4772, %v4764
        %v4957 = vpack.c.b16 %v4773, %v4765
        %v4958 = vpack.c.b16 %v4774, %v4766
        %v4959 = vpack.c.b16 %v4775, %v4767
        %v4960 = vpack.c.b16 %v4776, %v4768
        %v4961 = vpack.c.b16 %v4785, %v4777
        %v4962 = vpack.c.b16 %v4786, %v4778
        %v4963 = vpack.c.b16 %v4787, %v4779
        %v4964 = vpack.c.b16 %v4788, %v4780
        %v4965 = vpack.c.b16 %v4789, %v4781
        %v4966 = vpack.c.b16 %v4790, %v4782
        %v4967 = vpack.c.b16 %v4791, %v4783
        %v4968 = vpack.c.b16 %v4792, %v4784
        %v4969 = vpack.c.b16 %v4801, %v4793
        %v4970 = vpack.c.b16 %v4802, %v4794
        %v4971 = vpack.c.b16 %v4803, %v4795
        %v4972 = vpack.c.b16 %v4804, %v4796
        %v4973 = vpack.c.b16 %v4805, %v4797
        %v4974 = vpack.c.b16 %v4806, %v4798
        %v4975 = vpack.c.b16 %v4807, %v4799
        %v4976 = vpack.c.b16 %v4808, %v4800
        %v4977 = vpack.c.b16 %v4817, %v4809
        %v4978 = vpack.c.b16 %v4818, %v4810
        %v4979 = vpack.c.b16 %v4819, %v4811
        %v4980 = vpack.c.b16 %v4820, %v4812
        %v4981 = vpack.c.b16 %v4821, %v4813
        %v4982 = vpack.c.b16 %v4822, %v4814
        %v4983 = vpack.c.b16 %v4823, %v4815
        %v4984 = vpack.c.b16 %v4824, %v4816
        %v4985 = vpack.c.b16 %v4833, %v4825
        %v4986 = vpack.c.b16 %v4834, %v4826
        %v4987 = vpack.c.b16 %v4835, %v4827
        %v4988 = vpack.c.b16 %v4836, %v4828
        %v4989 = vpack.c.b16 %v4837, %v4829
        %v4990 = vpack.c.b16 %v4838, %v4830
        %v4991 = vpack.c.b16 %v4839, %v4831
        %v4992 = vpack.c.b16 %v4840, %v4832
        %v4993 = vpack.c.b16 %v4849, %v4841
        %v4994 = vpack.c.b16 %v4850, %v4842
        %v4995 = vpack.c.b16 %v4851, %v4843
        %v4996 = vpack.c.b16 %v4852, %v4844
        %v4997 = vpack.c.b16 %v4853, %v4845
        %v4998 = vpack.c.b16 %v4854, %v4846
        %v4999 = vpack.c.b16 %v4855, %v4847
        %v5000 = vpack.c.b16 %v4856, %v4848
        %v5001 = vpack.c.b16 %v4865, %v4857
        %v5002 = vpack.c.b16 %v4866, %v4858
        %v5003 = vpack.c.b16 %v4867, %v4859
        %v5004 = vpack.c.b16 %v4868, %v4860
        %v5005 = vpack.c.b16 %v4869, %v4861
        %v5006 = vpack.c.b16 %v4870, %v4862
        %v5007 = vpack.c.b16 %v4871, %v4863
        %v5008 = vpack.c.b16 %v4872, %v4864
        %v5009 = vpack.c.b16 %v4881, %v4873
        %v5010 = vpack.c.b16 %v4882, %v4874
        %v5011 = vpack.c.b16 %v4883, %v4875
        %v5012 = vpack.c.b16 %v4884, %v4876
        %v5013 = vpack.c.b16 %v4885, %v4877
        %v5014 = vpack.c.b16 %v4886, %v4878
        %v5015 = vpack.c.b16 %v4887, %v4879
        %v5016 = vpack.c.b16 %v4888, %v4880
        %5145 = vmatprep.subr.bf16.mxu0 %v4946
        %5146 = vmatpush1.bf16.msra.mxu0 %v4945
        %5147 = vmatprep.subr.bf16.mxu0 %v4938
        %5148 = vmatpush1.bf16.msra.mxu0 %v4937
        %5149 = vmatprep.subr.bf16.mxu0 %v4930
        %5150 = vmatpush1.bf16.msra.mxu0 %v4929
        %5151 = vmatprep.subr.bf16.mxu0 %v4922
        %5152 = vmatpush1.bf16.msra.mxu0 %v4921
        %5153 = vmatprep.subr.bf16.mxu0 %v4914
        %5154 = vmatpush1.bf16.msra.mxu0 %v4913
        %5155 = vmatprep.subr.bf16.mxu0 %v4906
        %5156 = vmatpush1.bf16.msra.mxu0 %v4905
        %5157 = vmatprep.subr.bf16.mxu0 %v4898
        %5158 = vmatpush1.bf16.msra.mxu0 %v4897
        %5159 = vmatprep.subr.bf16.mxu0 %v4890
        %5160 = vmatpush1.bf16.msra.mxu0 %v4889
        %5161 = vmatprep.subr.bf16.mxu0 %v5010
        %5162 = vmatpush2.bf16.msra.mxu0 %v5009
        %5163 = vmatprep.subr.bf16.mxu0 %v5002
        %5164 = vmatpush2.bf16.msra.mxu0 %v5001
        %5165 = vmatprep.subr.bf16.mxu0 %v4994
        %5166 = vmatpush2.bf16.msra.mxu0 %v4993
        %5167 = vmatprep.subr.bf16.mxu0 %v4986
        %5168 = vmatpush2.bf16.msra.mxu0 %v4985
        %5169 = vmatprep.subr.bf16.mxu0 %v4978
        %5170 = vmatpush2.bf16.msra.mxu0 %v4977
        %5171 = vmatprep.subr.bf16.mxu0 %v4970
        %5172 = vmatpush2.bf16.msra.mxu0 %v4969
        %5173 = vmatprep.subr.bf16.mxu0 %v4962
        %5174 = vmatpush2.bf16.msra.mxu0 %v4961
        %5175 = vmatprep.subr.bf16.mxu0 %v4954
        %5176 = vmatpush2.bf16.msra.mxu0 %v4953
        %5177 = vmatprep.mubr.bf16.mxu0 %v4334
        %5178 = vmatmul.mubr.bf16.gmra.mxu0 %v4333
        %v5179 = vpop.f32.mrf.mxu0
        %v5180 = vadd.f32 %v4468, %v5179
        %v5181 = vpop.f32.mrf.mxu0
        %v5182 = vadd.f32 %v4472, %v5181
        %v5183 = vpop.f32.mrf.mxu0
        %v5184 = vpop.f32.mrf.mxu0
        %5185 = vdwg.mxu0
        %5186 = vmatprep.subr.bf16.mxu0 %v4948
        %5187 = vmatpush1.bf16.msra.mxu0 %v4947
        %5188 = vmatprep.subr.bf16.mxu0 %v4940
        %5189 = vmatpush1.bf16.msra.mxu0 %v4939
        %5190 = vmatprep.subr.bf16.mxu0 %v4932
        %5191 = vmatpush1.bf16.msra.mxu0 %v4931
        %5192 = vmatprep.subr.bf16.mxu0 %v4924
        %5193 = vmatpush1.bf16.msra.mxu0 %v4923
        %5194 = vmatprep.subr.bf16.mxu0 %v4916
        %5195 = vmatpush1.bf16.msra.mxu0 %v4915
        %5196 = vmatprep.subr.bf16.mxu0 %v4908
        %5197 = vmatpush1.bf16.msra.mxu0 %v4907
        %5198 = vmatprep.subr.bf16.mxu0 %v4900
        %5199 = vmatpush1.bf16.msra.mxu0 %v4899
        %5200 = vmatprep.subr.bf16.mxu0 %v4892
        %5201 = vmatpush1.bf16.msra.mxu0 %v4891
        %5202 = vmatprep.subr.bf16.mxu0 %v5012
        %5203 = vmatpush2.bf16.msra.mxu0 %v5011
        %5204 = vmatprep.subr.bf16.mxu0 %v5004
        %5205 = vmatpush2.bf16.msra.mxu0 %v5003
        %5206 = vmatprep.subr.bf16.mxu0 %v4996
        %5207 = vmatpush2.bf16.msra.mxu0 %v4995
        %5208 = vmatprep.subr.bf16.mxu0 %v4988
        %5209 = vmatpush2.bf16.msra.mxu0 %v4987
        %5210 = vmatprep.subr.bf16.mxu0 %v4980
        %5211 = vmatpush2.bf16.msra.mxu0 %v4979
        %5212 = vmatprep.subr.bf16.mxu0 %v4972
        %5213 = vmatpush2.bf16.msra.mxu0 %v4971
        %5214 = vmatprep.subr.bf16.mxu0 %v4964
        %5215 = vmatpush2.bf16.msra.mxu0 %v4963
        %5216 = vmatprep.subr.bf16.mxu0 %v4956
        %5217 = vmatpush2.bf16.msra.mxu0 %v4955
        %5218 = vmatprep.mubr.bf16.mxu0 %v4334
        %5219 = vmatmul.mubr.bf16.gmra.mxu0 %v4333
        %v5220 = vpop.f32.mrf.mxu0
        %v5221 = vadd.f32 %v4476, %v5220
        %v5222 = vpop.f32.mrf.mxu0
        %v5223 = vadd.f32 %v4480, %v5222
        %v5224 = vpop.f32.mrf.mxu0
        %v5225 = vpop.f32.mrf.mxu0
        %5226 = vdwg.mxu0
        %5227 = vmatprep.subr.bf16.mxu0 %v4950
        %5228 = vmatpush1.bf16.msra.mxu0 %v4949
        %5229 = vmatprep.subr.bf16.mxu0 %v4942
        %5230 = vmatpush1.bf16.msra.mxu0 %v4941
        %5231 = vmatprep.subr.bf16.mxu0 %v4934
        %5232 = vmatpush1.bf16.msra.mxu0 %v4933
        %5233 = vmatprep.subr.bf16.mxu0 %v4926
        %5234 = vmatpush1.bf16.msra.mxu0 %v4925
        %5235 = vmatprep.subr.bf16.mxu0 %v4918
        %5236 = vmatpush1.bf16.msra.mxu0 %v4917
        %5237 = vmatprep.subr.bf16.mxu0 %v4910
        %5238 = vmatpush1.bf16.msra.mxu0 %v4909
        %5239 = vmatprep.subr.bf16.mxu0 %v4902
        %5240 = vmatpush1.bf16.msra.mxu0 %v4901
        %5241 = vmatprep.subr.bf16.mxu0 %v4894
        %5242 = vmatpush1.bf16.msra.mxu0 %v4893
        %5243 = vmatprep.subr.bf16.mxu0 %v5014
        %5244 = vmatpush2.bf16.msra.mxu0 %v5013
        %5245 = vmatprep.subr.bf16.mxu0 %v5006
        %5246 = vmatpush2.bf16.msra.mxu0 %v5005
        %5247 = vmatprep.subr.bf16.mxu0 %v4998
        %5248 = vmatpush2.bf16.msra.mxu0 %v4997
        %5249 = vmatprep.subr.bf16.mxu0 %v4990
        %5250 = vmatpush2.bf16.msra.mxu0 %v4989
        %5251 = vmatprep.subr.bf16.mxu0 %v4982
        %5252 = vmatpush2.bf16.msra.mxu0 %v4981
        %5253 = vmatprep.subr.bf16.mxu0 %v4974
        %5254 = vmatpush2.bf16.msra.mxu0 %v4973
        %5255 = vmatprep.subr.bf16.mxu0 %v4966
        %5256 = vmatpush2.bf16.msra.mxu0 %v4965
        %5257 = vmatprep.subr.bf16.mxu0 %v4958
        %5258 = vmatpush2.bf16.msra.mxu0 %v4957
        %5259 = vmatprep.mubr.bf16.mxu0 %v4334
        %5260 = vmatmul.mubr.bf16.gmra.mxu0 %v4333
        %v5261 = vpop.f32.mrf.mxu0
        %v5262 = vadd.f32 %v4484, %v5261
        %v5263 = vpop.f32.mrf.mxu0
        %v5264 = vadd.f32 %v4488, %v5263
        %v5265 = vpop.f32.mrf.mxu0
        %v5266 = vpop.f32.mrf.mxu0
        %5267 = vdwg.mxu0
        %5268 = vmatprep.subr.bf16.mxu0 %v4952
        %5269 = vmatpush1.bf16.msra.mxu0 %v4951
        %5270 = vmatprep.subr.bf16.mxu0 %v4944
        %5271 = vmatpush1.bf16.msra.mxu0 %v4943
        %5272 = vmatprep.subr.bf16.mxu0 %v4936
        %5273 = vmatpush1.bf16.msra.mxu0 %v4935
        %5274 = vmatprep.subr.bf16.mxu0 %v4928
        %5275 = vmatpush1.bf16.msra.mxu0 %v4927
        %5276 = vmatprep.subr.bf16.mxu0 %v4920
        %5277 = vmatpush1.bf16.msra.mxu0 %v4919
        %5278 = vmatprep.subr.bf16.mxu0 %v4912
        %5279 = vmatpush1.bf16.msra.mxu0 %v4911
        %5280 = vmatprep.subr.bf16.mxu0 %v4904
        %5281 = vmatpush1.bf16.msra.mxu0 %v4903
        %5282 = vmatprep.subr.bf16.mxu0 %v4896
        %5283 = vmatpush1.bf16.msra.mxu0 %v4895
        %5284 = vmatprep.subr.bf16.mxu0 %v5016
        %5285 = vmatpush2.bf16.msra.mxu0 %v5015
        %5286 = vmatprep.subr.bf16.mxu0 %v5008
        %5287 = vmatpush2.bf16.msra.mxu0 %v5007
        %5288 = vmatprep.subr.bf16.mxu0 %v5000
        %5289 = vmatpush2.bf16.msra.mxu0 %v4999
        %5290 = vmatprep.subr.bf16.mxu0 %v4992
        %5291 = vmatpush2.bf16.msra.mxu0 %v4991
        %5292 = vmatprep.subr.bf16.mxu0 %v4984
        %5293 = vmatpush2.bf16.msra.mxu0 %v4983
        %5294 = vmatprep.subr.bf16.mxu0 %v4976
        %5295 = vmatpush2.bf16.msra.mxu0 %v4975
        %5296 = vmatprep.subr.bf16.mxu0 %v4968
        %5297 = vmatpush2.bf16.msra.mxu0 %v4967
        %5298 = vmatprep.subr.bf16.mxu0 %v4960
        %5299 = vmatpush2.bf16.msra.mxu0 %v4959
        %5300 = vmatprep.mubr.bf16.mxu0 %v4334
        %5301 = vmatmul.mubr.bf16.gmra.mxu0 %v4333
        %v5302 = vpop.f32.mrf.mxu0
        %v5303 = vadd.f32 %v4492, %v5302
        %v5304 = vpop.f32.mrf.mxu0
        %v5305 = vadd.f32 %v4496, %v5304
        %v5306 = vpop.f32.mrf.mxu0
        %v5307 = vpop.f32.mrf.mxu0
        %5308 = vdwg.mxu0
        %v5309 = vmul.f32 %v5180, 0.5
        %v5310 = vmul.f32 %v5182, 0.5
        %v5311 = vmul.f32 %v5221, 0.5
        %v5312 = vmul.f32 %v5223, 0.5
        %v5313 = vmul.f32 %v5262, 0.5
        %v5314 = vmul.f32 %v5264, 0.5
        %v5315 = vmul.f32 %v5303, 0.5
        %v5316 = vmul.f32 %v5305, 0.5
        %v5317 = vrcp.pop 1.4142135
        %v5318 = vmul.f32 %v5180, %v5317
        %v5319 = vmul.f32 %v5182, %v5317
        %v5320 = vmul.f32 %v5221, %v5317
        %v5321 = vmul.f32 %v5223, %v5317
        %v5322 = vmul.f32 %v5262, %v5317
        %v5323 = vmul.f32 %v5264, %v5317
        %v5324 = vmul.f32 %v5303, %v5317
        %v5325 = vmul.f32 %v5305, %v5317
        %v5326 = verf.f32.pop %v5318
        %v5327 = verf.f32.pop %v5319
        %v5328 = verf.f32.pop %v5320
        %v5329 = verf.f32.pop %v5321
        %v5330 = verf.f32.pop %v5322
        %v5331 = verf.f32.pop %v5323
        %v5332 = verf.f32.pop %v5324
        %v5333 = verf.f32.pop %v5325
        %v5334 = vadd.f32 %v5326, 1.0
        %v5335 = vadd.f32 %v5327, 1.0
        %v5336 = vadd.f32 %v5328, 1.0
        %v5337 = vadd.f32 %v5329, 1.0
        %v5338 = vadd.f32 %v5330, 1.0
        %v5339 = vadd.f32 %v5331, 1.0
        %v5340 = vadd.f32 %v5332, 1.0
        %v5341 = vadd.f32 %v5333, 1.0
        %v5342 = vmul.f32 %v5309, %v5334
        %v5343 = vmul.f32 %v5310, %v5335
        %v5344 = vmul.f32 %v5311, %v5336
        %v5345 = vmul.f32 %v5312, %v5337
        %v5346 = vmul.f32 %v5313, %v5338
        %v5347 = vmul.f32 %v5314, %v5339
        %v5348 = vmul.f32 %v5315, %v5340
        %v5349 = vmul.f32 %v5316, %v5341
        %v5350 = vpack.c.bf16 %v5342, %v5342
        %v5351 = vpack.c.bf16 %v5343, %v5343
        %v5352 = vpack.c.bf16 %v5344, %v5344
        %v5353 = vpack.c.bf16 %v5345, %v5345
        %v5354 = vpack.c.bf16 %v5346, %v5346
        %v5355 = vpack.c.bf16 %v5347, %v5347
        %v5356 = vpack.c.bf16 %v5348, %v5348
        %v5357 = vpack.c.bf16 %v5349, %v5349
        %v5358 = vld [vmem:[#allocation16] sm:$0xff]
        %v5359 = vld [vmem:[#allocation16 + $0x8] sm:$0xff]
        %v5360 = vld [vmem:[#allocation16 + $0x10] sm:$0xff]
        %v5361 = vld [vmem:[#allocation16 + $0x18] sm:$0xff]
        %v5362 = vld [vmem:[#allocation16 + $0x20] sm:$0xff]
        %v5363 = vld [vmem:[#allocation16 + $0x28] sm:$0xff]
        %v5364 = vld [vmem:[#allocation16 + $0x30] sm:$0xff]
        %v5365 = vld [vmem:[#allocation16 + $0x38] sm:$0xff]
        %v5366 = vld [vmem:[#allocation16 + $0x40] sm:$0xff]
        %v5367 = vld [vmem:[#allocation16 + $0x48] sm:$0xff]
        %v5368 = vld [vmem:[#allocation16 + $0x50] sm:$0xff]
        %v5369 = vld [vmem:[#allocation16 + $0x58] sm:$0xff]
        %v5370 = vld [vmem:[#allocation16 + $0x60] sm:$0xff]
        %v5371 = vld [vmem:[#allocation16 + $0x68] sm:$0xff]
        %v5372 = vld [vmem:[#allocation16 + $0x70] sm:$0xff]
        %v5373 = vld [vmem:[#allocation16 + $0x78] sm:$0xff]
        %v5374 = vld [vmem:[#allocation16 + $0x80] sm:$0xff]
        %v5375 = vld [vmem:[#allocation16 + $0x88] sm:$0xff]
        %v5376 = vld [vmem:[#allocation16 + $0x90] sm:$0xff]
        %v5377 = vld [vmem:[#allocation16 + $0x98] sm:$0xff]
        %v5378 = vld [vmem:[#allocation16 + $0xa0] sm:$0xff]
        %v5379 = vld [vmem:[#allocation16 + $0xa8] sm:$0xff]
        %v5380 = vld [vmem:[#allocation16 + $0xb0] sm:$0xff]
        %v5381 = vld [vmem:[#allocation16 + $0xb8] sm:$0xff]
        %v5382 = vld [vmem:[#allocation16 + $0xc0] sm:$0xff]
        %v5383 = vld [vmem:[#allocation16 + $0xc8] sm:$0xff]
        %v5384 = vld [vmem:[#allocation16 + $0xd0] sm:$0xff]
        %v5385 = vld [vmem:[#allocation16 + $0xd8] sm:$0xff]
        %v5386 = vld [vmem:[#allocation16 + $0xe0] sm:$0xff]
        %v5387 = vld [vmem:[#allocation16 + $0xe8] sm:$0xff]
        %v5388 = vld [vmem:[#allocation16 + $0xf0] sm:$0xff]
        %v5389 = vld [vmem:[#allocation16 + $0xf8] sm:$0xff]
        %v5390 = vld [vmem:[#allocation16 + $0x100] sm:$0xff]
        %v5391 = vld [vmem:[#allocation16 + $0x108] sm:$0xff]
        %v5392 = vld [vmem:[#allocation16 + $0x110] sm:$0xff]
        %v5393 = vld [vmem:[#allocation16 + $0x118] sm:$0xff]
        %v5394 = vld [vmem:[#allocation16 + $0x120] sm:$0xff]
        %v5395 = vld [vmem:[#allocation16 + $0x128] sm:$0xff]
        %v5396 = vld [vmem:[#allocation16 + $0x130] sm:$0xff]
        %v5397 = vld [vmem:[#allocation16 + $0x138] sm:$0xff]
        %v5398 = vld [vmem:[#allocation16 + $0x140] sm:$0xff]
        %v5399 = vld [vmem:[#allocation16 + $0x148] sm:$0xff]
        %v5400 = vld [vmem:[#allocation16 + $0x150] sm:$0xff]
        %v5401 = vld [vmem:[#allocation16 + $0x158] sm:$0xff]
        %v5402 = vld [vmem:[#allocation16 + $0x160] sm:$0xff]
        %v5403 = vld [vmem:[#allocation16 + $0x168] sm:$0xff]
        %v5404 = vld [vmem:[#allocation16 + $0x170] sm:$0xff]
        %v5405 = vld [vmem:[#allocation16 + $0x178] sm:$0xff]
        %v5406 = vld [vmem:[#allocation16 + $0x180] sm:$0xff]
        %v5407 = vld [vmem:[#allocation16 + $0x188] sm:$0xff]
        %v5408 = vld [vmem:[#allocation16 + $0x190] sm:$0xff]
        %v5409 = vld [vmem:[#allocation16 + $0x198] sm:$0xff]
        %v5410 = vld [vmem:[#allocation16 + $0x1a0] sm:$0xff]
        %v5411 = vld [vmem:[#allocation16 + $0x1a8] sm:$0xff]
        %v5412 = vld [vmem:[#allocation16 + $0x1b0] sm:$0xff]
        %v5413 = vld [vmem:[#allocation16 + $0x1b8] sm:$0xff]
        %v5414 = vld [vmem:[#allocation16 + $0x1c0] sm:$0xff]
        %v5415 = vld [vmem:[#allocation16 + $0x1c8] sm:$0xff]
        %v5416 = vld [vmem:[#allocation16 + $0x1d0] sm:$0xff]
        %v5417 = vld [vmem:[#allocation16 + $0x1d8] sm:$0xff]
        %v5418 = vld [vmem:[#allocation16 + $0x1e0] sm:$0xff]
        %v5419 = vld [vmem:[#allocation16 + $0x1e8] sm:$0xff]
        %v5420 = vld [vmem:[#allocation16 + $0x1f0] sm:$0xff]
        %v5421 = vld [vmem:[#allocation16 + $0x1f8] sm:$0xff]
        %v5422 = vld [vmem:[#allocation16 + $0x200] sm:$0xff]
        %v5423 = vld [vmem:[#allocation16 + $0x208] sm:$0xff]
        %v5424 = vld [vmem:[#allocation16 + $0x210] sm:$0xff]
        %v5425 = vld [vmem:[#allocation16 + $0x218] sm:$0xff]
        %v5426 = vld [vmem:[#allocation16 + $0x220] sm:$0xff]
        %v5427 = vld [vmem:[#allocation16 + $0x228] sm:$0xff]
        %v5428 = vld [vmem:[#allocation16 + $0x230] sm:$0xff]
        %v5429 = vld [vmem:[#allocation16 + $0x238] sm:$0xff]
        %v5430 = vld [vmem:[#allocation16 + $0x240] sm:$0xff]
        %v5431 = vld [vmem:[#allocation16 + $0x248] sm:$0xff]
        %v5432 = vld [vmem:[#allocation16 + $0x250] sm:$0xff]
        %v5433 = vld [vmem:[#allocation16 + $0x258] sm:$0xff]
        %v5434 = vld [vmem:[#allocation16 + $0x260] sm:$0xff]
        %v5435 = vld [vmem:[#allocation16 + $0x268] sm:$0xff]
        %v5436 = vld [vmem:[#allocation16 + $0x270] sm:$0xff]
        %v5437 = vld [vmem:[#allocation16 + $0x278] sm:$0xff]
        %v5438 = vld [vmem:[#allocation16 + $0x280] sm:$0xff]
        %v5439 = vld [vmem:[#allocation16 + $0x288] sm:$0xff]
        %v5440 = vld [vmem:[#allocation16 + $0x290] sm:$0xff]
        %v5441 = vld [vmem:[#allocation16 + $0x298] sm:$0xff]
        %v5442 = vld [vmem:[#allocation16 + $0x2a0] sm:$0xff]
        %v5443 = vld [vmem:[#allocation16 + $0x2a8] sm:$0xff]
        %v5444 = vld [vmem:[#allocation16 + $0x2b0] sm:$0xff]
        %v5445 = vld [vmem:[#allocation16 + $0x2b8] sm:$0xff]
        %v5446 = vld [vmem:[#allocation16 + $0x2c0] sm:$0xff]
        %v5447 = vld [vmem:[#allocation16 + $0x2c8] sm:$0xff]
        %v5448 = vld [vmem:[#allocation16 + $0x2d0] sm:$0xff]
        %v5449 = vld [vmem:[#allocation16 + $0x2d8] sm:$0xff]
        %v5450 = vld [vmem:[#allocation16 + $0x2e0] sm:$0xff]
        %v5451 = vld [vmem:[#allocation16 + $0x2e8] sm:$0xff]
        %v5452 = vld [vmem:[#allocation16 + $0x2f0] sm:$0xff]
        %v5453 = vld [vmem:[#allocation16 + $0x2f8] sm:$0xff]
        %v5454 = vld [vmem:[#allocation16 + $0x300] sm:$0xff]
        %v5455 = vld [vmem:[#allocation16 + $0x308] sm:$0xff]
        %v5456 = vld [vmem:[#allocation16 + $0x310] sm:$0xff]
        %v5457 = vld [vmem:[#allocation16 + $0x318] sm:$0xff]
        %v5458 = vld [vmem:[#allocation16 + $0x320] sm:$0xff]
        %v5459 = vld [vmem:[#allocation16 + $0x328] sm:$0xff]
        %v5460 = vld [vmem:[#allocation16 + $0x330] sm:$0xff]
        %v5461 = vld [vmem:[#allocation16 + $0x338] sm:$0xff]
        %v5462 = vld [vmem:[#allocation16 + $0x340] sm:$0xff]
        %v5463 = vld [vmem:[#allocation16 + $0x348] sm:$0xff]
        %v5464 = vld [vmem:[#allocation16 + $0x350] sm:$0xff]
        %v5465 = vld [vmem:[#allocation16 + $0x358] sm:$0xff]
        %v5466 = vld [vmem:[#allocation16 + $0x360] sm:$0xff]
        %v5467 = vld [vmem:[#allocation16 + $0x368] sm:$0xff]
        %v5468 = vld [vmem:[#allocation16 + $0x370] sm:$0xff]
        %v5469 = vld [vmem:[#allocation16 + $0x378] sm:$0xff]
        %v5470 = vld [vmem:[#allocation16 + $0x380] sm:$0xff]
        %v5471 = vld [vmem:[#allocation16 + $0x388] sm:$0xff]
        %v5472 = vld [vmem:[#allocation16 + $0x390] sm:$0xff]
        %v5473 = vld [vmem:[#allocation16 + $0x398] sm:$0xff]
        %v5474 = vld [vmem:[#allocation16 + $0x3a0] sm:$0xff]
        %v5475 = vld [vmem:[#allocation16 + $0x3a8] sm:$0xff]
        %v5476 = vld [vmem:[#allocation16 + $0x3b0] sm:$0xff]
        %v5477 = vld [vmem:[#allocation16 + $0x3b8] sm:$0xff]
        %v5478 = vld [vmem:[#allocation16 + $0x3c0] sm:$0xff]
        %v5479 = vld [vmem:[#allocation16 + $0x3c8] sm:$0xff]
        %v5480 = vld [vmem:[#allocation16 + $0x3d0] sm:$0xff]
        %v5481 = vld [vmem:[#allocation16 + $0x3d8] sm:$0xff]
        %v5482 = vld [vmem:[#allocation16 + $0x3e0] sm:$0xff]
        %v5483 = vld [vmem:[#allocation16 + $0x3e8] sm:$0xff]
        %v5484 = vld [vmem:[#allocation16 + $0x3f0] sm:$0xff]
        %v5485 = vld [vmem:[#allocation16 + $0x3f8] sm:$0xff]
        %v5486 = vld [vmem:[%s13] sm:$0x3]
        %v5488 = vlaneseq
        %v5489 = vshrl.u32 %v5488, 7
        %v5490 = vsub.s32 0, %v5489
        %v5491 = vrot.slane %v5486, %v5490
        %v5492 = vlaneseq
        %v5493 = vshrl.u32 %v5492, 7
        %v5494 = vsub.s32 1, %v5493
        %v5495 = vrot.slane %v5486, %v5494
        %v5626 = vunpack.c.l.b16 %v5358
        %v5627 = vunpack.c.h.b16 %v5358
        %v5628 = vunpack.c.l.b16 %v5359
        %v5629 = vunpack.c.h.b16 %v5359
        %v5630 = vunpack.c.l.b16 %v5360
        %v5631 = vunpack.c.h.b16 %v5360
        %v5632 = vunpack.c.l.b16 %v5361
        %v5633 = vunpack.c.h.b16 %v5361
        %v5634 = vunpack.c.l.b16 %v5362
        %v5635 = vunpack.c.h.b16 %v5362
        %v5636 = vunpack.c.l.b16 %v5363
        %v5637 = vunpack.c.h.b16 %v5363
        %v5638 = vunpack.c.l.b16 %v5364
        %v5639 = vunpack.c.h.b16 %v5364
        %v5640 = vunpack.c.l.b16 %v5365
        %v5641 = vunpack.c.h.b16 %v5365
        %v5642 = vunpack.c.l.b16 %v5366
        %v5643 = vunpack.c.h.b16 %v5366
        %v5644 = vunpack.c.l.b16 %v5367
        %v5645 = vunpack.c.h.b16 %v5367
        %v5646 = vunpack.c.l.b16 %v5368
        %v5647 = vunpack.c.h.b16 %v5368
        %v5648 = vunpack.c.l.b16 %v5369
        %v5649 = vunpack.c.h.b16 %v5369
        %v5650 = vunpack.c.l.b16 %v5370
        %v5651 = vunpack.c.h.b16 %v5370
        %v5652 = vunpack.c.l.b16 %v5371
        %v5653 = vunpack.c.h.b16 %v5371
        %v5654 = vunpack.c.l.b16 %v5372
        %v5655 = vunpack.c.h.b16 %v5372
        %v5656 = vunpack.c.l.b16 %v5373
        %v5657 = vunpack.c.h.b16 %v5373
        %v5658 = vunpack.c.l.b16 %v5374
        %v5659 = vunpack.c.h.b16 %v5374
        %v5660 = vunpack.c.l.b16 %v5375
        %v5661 = vunpack.c.h.b16 %v5375
        %v5662 = vunpack.c.l.b16 %v5376
        %v5663 = vunpack.c.h.b16 %v5376
        %v5664 = vunpack.c.l.b16 %v5377
        %v5665 = vunpack.c.h.b16 %v5377
        %v5666 = vunpack.c.l.b16 %v5378
        %v5667 = vunpack.c.h.b16 %v5378
        %v5668 = vunpack.c.l.b16 %v5379
        %v5669 = vunpack.c.h.b16 %v5379
        %v5670 = vunpack.c.l.b16 %v5380
        %v5671 = vunpack.c.h.b16 %v5380
        %v5672 = vunpack.c.l.b16 %v5381
        %v5673 = vunpack.c.h.b16 %v5381
        %v5674 = vunpack.c.l.b16 %v5382
        %v5675 = vunpack.c.h.b16 %v5382
        %v5676 = vunpack.c.l.b16 %v5383
        %v5677 = vunpack.c.h.b16 %v5383
        %v5678 = vunpack.c.l.b16 %v5384
        %v5679 = vunpack.c.h.b16 %v5384
        %v5680 = vunpack.c.l.b16 %v5385
        %v5681 = vunpack.c.h.b16 %v5385
        %v5682 = vunpack.c.l.b16 %v5386
        %v5683 = vunpack.c.h.b16 %v5386
        %v5684 = vunpack.c.l.b16 %v5387
        %v5685 = vunpack.c.h.b16 %v5387
        %v5686 = vunpack.c.l.b16 %v5388
        %v5687 = vunpack.c.h.b16 %v5388
        %v5688 = vunpack.c.l.b16 %v5389
        %v5689 = vunpack.c.h.b16 %v5389
        %v5690 = vunpack.c.l.b16 %v5390
        %v5691 = vunpack.c.h.b16 %v5390
        %v5692 = vunpack.c.l.b16 %v5391
        %v5693 = vunpack.c.h.b16 %v5391
        %v5694 = vunpack.c.l.b16 %v5392
        %v5695 = vunpack.c.h.b16 %v5392
        %v5696 = vunpack.c.l.b16 %v5393
        %v5697 = vunpack.c.h.b16 %v5393
        %v5698 = vunpack.c.l.b16 %v5394
        %v5699 = vunpack.c.h.b16 %v5394
        %v5700 = vunpack.c.l.b16 %v5395
        %v5701 = vunpack.c.h.b16 %v5395
        %v5702 = vunpack.c.l.b16 %v5396
        %v5703 = vunpack.c.h.b16 %v5396
        %v5704 = vunpack.c.l.b16 %v5397
        %v5705 = vunpack.c.h.b16 %v5397
        %v5706 = vunpack.c.l.b16 %v5398
        %v5707 = vunpack.c.h.b16 %v5398
        %v5708 = vunpack.c.l.b16 %v5399
        %v5709 = vunpack.c.h.b16 %v5399
        %v5710 = vunpack.c.l.b16 %v5400
        %v5711 = vunpack.c.h.b16 %v5400
        %v5712 = vunpack.c.l.b16 %v5401
        %v5713 = vunpack.c.h.b16 %v5401
        %v5714 = vunpack.c.l.b16 %v5402
        %v5715 = vunpack.c.h.b16 %v5402
        %v5716 = vunpack.c.l.b16 %v5403
        %v5717 = vunpack.c.h.b16 %v5403
        %v5718 = vunpack.c.l.b16 %v5404
        %v5719 = vunpack.c.h.b16 %v5404
        %v5720 = vunpack.c.l.b16 %v5405
        %v5721 = vunpack.c.h.b16 %v5405
        %v5722 = vunpack.c.l.b16 %v5406
        %v5723 = vunpack.c.h.b16 %v5406
        %v5724 = vunpack.c.l.b16 %v5407
        %v5725 = vunpack.c.h.b16 %v5407
        %v5726 = vunpack.c.l.b16 %v5408
        %v5727 = vunpack.c.h.b16 %v5408
        %v5728 = vunpack.c.l.b16 %v5409
        %v5729 = vunpack.c.h.b16 %v5409
        %v5730 = vunpack.c.l.b16 %v5410
        %v5731 = vunpack.c.h.b16 %v5410
        %v5732 = vunpack.c.l.b16 %v5411
        %v5733 = vunpack.c.h.b16 %v5411
        %v5734 = vunpack.c.l.b16 %v5412
        %v5735 = vunpack.c.h.b16 %v5412
        %v5736 = vunpack.c.l.b16 %v5413
        %v5737 = vunpack.c.h.b16 %v5413
        %v5738 = vunpack.c.l.b16 %v5414
        %v5739 = vunpack.c.h.b16 %v5414
        %v5740 = vunpack.c.l.b16 %v5415
        %v5741 = vunpack.c.h.b16 %v5415
        %v5742 = vunpack.c.l.b16 %v5416
        %v5743 = vunpack.c.h.b16 %v5416
        %v5744 = vunpack.c.l.b16 %v5417
        %v5745 = vunpack.c.h.b16 %v5417
        %v5746 = vunpack.c.l.b16 %v5418
        %v5747 = vunpack.c.h.b16 %v5418
        %v5748 = vunpack.c.l.b16 %v5419
        %v5749 = vunpack.c.h.b16 %v5419
        %v5750 = vunpack.c.l.b16 %v5420
        %v5751 = vunpack.c.h.b16 %v5420
        %v5752 = vunpack.c.l.b16 %v5421
        %v5753 = vunpack.c.h.b16 %v5421
        %v5754 = vunpack.c.l.b16 %v5422
        %v5755 = vunpack.c.h.b16 %v5422
        %v5756 = vunpack.c.l.b16 %v5423
        %v5757 = vunpack.c.h.b16 %v5423
        %v5758 = vunpack.c.l.b16 %v5424
        %v5759 = vunpack.c.h.b16 %v5424
        %v5760 = vunpack.c.l.b16 %v5425
        %v5761 = vunpack.c.h.b16 %v5425
        %v5762 = vunpack.c.l.b16 %v5426
        %v5763 = vunpack.c.h.b16 %v5426
        %v5764 = vunpack.c.l.b16 %v5427
        %v5765 = vunpack.c.h.b16 %v5427
        %v5766 = vunpack.c.l.b16 %v5428
        %v5767 = vunpack.c.h.b16 %v5428
        %v5768 = vunpack.c.l.b16 %v5429
        %v5769 = vunpack.c.h.b16 %v5429
        %v5770 = vunpack.c.l.b16 %v5430
        %v5771 = vunpack.c.h.b16 %v5430
        %v5772 = vunpack.c.l.b16 %v5431
        %v5773 = vunpack.c.h.b16 %v5431
        %v5774 = vunpack.c.l.b16 %v5432
        %v5775 = vunpack.c.h.b16 %v5432
        %v5776 = vunpack.c.l.b16 %v5433
        %v5777 = vunpack.c.h.b16 %v5433
        %v5778 = vunpack.c.l.b16 %v5434
        %v5779 = vunpack.c.h.b16 %v5434
        %v5780 = vunpack.c.l.b16 %v5435
        %v5781 = vunpack.c.h.b16 %v5435
        %v5782 = vunpack.c.l.b16 %v5436
        %v5783 = vunpack.c.h.b16 %v5436
        %v5784 = vunpack.c.l.b16 %v5437
        %v5785 = vunpack.c.h.b16 %v5437
        %v5786 = vunpack.c.l.b16 %v5438
        %v5787 = vunpack.c.h.b16 %v5438
        %v5788 = vunpack.c.l.b16 %v5439
        %v5789 = vunpack.c.h.b16 %v5439
        %v5790 = vunpack.c.l.b16 %v5440
        %v5791 = vunpack.c.h.b16 %v5440
        %v5792 = vunpack.c.l.b16 %v5441
        %v5793 = vunpack.c.h.b16 %v5441
        %v5794 = vunpack.c.l.b16 %v5442
        %v5795 = vunpack.c.h.b16 %v5442
        %v5796 = vunpack.c.l.b16 %v5443
        %v5797 = vunpack.c.h.b16 %v5443
        %v5798 = vunpack.c.l.b16 %v5444
        %v5799 = vunpack.c.h.b16 %v5444
        %v5800 = vunpack.c.l.b16 %v5445
        %v5801 = vunpack.c.h.b16 %v5445
        %v5802 = vunpack.c.l.b16 %v5446
        %v5803 = vunpack.c.h.b16 %v5446
        %v5804 = vunpack.c.l.b16 %v5447
        %v5805 = vunpack.c.h.b16 %v5447
        %v5806 = vunpack.c.l.b16 %v5448
        %v5807 = vunpack.c.h.b16 %v5448
        %v5808 = vunpack.c.l.b16 %v5449
        %v5809 = vunpack.c.h.b16 %v5449
        %v5810 = vunpack.c.l.b16 %v5450
        %v5811 = vunpack.c.h.b16 %v5450
        %v5812 = vunpack.c.l.b16 %v5451
        %v5813 = vunpack.c.h.b16 %v5451
        %v5814 = vunpack.c.l.b16 %v5452
        %v5815 = vunpack.c.h.b16 %v5452
        %v5816 = vunpack.c.l.b16 %v5453
        %v5817 = vunpack.c.h.b16 %v5453
        %v5818 = vunpack.c.l.b16 %v5454
        %v5819 = vunpack.c.h.b16 %v5454
        %v5820 = vunpack.c.l.b16 %v5455
        %v5821 = vunpack.c.h.b16 %v5455
        %v5822 = vunpack.c.l.b16 %v5456
        %v5823 = vunpack.c.h.b16 %v5456
        %v5824 = vunpack.c.l.b16 %v5457
        %v5825 = vunpack.c.h.b16 %v5457
        %v5826 = vunpack.c.l.b16 %v5458
        %v5827 = vunpack.c.h.b16 %v5458
        %v5828 = vunpack.c.l.b16 %v5459
        %v5829 = vunpack.c.h.b16 %v5459
        %v5830 = vunpack.c.l.b16 %v5460
        %v5831 = vunpack.c.h.b16 %v5460
        %v5832 = vunpack.c.l.b16 %v5461
        %v5833 = vunpack.c.h.b16 %v5461
        %v5834 = vunpack.c.l.b16 %v5462
        %v5835 = vunpack.c.h.b16 %v5462
        %v5836 = vunpack.c.l.b16 %v5463
        %v5837 = vunpack.c.h.b16 %v5463
        %v5838 = vunpack.c.l.b16 %v5464
        %v5839 = vunpack.c.h.b16 %v5464
        %v5840 = vunpack.c.l.b16 %v5465
        %v5841 = vunpack.c.h.b16 %v5465
        %v5842 = vunpack.c.l.b16 %v5466
        %v5843 = vunpack.c.h.b16 %v5466
        %v5844 = vunpack.c.l.b16 %v5467
        %v5845 = vunpack.c.h.b16 %v5467
        %v5846 = vunpack.c.l.b16 %v5468
        %v5847 = vunpack.c.h.b16 %v5468
        %v5848 = vunpack.c.l.b16 %v5469
        %v5849 = vunpack.c.h.b16 %v5469
        %v5850 = vunpack.c.l.b16 %v5470
        %v5851 = vunpack.c.h.b16 %v5470
        %v5852 = vunpack.c.l.b16 %v5471
        %v5853 = vunpack.c.h.b16 %v5471
        %v5854 = vunpack.c.l.b16 %v5472
        %v5855 = vunpack.c.h.b16 %v5472
        %v5856 = vunpack.c.l.b16 %v5473
        %v5857 = vunpack.c.h.b16 %v5473
        %v5858 = vunpack.c.l.b16 %v5474
        %v5859 = vunpack.c.h.b16 %v5474
        %v5860 = vunpack.c.l.b16 %v5475
        %v5861 = vunpack.c.h.b16 %v5475
        %v5862 = vunpack.c.l.b16 %v5476
        %v5863 = vunpack.c.h.b16 %v5476
        %v5864 = vunpack.c.l.b16 %v5477
        %v5865 = vunpack.c.h.b16 %v5477
        %v5866 = vunpack.c.l.b16 %v5478
        %v5867 = vunpack.c.h.b16 %v5478
        %v5868 = vunpack.c.l.b16 %v5479
        %v5869 = vunpack.c.h.b16 %v5479
        %v5870 = vunpack.c.l.b16 %v5480
        %v5871 = vunpack.c.h.b16 %v5480
        %v5872 = vunpack.c.l.b16 %v5481
        %v5873 = vunpack.c.h.b16 %v5481
        %v5874 = vunpack.c.l.b16 %v5482
        %v5875 = vunpack.c.h.b16 %v5482
        %v5876 = vunpack.c.l.b16 %v5483
        %v5877 = vunpack.c.h.b16 %v5483
        %v5878 = vunpack.c.l.b16 %v5484
        %v5879 = vunpack.c.h.b16 %v5484
        %v5880 = vunpack.c.l.b16 %v5485
        %v5881 = vunpack.c.h.b16 %v5485
        %v5882 = vpack.c.b16 %v5628, %v5626
        %v5883 = vpack.c.b16 %v5629, %v5627
        %v5884 = vpack.c.b16 %v5632, %v5630
        %v5885 = vpack.c.b16 %v5633, %v5631
        %v5886 = vpack.c.b16 %v5636, %v5634
        %v5887 = vpack.c.b16 %v5637, %v5635
        %v5888 = vpack.c.b16 %v5640, %v5638
        %v5889 = vpack.c.b16 %v5641, %v5639
        %v5890 = vpack.c.b16 %v5644, %v5642
        %v5891 = vpack.c.b16 %v5645, %v5643
        %v5892 = vpack.c.b16 %v5648, %v5646
        %v5893 = vpack.c.b16 %v5649, %v5647
        %v5894 = vpack.c.b16 %v5652, %v5650
        %v5895 = vpack.c.b16 %v5653, %v5651
        %v5896 = vpack.c.b16 %v5656, %v5654
        %v5897 = vpack.c.b16 %v5657, %v5655
        %v5898 = vpack.c.b16 %v5660, %v5658
        %v5899 = vpack.c.b16 %v5661, %v5659
        %v5900 = vpack.c.b16 %v5664, %v5662
        %v5901 = vpack.c.b16 %v5665, %v5663
        %v5902 = vpack.c.b16 %v5668, %v5666
        %v5903 = vpack.c.b16 %v5669, %v5667
        %v5904 = vpack.c.b16 %v5672, %v5670
        %v5905 = vpack.c.b16 %v5673, %v5671
        %v5906 = vpack.c.b16 %v5676, %v5674
        %v5907 = vpack.c.b16 %v5677, %v5675
        %v5908 = vpack.c.b16 %v5680, %v5678
        %v5909 = vpack.c.b16 %v5681, %v5679
        %v5910 = vpack.c.b16 %v5684, %v5682
        %v5911 = vpack.c.b16 %v5685, %v5683
        %v5912 = vpack.c.b16 %v5688, %v5686
        %v5913 = vpack.c.b16 %v5689, %v5687
        %v5914 = vpack.c.b16 %v5692, %v5690
        %v5915 = vpack.c.b16 %v5693, %v5691
        %v5916 = vpack.c.b16 %v5696, %v5694
        %v5917 = vpack.c.b16 %v5697, %v5695
        %v5918 = vpack.c.b16 %v5700, %v5698
        %v5919 = vpack.c.b16 %v5701, %v5699
        %v5920 = vpack.c.b16 %v5704, %v5702
        %v5921 = vpack.c.b16 %v5705, %v5703
        %v5922 = vpack.c.b16 %v5708, %v5706
        %v5923 = vpack.c.b16 %v5709, %v5707
        %v5924 = vpack.c.b16 %v5712, %v5710
        %v5925 = vpack.c.b16 %v5713, %v5711
        %v5926 = vpack.c.b16 %v5716, %v5714
        %v5927 = vpack.c.b16 %v5717, %v5715
        %v5928 = vpack.c.b16 %v5720, %v5718
        %v5929 = vpack.c.b16 %v5721, %v5719
        %v5930 = vpack.c.b16 %v5724, %v5722
        %v5931 = vpack.c.b16 %v5725, %v5723
        %v5932 = vpack.c.b16 %v5728, %v5726
        %v5933 = vpack.c.b16 %v5729, %v5727
        %v5934 = vpack.c.b16 %v5732, %v5730
        %v5935 = vpack.c.b16 %v5733, %v5731
        %v5936 = vpack.c.b16 %v5736, %v5734
        %v5937 = vpack.c.b16 %v5737, %v5735
        %v5938 = vpack.c.b16 %v5740, %v5738
        %v5939 = vpack.c.b16 %v5741, %v5739
        %v5940 = vpack.c.b16 %v5744, %v5742
        %v5941 = vpack.c.b16 %v5745, %v5743
        %v5942 = vpack.c.b16 %v5748, %v5746
        %v5943 = vpack.c.b16 %v5749, %v5747
        %v5944 = vpack.c.b16 %v5752, %v5750
        %v5945 = vpack.c.b16 %v5753, %v5751
        %v5946 = vpack.c.b16 %v5756, %v5754
        %v5947 = vpack.c.b16 %v5757, %v5755
        %v5948 = vpack.c.b16 %v5760, %v5758
        %v5949 = vpack.c.b16 %v5761, %v5759
        %v5950 = vpack.c.b16 %v5764, %v5762
        %v5951 = vpack.c.b16 %v5765, %v5763
        %v5952 = vpack.c.b16 %v5768, %v5766
        %v5953 = vpack.c.b16 %v5769, %v5767
        %v5954 = vpack.c.b16 %v5772, %v5770
        %v5955 = vpack.c.b16 %v5773, %v5771
        %v5956 = vpack.c.b16 %v5776, %v5774
        %v5957 = vpack.c.b16 %v5777, %v5775
        %v5958 = vpack.c.b16 %v5780, %v5778
        %v5959 = vpack.c.b16 %v5781, %v5779
        %v5960 = vpack.c.b16 %v5784, %v5782
        %v5961 = vpack.c.b16 %v5785, %v5783
        %v5962 = vpack.c.b16 %v5788, %v5786
        %v5963 = vpack.c.b16 %v5789, %v5787
        %v5964 = vpack.c.b16 %v5792, %v5790
        %v5965 = vpack.c.b16 %v5793, %v5791
        %v5966 = vpack.c.b16 %v5796, %v5794
        %v5967 = vpack.c.b16 %v5797, %v5795
        %v5968 = vpack.c.b16 %v5800, %v5798
        %v5969 = vpack.c.b16 %v5801, %v5799
        %v5970 = vpack.c.b16 %v5804, %v5802
        %v5971 = vpack.c.b16 %v5805, %v5803
        %v5972 = vpack.c.b16 %v5808, %v5806
        %v5973 = vpack.c.b16 %v5809, %v5807
        %v5974 = vpack.c.b16 %v5812, %v5810
        %v5975 = vpack.c.b16 %v5813, %v5811
        %v5976 = vpack.c.b16 %v5816, %v5814
        %v5977 = vpack.c.b16 %v5817, %v5815
        %v5978 = vpack.c.b16 %v5820, %v5818
        %v5979 = vpack.c.b16 %v5821, %v5819
        %v5980 = vpack.c.b16 %v5824, %v5822
        %v5981 = vpack.c.b16 %v5825, %v5823
        %v5982 = vpack.c.b16 %v5828, %v5826
        %v5983 = vpack.c.b16 %v5829, %v5827
        %v5984 = vpack.c.b16 %v5832, %v5830
        %v5985 = vpack.c.b16 %v5833, %v5831
        %v5986 = vpack.c.b16 %v5836, %v5834
        %v5987 = vpack.c.b16 %v5837, %v5835
        %v5988 = vpack.c.b16 %v5840, %v5838
        %v5989 = vpack.c.b16 %v5841, %v5839
        %v5990 = vpack.c.b16 %v5844, %v5842
        %v5991 = vpack.c.b16 %v5845, %v5843
        %v5992 = vpack.c.b16 %v5848, %v5846
        %v5993 = vpack.c.b16 %v5849, %v5847
        %v5994 = vpack.c.b16 %v5852, %v5850
        %v5995 = vpack.c.b16 %v5853, %v5851
        %v5996 = vpack.c.b16 %v5856, %v5854
        %v5997 = vpack.c.b16 %v5857, %v5855
        %v5998 = vpack.c.b16 %v5860, %v5858
        %v5999 = vpack.c.b16 %v5861, %v5859
        %v6000 = vpack.c.b16 %v5864, %v5862
        %v6001 = vpack.c.b16 %v5865, %v5863
        %v6002 = vpack.c.b16 %v5868, %v5866
        %v6003 = vpack.c.b16 %v5869, %v5867
        %v6004 = vpack.c.b16 %v5872, %v5870
        %v6005 = vpack.c.b16 %v5873, %v5871
        %v6006 = vpack.c.b16 %v5876, %v5874
        %v6007 = vpack.c.b16 %v5877, %v5875
        %v6008 = vpack.c.b16 %v5880, %v5878
        %v6009 = vpack.c.b16 %v5881, %v5879
        %6138 = vmatprep.subr.bf16.mxu0 %v5897
        %6139 = vmatpush1.bf16.msra.mxu0 %v5896
        %6140 = vmatprep.subr.bf16.mxu0 %v5895
        %6141 = vmatpush1.bf16.msra.mxu0 %v5894
        %6142 = vmatprep.subr.bf16.mxu0 %v5893
        %6143 = vmatpush1.bf16.msra.mxu0 %v5892
        %6144 = vmatprep.subr.bf16.mxu0 %v5891
        %6145 = vmatpush1.bf16.msra.mxu0 %v5890
        %6146 = vmatprep.subr.bf16.mxu0 %v5889
        %6147 = vmatpush1.bf16.msra.mxu0 %v5888
        %6148 = vmatprep.subr.bf16.mxu0 %v5887
        %6149 = vmatpush1.bf16.msra.mxu0 %v5886
        %6150 = vmatprep.subr.bf16.mxu0 %v5885
        %6151 = vmatpush1.bf16.msra.mxu0 %v5884
        %6152 = vmatprep.subr.bf16.mxu0 %v5883
        %6153 = vmatpush1.bf16.msra.mxu0 %v5882
        %6154 = vmatprep.subr.bf16.mxu0 %v5913
        %6155 = vmatpush2.bf16.msra.mxu0 %v5912
        %6156 = vmatprep.subr.bf16.mxu0 %v5911
        %6157 = vmatpush2.bf16.msra.mxu0 %v5910
        %6158 = vmatprep.subr.bf16.mxu0 %v5909
        %6159 = vmatpush2.bf16.msra.mxu0 %v5908
        %6160 = vmatprep.subr.bf16.mxu0 %v5907
        %6161 = vmatpush2.bf16.msra.mxu0 %v5906
        %6162 = vmatprep.subr.bf16.mxu0 %v5905
        %6163 = vmatpush2.bf16.msra.mxu0 %v5904
        %6164 = vmatprep.subr.bf16.mxu0 %v5903
        %6165 = vmatpush2.bf16.msra.mxu0 %v5902
        %6166 = vmatprep.subr.bf16.mxu0 %v5901
        %6167 = vmatpush2.bf16.msra.mxu0 %v5900
        %6168 = vmatprep.subr.bf16.mxu0 %v5899
        %6169 = vmatpush2.bf16.msra.mxu0 %v5898
        %6170 = vmatprep.mubr.bf16.mxu0 %v5351
        %6171 = vmatmul.mubr.bf16.gmra.mxu0 %v5350
        %v6172 = vpop.f32.mrf.mxu0
        %v6173 = vadd.f32 %v5491, %v6172
        %v6174 = vpop.f32.mrf.mxu0
        %v6175 = vadd.f32 %v5495, %v6174
        %v6176 = vpop.f32.mrf.mxu0
        %v6177 = vpop.f32.mrf.mxu0
        %6178 = vdwg.mxu0
        %6179 = vmatprep.subr.bf16.mxu0 %v5929
        %6180 = vmatpush1.bf16.msra.mxu0 %v5928
        %6181 = vmatprep.subr.bf16.mxu0 %v5927
        %6182 = vmatpush1.bf16.msra.mxu0 %v5926
        %6183 = vmatprep.subr.bf16.mxu0 %v5925
        %6184 = vmatpush1.bf16.msra.mxu0 %v5924
        %6185 = vmatprep.subr.bf16.mxu0 %v5923
        %6186 = vmatpush1.bf16.msra.mxu0 %v5922
        %6187 = vmatprep.subr.bf16.mxu0 %v5921
        %6188 = vmatpush1.bf16.msra.mxu0 %v5920
        %6189 = vmatprep.subr.bf16.mxu0 %v5919
        %6190 = vmatpush1.bf16.msra.mxu0 %v5918
        %6191 = vmatprep.subr.bf16.mxu0 %v5917
        %6192 = vmatpush1.bf16.msra.mxu0 %v5916
        %6193 = vmatprep.subr.bf16.mxu0 %v5915
        %6194 = vmatpush1.bf16.msra.mxu0 %v5914
        %6195 = vmatprep.subr.bf16.mxu0 %v5945
        %6196 = vmatpush2.bf16.msra.mxu0 %v5944
        %6197 = vmatprep.subr.bf16.mxu0 %v5943
        %6198 = vmatpush2.bf16.msra.mxu0 %v5942
        %6199 = vmatprep.subr.bf16.mxu0 %v5941
        %6200 = vmatpush2.bf16.msra.mxu0 %v5940
        %6201 = vmatprep.subr.bf16.mxu0 %v5939
        %6202 = vmatpush2.bf16.msra.mxu0 %v5938
        %6203 = vmatprep.subr.bf16.mxu0 %v5937
        %6204 = vmatpush2.bf16.msra.mxu0 %v5936
        %6205 = vmatprep.subr.bf16.mxu0 %v5935
        %6206 = vmatpush2.bf16.msra.mxu0 %v5934
        %6207 = vmatprep.subr.bf16.mxu0 %v5933
        %6208 = vmatpush2.bf16.msra.mxu0 %v5932
        %6209 = vmatprep.subr.bf16.mxu0 %v5931
        %6210 = vmatpush2.bf16.msra.mxu0 %v5930
        %6211 = vmatprep.mubr.bf16.mxu0 %v5353
        %6212 = vmatmul.mubr.bf16.gmra.mxu0 %v5352
        %v6213 = vpop.f32.mrf.mxu0
        %v6214 = vadd.f32 %v6173, %v6213
        %v6215 = vpop.f32.mrf.mxu0
        %v6216 = vadd.f32 %v6175, %v6215
        %v6217 = vpop.f32.mrf.mxu0
        %v6218 = vpop.f32.mrf.mxu0
        %6219 = vdwg.mxu0
        %6220 = vmatprep.subr.bf16.mxu0 %v5961
        %6221 = vmatpush1.bf16.msra.mxu0 %v5960
        %6222 = vmatprep.subr.bf16.mxu0 %v5959
        %6223 = vmatpush1.bf16.msra.mxu0 %v5958
        %6224 = vmatprep.subr.bf16.mxu0 %v5957
        %6225 = vmatpush1.bf16.msra.mxu0 %v5956
        %6226 = vmatprep.subr.bf16.mxu0 %v5955
        %6227 = vmatpush1.bf16.msra.mxu0 %v5954
        %6228 = vmatprep.subr.bf16.mxu0 %v5953
        %6229 = vmatpush1.bf16.msra.mxu0 %v5952
        %6230 = vmatprep.subr.bf16.mxu0 %v5951
        %6231 = vmatpush1.bf16.msra.mxu0 %v5950
        %6232 = vmatprep.subr.bf16.mxu0 %v5949
        %6233 = vmatpush1.bf16.msra.mxu0 %v5948
        %6234 = vmatprep.subr.bf16.mxu0 %v5947
        %6235 = vmatpush1.bf16.msra.mxu0 %v5946
        %6236 = vmatprep.subr.bf16.mxu0 %v5977
        %6237 = vmatpush2.bf16.msra.mxu0 %v5976
        %6238 = vmatprep.subr.bf16.mxu0 %v5975
        %6239 = vmatpush2.bf16.msra.mxu0 %v5974
        %6240 = vmatprep.subr.bf16.mxu0 %v5973
        %6241 = vmatpush2.bf16.msra.mxu0 %v5972
        %6242 = vmatprep.subr.bf16.mxu0 %v5971
        %6243 = vmatpush2.bf16.msra.mxu0 %v5970
        %6244 = vmatprep.subr.bf16.mxu0 %v5969
        %6245 = vmatpush2.bf16.msra.mxu0 %v5968
        %6246 = vmatprep.subr.bf16.mxu0 %v5967
        %6247 = vmatpush2.bf16.msra.mxu0 %v5966
        %6248 = vmatprep.subr.bf16.mxu0 %v5965
        %6249 = vmatpush2.bf16.msra.mxu0 %v5964
        %6250 = vmatprep.subr.bf16.mxu0 %v5963
        %6251 = vmatpush2.bf16.msra.mxu0 %v5962
        %6252 = vmatprep.mubr.bf16.mxu0 %v5355
        %6253 = vmatmul.mubr.bf16.gmra.mxu0 %v5354
        %v6254 = vpop.f32.mrf.mxu0
        %v6255 = vadd.f32 %v6214, %v6254
        %v6256 = vpop.f32.mrf.mxu0
        %v6257 = vadd.f32 %v6216, %v6256
        %v6258 = vpop.f32.mrf.mxu0
        %v6259 = vpop.f32.mrf.mxu0
        %6260 = vdwg.mxu0
        %6261 = vmatprep.subr.bf16.mxu0 %v5993
        %6262 = vmatpush1.bf16.msra.mxu0 %v5992
        %6263 = vmatprep.subr.bf16.mxu0 %v5991
        %6264 = vmatpush1.bf16.msra.mxu0 %v5990
        %6265 = vmatprep.subr.bf16.mxu0 %v5989
        %6266 = vmatpush1.bf16.msra.mxu0 %v5988
        %6267 = vmatprep.subr.bf16.mxu0 %v5987
        %6268 = vmatpush1.bf16.msra.mxu0 %v5986
        %6269 = vmatprep.subr.bf16.mxu0 %v5985
        %6270 = vmatpush1.bf16.msra.mxu0 %v5984
        %6271 = vmatprep.subr.bf16.mxu0 %v5983
        %6272 = vmatpush1.bf16.msra.mxu0 %v5982
        %6273 = vmatprep.subr.bf16.mxu0 %v5981
        %6274 = vmatpush1.bf16.msra.mxu0 %v5980
        %6275 = vmatprep.subr.bf16.mxu0 %v5979
        %6276 = vmatpush1.bf16.msra.mxu0 %v5978
        %6277 = vmatprep.subr.bf16.mxu0 %v6009
        %6278 = vmatpush2.bf16.msra.mxu0 %v6008
        %6279 = vmatprep.subr.bf16.mxu0 %v6007
        %6280 = vmatpush2.bf16.msra.mxu0 %v6006
        %6281 = vmatprep.subr.bf16.mxu0 %v6005
        %6282 = vmatpush2.bf16.msra.mxu0 %v6004
        %6283 = vmatprep.subr.bf16.mxu0 %v6003
        %6284 = vmatpush2.bf16.msra.mxu0 %v6002
        %6285 = vmatprep.subr.bf16.mxu0 %v6001
        %6286 = vmatpush2.bf16.msra.mxu0 %v6000
        %6287 = vmatprep.subr.bf16.mxu0 %v5999
        %6288 = vmatpush2.bf16.msra.mxu0 %v5998
        %6289 = vmatprep.subr.bf16.mxu0 %v5997
        %6290 = vmatpush2.bf16.msra.mxu0 %v5996
        %6291 = vmatprep.subr.bf16.mxu0 %v5995
        %6292 = vmatpush2.bf16.msra.mxu0 %v5994
        %6293 = vmatprep.mubr.bf16.mxu0 %v5357
        %6294 = vmatmul.mubr.bf16.gmra.mxu0 %v5356
        %v6295 = vpop.f32.mrf.mxu0
        %v6296 = vadd.f32 %v6255, %v6295
        %v6297 = vpop.f32.mrf.mxu0
        %v6298 = vadd.f32 %v6257, %v6297
        %v6299 = vpop.f32.mrf.mxu0
        %v6300 = vpop.f32.mrf.mxu0
        %6301 = vdwg.mxu0
        %v6302 = vadd.f32 %v4331, %v6296
        %v6303 = vadd.f32 %v4332, %v6298
        %v6304 = vld [vmem:[%s14] sm:$0x3]
        %v6305 = vld [vmem:[%s15] sm:$0x3]
        %v6306 = vadd.f32 %v6302, %v6303
        %6307 = vadd.xlane.f32.xlu0 %v6306
        %v6308 = vpop.xlane.xlu0 %6307
        %v6309 = vmul.f32 %v6308, %v4293
        %v6310 = vsub.f32 %v6302, %v6309
        %v6311 = vsub.f32 %v6303, %v6309
        %v6312 = vmul.f32 %v6310, %v6310
        %v6313 = vmul.f32 %v6311, %v6311
        %v6314 = vadd.f32 %v6312, %v6313
        %6315 = vadd.xlane.f32.xlu0 %v6314
        %v6316 = vpop.xlane.xlu0 %6315
        %v6317 = vmul.f32 %v6316, %v4293
        %v6318 = vadd.f32 %v6317, 1e-05
        %v6319 = vrsqrt.pop %v6318
        %v6320 = vmul.f32 %v6310, %v6319
        %v6321 = vmul.f32 %v6311, %v6319
        %v6323 = vlaneseq
        %v6324 = vshrl.u32 %v6323, 7
        %v6325 = vsub.s32 0, %v6324
        %v6326 = vrot.slane %v6304, %v6325
        %v6327 = vlaneseq
        %v6328 = vshrl.u32 %v6327, 7
        %v6329 = vsub.s32 1, %v6328
        %v6330 = vrot.slane %v6304, %v6329
        %v6333 = vmul.f32 %v6320, %v6326
        %v6334 = vmul.f32 %v6321, %v6330
        %v6336 = vlaneseq
        %v6337 = vshrl.u32 %v6336, 7
        %v6338 = vsub.s32 0, %v6337
        %v6339 = vrot.slane %v6305, %v6338
        %v6340 = vlaneseq
        %v6341 = vshrl.u32 %v6340, 7
        %v6342 = vsub.s32 1, %v6341
        %v6343 = vrot.slane %v6305, %v6342
        %v6346 = vadd.f32 %v6333, %v6339
        %v6347 = vadd.f32 %v6334, %v6343
        %6348 = vst [vmem:[%s692] sm:$0xff] %v6346
        %6349 = vst [vmem:[%s692 + $0x8] sm:$0xff] %v6347
        %s6350 = sand.u32 %s409, 1
        %s6351 = scalar_lea.sflag [#allocation4], %s6350
        %s6352 = sand.u32 %s409, 1
        %s6353 = smul.addr %s6352, 16
        %s6354 = scalar_lea.vmem [#allocation17], %s6353
        // Predicated region
        $region121: #{tpu_custom_call.1} parent=83 // pred_check
          %p6355 = pneg %p419
        $region122: #{tpu_custom_call.1} parent=83 // pred_check_branch
          %6357 = sbr.rel (%p6355) target = $region124
        $region123: #{tpu_custom_call.1} parent=83 // pred_region
          %s6359 = ssub.s32 256, 256
          %6360 = vsyncadd %s6351, %s6359
          %s6361 = smul.addr %s44, 2
          %s6362 = smul.addr %s43, 4
          %s6363 = sadd.s32 %s6361, %s6362
          %s6364 = smul.addr %s6363, 128
          %s6365 = scalar_lea.hbm %s16, %s6364
          %s6367 = sshll.u32 %s6354, 4
          %s6368 = int_to_ptr.vmem [resolvable:$true] %s6367
          %6370 = dma.vmem_to_hbm [thread:$0]  %s6368, 256, %s6365, %s6351
        $region124: #{tpu_custom_call.1} parent=83 // pred_fallthru
          _
      $region84: #{tpu_custom_call.1} parent=5 // pred_fallthru
        _
      %p6371 = scmp.le.s32.totalorder 2, %s34
      // Predicated region
      $region125: #{tpu_custom_call.1} parent=5 // pred_check
        %p6372 = pneg %p6371
      $region126: #{tpu_custom_call.1} parent=5 // pred_check_branch
        %6374 = sbr.rel (%p6372) target = $region128
      $region127: #{tpu_custom_call.1} parent=5 // pred_region
        %s6375 = ssub.s32 %s34, 2
        // Predicated region
        $region129: #{tpu_custom_call.1} parent=127 // pred_check
          %p6376 = pneg %p425
        $region130: #{tpu_custom_call.1} parent=127 // pred_check_branch
          %6378 = sbr.rel (%p6376) target = $region132
        $region131: #{tpu_custom_call.1} parent=127 // pred_region
          %s6379 = sand.u32 %s410, 1
          %s6380 = scalar_lea.sflag [#allocation4], %s6379
          %s6381 = sand.u32 %s410, 1
          %s6382 = smul.addr %s6381, 16
          %s6383 = scalar_lea.vmem [#allocation17], %s6382
          %6384 = dma.done %s6380, 256
        $region132: #{tpu_custom_call.1} parent=127 // pred_fallthru
          _
      $region128: #{tpu_custom_call.1} parent=5 // pred_fallthru
        _
    $region6: #{tpu_custom_call.1} parent=1 // loop_footer
      %s38 = sadd.s32 1, %s34
    $region7: #{tpu_custom_call.1} parent=1 // loop_footer_branch
      %33 = sbr.rel target = $region3
    $region8: #{tpu_custom_call.1} parent=1 // loop_exit
      _
    %6385 = vsyncpa [#allocation3], 1
    %s6386 = scalar_lea.sflag [#allocation3], 1
    %6387 = vsyncpa %s6386, 1
    %6388 = vsyncpa [#allocation6], 1
    %s6389 = scalar_lea.sflag [#allocation6], 1
    %6390 = vsyncpa %s6389, 1
    %6391 = vsyncpa [#allocation9], 1
    %6392 = vsyncpa [#allocation12], 1
    %6393 = vsyncpa [#allocation15], 1
    %6394 = vsyncpa [#allocation4], 1
    %s6395 = scalar_lea.sflag [#allocation4], 1
    %6396 = vsyncpa %s6395, 1

</llo_original>
